<compile_context>
chip_gen: v7x
topology: tpu7x:2x2x1
jax: 0.10.0
libtpu: 0.0.40
codegen_flags: <defaults>
</compile_context>

<pallas_src>
import functools

import jax
import jax.numpy as jnp
from jax.experimental import pallas as pl
from jax.experimental.pallas import tpu as pltpu

# ---------------- configuration (small synthetic sizes) ----------------
NUM_IMGS = 2
NUM_ROIS = 4
C_INST = 32                 # conv_in/out_channels_instance
C_SEM = 32                  # conv_in/out_channels_semantic
NUM_CONVS_INST = 2
NUM_CONVS_SEM = 4
NUM_FCS = 3
STAGE_NUM_CLASSES = [8, 8, 8, 8]
STAGE_SUP_SIZE = [8, 16, 32, 64]   # instance feats start at 8x8, x2 per stage
SEM_H = SEM_W = 32
SEMANTIC_OUT_STRIDE = 4            # image assumed 128x128
NUM_POINTS = 16                    # cfg.num_points (train_cfg undefined in source)

# MXU operands are bf16; accumulation / bias / ReLU stay f32.
MXU_DTYPE = jnp.bfloat16


def _round_up(x, m):
    return ((x + m - 1) // m) * m


def _pick_row_block(H, W, target=512):
    """Largest divisor of H with row_block*W <= target (M-fill for the MXU)."""
    rb = max(1, min(H, target // max(W, 1)))
    while H % rb:
        rb -= 1
    return rb


def _mosaic_params(semantics, block_bytes, scratch_bytes=0):
    """vmem_limit_bytes sized from the real block shapes (blocks are
    double-buffered by the pipeline); 2x headroom for compiler scratch."""
    need = 2 * block_bytes + scratch_bytes
    limit = int(min(max(2 * need, 32 * 1024 * 1024), 100 * 1024 * 1024))
    return pltpu.CompilerParams(dimension_semantics=semantics,
                                vmem_limit_bytes=limit)


# ---------------- shared matmul (+bias, +ReLU) kernel ----------------
def _matmul_bias_kernel(x_ref, w_ref, b_ref, o_ref, *, relu):
    acc = jnp.dot(x_ref[...].astype(MXU_DTYPE), w_ref[...],
                  preferred_element_type=jnp.float32)
    acc = acc + b_ref[...]
    if relu:
        acc = jnp.maximum(acc, 0.0)
    o_ref[...] = acc.astype(o_ref.dtype)


def matmul_bias(x, w, b, relu=False, block_m=1024):
    """(M,K)@(K,N)+b with optional fused ReLU, row-tiled on the MXU.
    block_m adapts to M; weights are fed pre-cast to bf16."""
    M, K = x.shape
    Kw, N = w.shape
    assert K == Kw
    bm = min(block_m, _round_up(M, 8))
    Mp = _round_up(M, bm)
    xp = x if Mp == M else jnp.pad(x, ((0, Mp - M), (0, 0)))
    blk_bytes = bm * K * 4 + K * N * 2 + N * 4 + bm * N * 4
    out = pl.pallas_call(
        functools.partial(_matmul_bias_kernel, relu=relu),
        out_shape=jax.ShapeDtypeStruct((Mp, N), x.dtype),
        grid=(Mp // bm,),
        in_specs=[
            pl.BlockSpec((bm, K), lambda i: (i, 0)),
            pl.BlockSpec((K, N), lambda i: (0, 0)),
            pl.BlockSpec((1, N), lambda i: (0, 0)),
        ],
        out_specs=pl.BlockSpec((bm, N), lambda i: (i, 0)),
        compiler_params=_mosaic_params(("parallel",), blk_bytes),
    )(xp, w.astype(MXU_DTYPE), b.reshape(1, N))
    return out if Mp == M else out[:M]


def conv1x1_nhwc(x, w, b, relu=False):
    """1x1 Conv2d on NHWC input (w: (Cin, Cout))."""
    N, H, W, C = x.shape
    y = matmul_bias(x.reshape(N * H * W, C), w, b, relu=relu)
    return y.reshape(N, H, W, w.shape[1])


# ---------------- fused 3x3 conv tower + logits-head epilogue ----------------
def _conv_tower_kernel(x_ref, w_ref, b_ref, hw_ref, hb_ref, o_ref, h_ref, buf,
                       *, H, W, C, L, Nh, row_block):
    """L stacked 3x3 'same' conv + ReLU layers for one image, fully in VMEM.

    Each output row block is built from 9 accumulating MXU dots (one per
    (kh, kw) tap) into a single f32 accumulator - every operand stays
    lane-aligned and no im2col temp is materialized.  Layers ping-pong between
    two zero-halo bf16 VMEM buffers; only the 1-px halo ring is zeroed.  The
    fused 1x1 logits head runs as an epilogue on the last layer's activations.
    """
    z_row = jnp.zeros((1, W + 2, C), buf.dtype)
    z_col = jnp.zeros((H + 2, 1, C), buf.dtype)
    for pp in range(2):
        buf[pp, 0:1, :, :] = z_row
        buf[pp, H + 1:H + 2, :, :] = z_row
        buf[pp, :, 0:1, :] = z_col
        buf[pp, :, W + 1:W + 2, :] = z_col
    buf[0, 1:H + 1, 1:W + 1, :] = x_ref[0].astype(buf.dtype)

    for l in range(L):
        src, dst = l % 2, (l + 1) % 2
        last = l == L - 1
        b_l = b_ref[l]                                        # (C,) f32
        for rb in range(H // row_block):
            r0 = rb * row_block
            acc = None
            for kh in range(3):
                for kw in range(3):
                    tap = kh * 3 + kw
                    patch = buf[src, r0 + kh:r0 + kh + row_block, kw:kw + W, :]
                    part = jnp.dot(patch.reshape(row_block * W, C),
                                   w_ref[l, tap * C:(tap + 1) * C, :],
                                   preferred_element_type=jnp.float32)
                    acc = part if acc is None else acc + part
            act = jnp.maximum(acc + b_l[None, :], 0.0)        # (rb*W, C) f32
            if not last:
                buf[dst, 1 + r0:1 + r0 + row_block, 1:1 + W, :] = (
                    act.reshape(row_block, W, C).astype(buf.dtype))
            else:
                o_ref[0, r0:r0 + row_block, :, :] = (
                    act.reshape(row_block, W, C).astype(o_ref.dtype))
                hlog = jnp.dot(act.astype(MXU_DTYPE), hw_ref[...],
                               preferred_element_type=jnp.float32) + hb_ref[...]
                h_ref[0, r0:r0 + row_block, :, :] = (
                    hlog.reshape(row_block, W, Nh).astype(h_ref.dtype))


def conv_tower_nhwc(x, ws, bs, head_w, head_b):
    """Whole 3x3 conv tower + fused 1x1 logits head in ONE pallas_call,
    grid over batch (megacore-parallel).  Returns (feats, head_logits)."""
    N, H, W, C = x.shape
    L = len(ws)
    assert all(w.shape == (3, 3, C, C) for w in ws)
    Nh = head_w.shape[1]
    w9 = jnp.stack([w.reshape(9 * C, C) for w in ws]).astype(MXU_DTYPE)
    bL = jnp.stack(list(bs))
    row_block = _pick_row_block(H, W)
    blk_bytes = (2 * H * W * C * 4 + H * W * Nh * 4
                 + L * 9 * C * C * 2 + L * C * 4 + C * Nh * 2 + Nh * 4)
    scratch_bytes = 2 * (H + 2) * (W + 2) * C * 2
    # TODO(synk): at production sizes (C=256, up to 112x112) whole-image
    # residency exceeds v7x's 64 MiB VMEM - switch to a row-strip grid (strip +
    # halo via index_map) / per-layer calls and re-derive row_block there.
    return pl.pallas_call(
        functools.partial(_conv_tower_kernel, H=H, W=W, C=C, L=L, Nh=Nh,
                          row_block=row_block),
        out_shape=(jax.ShapeDtypeStruct((N, H, W, C), x.dtype),
                   jax.ShapeDtypeStruct((N, H, W, Nh), x.dtype)),
        grid=(N,),
        in_specs=[
            pl.BlockSpec((1, H, W, C), lambda n: (n, 0, 0, 0)),
            pl.BlockSpec((L, 9 * C, C), lambda n: (0, 0, 0)),
            pl.BlockSpec((L, C), lambda n: (0, 0)),
            pl.BlockSpec((C, Nh), lambda n: (0, 0)),
            pl.BlockSpec((1, Nh), lambda n: (0, 0)),
        ],
        out_specs=(pl.BlockSpec((1, H, W, C), lambda n: (n, 0, 0, 0)),
                   pl.BlockSpec((1, H, W, Nh), lambda n: (n, 0, 0, 0))),
        scratch_shapes=[pltpu.VMEM((2, H + 2, W + 2, C), MXU_DTYPE)],
        compiler_params=_mosaic_params(("parallel",), blk_bytes, scratch_bytes),
    )(x, w9, bL, head_w.astype(MXU_DTYPE), head_b.reshape(1, Nh))


# ---------------- fused fuse_transform + 2x bilinear upsample + next head ----
def _bilinear2x_to_ref(z, out_ref):
    """2x bilinear upsample (align_corners=False, border clamp) of z
    (Hz, Wz, Cz), written as an interleaved (1, 2Hz, Wz, 2, Cz) block:
    [..., 0, :] = even output columns, [..., 1, :] = odd output columns.
    Row taps use cheap axis-0 slices; column taps come from two shared slices
    stored straight into the output ref (no full-map sublane concat temps)."""
    Hz, Wz, Cz = z.shape
    prev_h = jnp.concatenate([z[:1], z[:-1]], axis=0)
    next_h = jnp.concatenate([z[1:], z[-1:]], axis=0)
    even_h = 0.25 * prev_h + 0.75 * z
    odd_h = 0.75 * z + 0.25 * next_h
    yh = jnp.concatenate([even_h[:, None], odd_h[:, None]],
                         axis=1).reshape(2 * Hz, Wz, Cz)
    a = yh[:, :Wz - 1]                       # column j-1 / j taps
    b = yh[:, 1:]                            # column j   / j+1 taps
    dt = out_ref.dtype
    out_ref[0, :, 1:Wz, 0, :] = (0.25 * a + 0.75 * b).astype(dt)
    out_ref[0, :, 0:1, 0, :] = yh[:, 0:1].astype(dt)
    out_ref[0, :, 0:Wz - 1, 1, :] = (0.75 * a + 0.25 * b).astype(dt)
    out_ref[0, :, Wz - 1:Wz, 1, :] = yh[:, Wz - 1:Wz].astype(dt)


def _fuse_upsample_kernel(x_ref, fw_ref, fb_ref, hw_ref, hb_ref, of_ref,
                          ol_ref, *, H, W, Cin, Cf, Nh):
    """fuse_transform_out 1x1 conv + ReLU + bilinear 2x upsample, plus the NEXT
    stage's (or final) instance+detail 1x1 logits head, fused in one kernel.

    The affine head commutes with the (convex) bilinear interpolation, so it is
    applied at low resolution and upsampled alongside the features.  The
    post-upsample ReLU is a no-op (non-negative inputs, non-negative taps)."""
    x = x_ref[0].reshape(H * W, Cin).astype(MXU_DTYPE)
    t = jnp.dot(x, fw_ref[...], preferred_element_type=jnp.float32)
    t = jnp.maximum(t + fb_ref[...], 0.0)                              # (HW,Cf)
    lg = jnp.dot(t.astype(MXU_DTYPE), hw_ref[...],
                 preferred_element_type=jnp.float32) + hb_ref[...]     # (HW,Nh)
    _bilinear2x_to_ref(t.reshape(H, W, Cf), of_ref)
    _bilinear2x_to_ref(lg.reshape(H, W, Nh), ol_ref)


def fuse_upsample_nhwc(x, fuse_w, fuse_b, head_w, head_b):
    """relu(conv1x1(x)) -> bilinear 2x upsample, plus the next-stage logits
    head, one launch per image.  Returns (feats (N,2H,2W,Cf), logits)."""
    N, H, W, Cin = x.shape
    Cf = fuse_w.shape[1]
    Nh = head_w.shape[1]
    blk_bytes = (H * W * Cin * 4 + 2 * H * W * 2 * (Cf + Nh) * 4
                 + Cin * Cf * 2 + Cf * 4 + Cf * Nh * 2 + Nh * 4)
    # TODO(synk): for production sizes add a row-strip grid axis (1-row halo)
    # so v7x's two TensorCores get more than one step per image.
    of, ol = pl.pallas_call(
        functools.partial(_fuse_upsample_kernel, H=H, W=W, Cin=Cin, Cf=Cf,
                          Nh=Nh),
        out_shape=(jax.ShapeDtypeStruct((N, 2 * H, W, 2, Cf), x.dtype),
                   jax.ShapeDtypeStruct((N, 2 * H, W, 2, Nh), x.dtype)),
        grid=(N,),
        in_specs=[
            pl.BlockSpec((1, H, W, Cin), lambda n: (n, 0, 0, 0)),
            pl.BlockSpec((Cin, Cf), lambda n: (0, 0)),
            pl.BlockSpec((1, Cf), lambda n: (0, 0)),
            pl.BlockSpec((Cf, Nh), lambda n: (0, 0)),
            pl.BlockSpec((1, Nh), lambda n: (0, 0)),
        ],
        out_specs=(pl.BlockSpec((1, 2 * H, W, 2, Cf),
                                lambda n: (n, 0, 0, 0, 0)),
                   pl.BlockSpec((1, 2 * H, W, 2, Nh),
                                lambda n: (n, 0, 0, 0, 0))),
        compiler_params=_mosaic_params(("parallel",), blk_bytes),
    )(x, fuse_w.astype(MXU_DTYPE), fuse_b.reshape(1, Cf),
      head_w.astype(MXU_DTYPE), head_b.reshape(1, Nh))
    # (N,2H,W,2,C) -> (N,2H,2W,C) is row-major contiguous: metadata-only.
    return of.reshape(N, 2 * H, 2 * W, Cf), ol.reshape(N, 2 * H, 2 * W, Nh)


# ---------------- point-FC stack (Conv1d k=1 layers) ----------------
def point_fc_stack(fine, coarse, fc_w, fc_b):
    # TODO(synk): tiny (rois*points, 2C)@(2C, C) chain; a dedicated pallas_call
    # here is ~100% launch/DMA fixed cost (per perf review), so it is left to
    # XLA.  Source concatenates coarse after *every* fc but then scatters a
    # C-channel tensor; the concat after the last fc is skipped to keep
    # channels consistent.
    x = fine
    for l in range(fc_w.shape[0]):
        xin = jnp.concatenate([x, coarse], axis=-1)
        x = jax.nn.relu(jnp.einsum('npk,kc->npc', xin, fc_w[l]) + fc_b[l])
    return x


# ---------------- glue: bilinear point sampling (grid_sample, zeros pad) -----
def _point_sample_one(feat, px, py):
    # feat: (Hf, Wf, C); px/py: (P,) pixel coords.
    # Matches F.grid_sample(align_corners=False, padding_mode='zeros').
    Hf, Wf, _ = feat.shape
    x0f = jnp.floor(px)
    y0f = jnp.floor(py)
    fx = px - x0f
    fy = py - y0f
    x0 = x0f.astype(jnp.int32)
    y0 = y0f.astype(jnp.int32)

    def tap(yi, xi, w):
        inb = ((yi >= 0) & (yi < Hf) & (xi >= 0) & (xi < Wf)).astype(feat.dtype)
        v = feat[jnp.clip(yi, 0, Hf - 1), jnp.clip(xi, 0, Wf - 1)]
        return v * (w * inb)[:, None]

    return (tap(y0, x0, (1 - fy) * (1 - fx)) + tap(y0, x0 + 1, (1 - fy) * fx) +
            tap(y0 + 1, x0, fy * (1 - fx)) + tap(y0 + 1, x0 + 1, fy * fx))


# ---------------- SFM stage ----------------
def sfm_stage(params, instance_feats, logits, semantic_feat, rois, roi_labels,
              next_head_w, next_head_b):
    """One SFM stage.  `logits` (inst|det, fused) were already produced by the
    upstream kernel (conv tower epilogue / previous stage's fuse_upsample)."""
    N, H, W, C = instance_feats.shape
    nc = logits.shape[-1] // 2

    # semantic transform in + ReLU (1x1 conv on the shared semantic map)
    sem_t = conv1x1_nhwc(semantic_feat, params['sem_in_w'], params['sem_in_b'],
                         relu=True)

    def gather_label(lg):
        return jnp.take_along_axis(
            lg, roi_labels[:, None, None, None], axis=3)[..., 0]      # (N,H,W)

    instance_preds = gather_label(logits[..., :nc])[:, None]          # (N,1,H,W)
    detail_preds = gather_label(logits[..., nc:])[:, None]
    # mask_use_sigmoid=False: the source aliases detail_masks to instance_preds.
    detail_masks = instance_preds

    # topk "uncertain" points
    # TODO(synk): topk / gather / scatter are data-dependent; kept in JAX glue.
    pdm = detail_masks.reshape(N, H * W)
    P = min(NUM_POINTS, H * W)
    _, point_indices = jax.lax.top_k(pdm, P)                          # (N, P)
    w_step = 1.0 / W
    h_step = 1.0 / H
    px = w_step / 2.0 + (point_indices % W).astype(jnp.float32) * w_step
    py = h_step / 2.0 + (point_indices // W).astype(jnp.float32) * h_step

    # fine grained point feats from the transformed semantic feature
    spatial_scale = 1.0 / float(SEMANTIC_OUT_STRIDE)
    batch_inds = rois[:, 0].astype(jnp.int32)
    x1, y1, x2, y2 = rois[:, 1], rois[:, 2], rois[:, 3], rois[:, 4]
    abs_x = x1[:, None] + px * (x2 - x1)[:, None]
    abs_y = y1[:, None] + py * (y2 - y1)[:, None]
    pix_x = abs_x * spatial_scale - 0.5
    pix_y = abs_y * spatial_scale - 0.5
    roi_sem = sem_t[batch_inds]                                       # (N,Hs,Ws,C)
    fine = jax.vmap(_point_sample_one)(roi_sem, pix_x, pix_y)         # (N,P,C)

    # coarse point feats (channels-last gather)
    feats_flat = instance_feats.reshape(N, H * W, C)
    coarse_pts = jnp.take_along_axis(feats_flat, point_indices[:, :, None],
                                     axis=1)                          # (N,P,C)

    # point FCs (Conv1d k=1), coarse concat each layer  (plain XLA, see above)
    refined_pts = point_fc_stack(fine, coarse_pts, params['fc_w'],
                                 params['fc_b'])                      # (N,P,C)

    # scatter refined point feats back into the instance feature map
    refined = jax.vmap(lambda cf, idx, v: cf.at[idx].set(v))(
        feats_flat, point_indices, refined_pts)                       # (N,HW,C)
    refined = refined.reshape(N, H, W, C)

    # TODO(synk): source calls undefined `self.sample`; interpreted as
    # fuse_transform_out (1x1 conv C -> C//2) + ReLU, then bilinear 2x up.
    # The NEXT stage's (or final) logits head rides in the same kernel.
    refined, next_logits = fuse_upsample_nhwc(
        refined, params['fuse_w'], params['fuse_b'], next_head_w, next_head_b)
    return instance_preds, detail_preds, refined, next_logits


# ---------------- RefineMaskHead forward ----------------
def refine_mask_head_forward(params, instance_feats, semantic_feat, rois,
                             roi_labels):
    # fused (instance|detail) head weights per stage + final: stage 0's head is
    # the instance tower's epilogue, stage s+1's rides in stage s's
    # fuse_upsample, the final heads ride in the last stage's fuse_upsample.
    head_ws, head_bs = [], []
    for sp in params['stages']:
        head_ws.append(jnp.concatenate([sp['inst_w'], sp['det_w']], axis=1))
        head_bs.append(jnp.concatenate([sp['inst_b'], sp['det_b']], axis=0))
    head_ws.append(jnp.concatenate([params['final_inst_w'],
                                    params['final_det_w']], axis=1))
    head_bs.append(jnp.concatenate([params['final_inst_b'],
                                    params['final_det_b']], axis=0))

    iws, ibs = zip(*params['instance_convs'])
    x, logits = conv_tower_nhwc(instance_feats, iws, ibs,
                                head_ws[0], head_bs[0])
    sws, sbs = zip(*params['semantic_convs'])
    s, semantic_pred = conv_tower_nhwc(semantic_feat, sws, sbs,
                                       params['sem_logits_w'],
                                       params['sem_logits_b'])

    stage_instance_preds = []
    stage_detail_preds = []
    for idx, sp in enumerate(params['stages']):
        inst_p, det_p, x, logits = sfm_stage(
            sp, x, logits, s, rois, roi_labels,
            head_ws[idx + 1], head_bs[idx + 1])
        stage_instance_preds.append(inst_p)
        stage_detail_preds.append(det_p)

    labels = roi_labels
    if STAGE_NUM_CLASSES[-1] == 1:
        labels = jnp.minimum(labels, 0)
    nc = STAGE_NUM_CLASSES[-1]

    def g(lg):
        return jnp.take_along_axis(
            lg, labels[:, None, None, None], axis=3)[..., 0][:, None]

    # final heads' logits came fused out of the last stage's fuse_upsample
    stage_instance_preds.append(g(logits[..., :nc]))
    stage_detail_preds.append(g(logits[..., nc:]))
    # semantic_pred returned NCHW to match the torch convention
    return (stage_instance_preds, stage_detail_preds,
            jnp.transpose(semantic_pred, (0, 3, 1, 2)))


# ---------------- pure-JAX f32 references (used as spot checks) ----------------
def _conv_tower_ref(x, ws, bs, hw, hb):
    y = x
    for w, b in zip(ws, bs):
        y = jax.lax.conv_general_dilated(
            y, w, window_strides=(1, 1), padding='SAME',
            dimension_numbers=('NHWC', 'HWIO', 'NHWC'))
        y = jax.nn.relu(y + b)
    return y, jnp.einsum('nhwc,ck->nhwk', y, hw) + hb


def _upsample2x_ref(z):
    def up_axis(v, axis):
        n = v.shape[axis]
        coord = (jnp.arange(2 * n, dtype=jnp.float32) + 0.5) / 2.0 - 0.5
        i0 = jnp.floor(coord)
        f = coord - i0
        lo = jnp.clip(i0.astype(jnp.int32), 0, n - 1)
        hi = jnp.clip(i0.astype(jnp.int32) + 1, 0, n - 1)
        shape = [1] * v.ndim
        shape[axis] = 2 * n
        f = f.reshape(shape)
        return (1.0 - f) * jnp.take(v, lo, axis=axis) + f * jnp.take(v, hi,
                                                                     axis=axis)
    return up_axis(up_axis(z, 1), 2)


def _fuse_upsample_ref(x, fw, fb, hw, hb):
    t = jax.nn.relu(jnp.einsum('nhwc,ck->nhwk', x, fw) + fb)
    u = _upsample2x_ref(t)
    lg = jnp.einsum('nhwc,ck->nhwk', u, hw) + hb
    return u, lg


def _assert_close(a, b, atol, rtol=0.05):
    err = float(jnp.max(jnp.abs(a - b)))
    tol = atol + rtol * float(jnp.max(jnp.abs(b)))
    assert err < tol, f"max err {err} > tol {tol}"


# ---------------- deterministic parameter init ----------------
def init_params(key):
    keys = iter(jax.random.split(key, 256))

    def conv_w(cin, cout, k=1):
        w = jax.random.normal(next(keys), (k, k, cin, cout), jnp.float32)
        w = w * jnp.sqrt(2.0 / (k * k * cout))           # kaiming fan_out
        b = jnp.zeros((cout,), jnp.float32)
        return (w if k > 1 else w.reshape(cin, cout)), b

    p = {}
    p['instance_convs'] = [conv_w(C_INST, C_INST, 3) for _ in range(NUM_CONVS_INST)]
    p['semantic_convs'] = [conv_w(C_SEM, C_SEM, 3) for _ in range(NUM_CONVS_SEM)]
    p['sem_logits_w'], p['sem_logits_b'] = conv_w(C_SEM, 1)

    stages = []
    out_ch = C_INST
    for idx in range(len(STAGE_SUP_SIZE) - 1):
        in_ch = out_ch
        out_ch = in_ch // 2
        nc = STAGE_NUM_CLASSES[idx]
        sp = {}
        sp['sem_in_w'], sp['sem_in_b'] = conv_w(C_SEM, in_ch)
        sp['inst_w'], sp['inst_b'] = conv_w(in_ch, nc)
        sp['det_w'], sp['det_b'] = conv_w(in_ch, nc)
        fcw, fcb = [], []
        for _ in range(NUM_FCS):
            w, b = conv_w(2 * in_ch, in_ch)
            fcw.append(w)
            fcb.append(b)
        sp['fc_w'] = jnp.stack(fcw)          # (NUM_FCS, 2*in_ch, in_ch)
        sp['fc_b'] = jnp.stack(fcb)          # (NUM_FCS, in_ch)
        sp['fuse_w'], sp['fuse_b'] = conv_w(in_ch, out_ch)
        stages.append(sp)
    p['stages'] = stages
    p['final_inst_w'], p['final_inst_b'] = conv_w(out_ch, STAGE_NUM_CLASSES[-1])
    p['final_det_w'], p['final_det_b'] = conv_w(out_ch, STAGE_NUM_CLASSES[-1])
    return p


if __name__ == "__main__":
    key = jax.random.PRNGKey(0)
    k_p, k_i, k_s = jax.random.split(key, 3)
    params = init_params(k_p)

    instance_feats = jax.random.normal(
        k_i, (NUM_ROIS, STAGE_SUP_SIZE[0], STAGE_SUP_SIZE[0], C_INST), jnp.float32)
    semantic_feat = jax.random.normal(
        k_s, (NUM_IMGS, SEM_H, SEM_W, C_SEM), jnp.float32)
    rois = jnp.array([[0., 8., 8., 96., 80.],
                      [0., 16., 24., 112., 120.],
                      [1., 4., 4., 60., 60.],
                      [1., 32., 16., 120., 96.]], jnp.float32)
    roi_labels = jnp.array([1, 3, 5, 7], jnp.int32)

    # ---- spot-check the two fused kernels against pure-JAX f32 references ----
    iws, ibs = zip(*params['instance_convs'])
    hw0 = jnp.concatenate([params['stages'][0]['inst_w'],
                           params['stages'][0]['det_w']], axis=1)
    hb0 = jnp.concatenate([params['stages'][0]['inst_b'],
                           params['stages'][0]['det_b']], axis=0)
    fk, hk = conv_tower_nhwc(instance_feats, iws, ibs, hw0, hb0)
    fr, hr = _conv_tower_ref(instance_feats, iws, ibs, hw0, hb0)
    _assert_close(fk, fr, 0.10)
    _assert_close(hk, hr, 0.15)

    sp0 = params['stages'][0]
    hw1 = jnp.concatenate([params['stages'][1]['inst_w'],
                           params['stages'][1]['det_w']], axis=1)
    hb1 = jnp.concatenate([params['stages'][1]['inst_b'],
                           params['stages'][1]['det_b']], axis=0)
    uk, lk = fuse_upsample_nhwc(fk, sp0['fuse_w'], sp0['fuse_b'], hw1, hb1)
    ur, lr = _fuse_upsample_ref(fk, sp0['fuse_w'], sp0['fuse_b'], hw1, hb1)
    _assert_close(uk, ur, 0.10)
    _assert_close(lk, lr, 0.15)

    # ---- full forward ----
    fwd = jax.jit(lambda a, b, c, d: refine_mask_head_forward(params, a, b, c, d))
    out = fwd(instance_feats, semantic_feat, rois, roi_labels)
    jax.block_until_ready(out)

    stage_instance_preds, stage_detail_preds, semantic_pred = out
    assert len(stage_instance_preds) == len(STAGE_SUP_SIZE)
    assert len(stage_detail_preds) == len(STAGE_SUP_SIZE)
    for i, sz in enumerate(STAGE_SUP_SIZE):
        assert stage_instance_preds[i].shape == (NUM_ROIS, 1, sz, sz)
        assert stage_detail_preds[i].shape == (NUM_ROIS, 1, sz, sz)
    assert semantic_pred.shape == (NUM_IMGS, 1, SEM_H, SEM_W)
    print("KERNEL_OK")
</pallas_src>

<mosaic_0001>
module attributes {stable_mosaic.version = 11 : i64} {
  func.func @_conv_tower_kernel(%arg0: i32, %arg1: memref<1x8x8x32xf32, #tpu.memory_space<vmem>>, %arg2: memref<2x288x32xbf16, #tpu.memory_space<vmem>>, %arg3: memref<2x32xf32, #tpu.memory_space<vmem>>, %arg4: memref<32x16xbf16, #tpu.memory_space<vmem>>, %arg5: memref<1x16xf32, #tpu.memory_space<vmem>>, %arg6: memref<1x8x8x32xf32, #tpu.memory_space<vmem>>, %arg7: memref<1x8x8x16xf32, #tpu.memory_space<vmem>>, %arg8: memref<2x10x10x32xbf16, #tpu.memory_space<vmem>>) attributes {dimension_semantics = [#tpu.dimension_semantics<parallel>], iteration_bounds = array<i64: 4>, scalar_prefetch = 0 : i64, scratch_operands = 1 : i64, tpu.core_type = #tpu.core_type<tc>, window_params = [{transform_indices = @transform_0, window_bounds = array<i64: 1, 8, 8, 32>}, {pipeline_mode = #tpu.pipeline_mode<synchronous>, transform_indices = @transform_1, window_bounds = array<i64: 2, 288, 32>}, {pipeline_mode = #tpu.pipeline_mode<synchronous>, transform_indices = @transform_2, window_bounds = array<i64: 2, 32>}, {pipeline_mode = #tpu.pipeline_mode<synchronous>, transform_indices = @transform_3, window_bounds = array<i64: 32, 16>}, {pipeline_mode = #tpu.pipeline_mode<synchronous>, transform_indices = @transform_4, window_bounds = array<i64: 1, 16>}, {transform_indices = @transform_5, window_bounds = array<i64: 1, 8, 8, 32>}, {transform_indices = @transform_6, window_bounds = array<i64: 1, 8, 8, 16>}]} {
    %cst = arith.constant 0.000000e+00 : bf16
    %0 = vector.broadcast %cst : bf16 to vector<1x10x32xbf16>
    %cst_0 = arith.constant 0.000000e+00 : bf16
    %1 = vector.broadcast %cst_0 : bf16 to vector<10x1x32xbf16>
    %c0 = arith.constant 0 : index
    %c0_1 = arith.constant 0 : index
    %c0_2 = arith.constant 0 : index
    %c0_3 = arith.constant 0 : index
    %2 = vector.load %arg8[%c0, %c0_1, %c0_2, %c0_3] : memref<2x10x10x32xbf16, #tpu.memory_space<vmem>>, vector<1x1x10x32xbf16>
    %3 = vector.shape_cast %2 : vector<1x1x10x32xbf16> to vector<1x10x32xbf16>
    %4 = vector.shape_cast %0 : vector<1x10x32xbf16> to vector<1x1x10x32xbf16>
    tpu.vector_store %arg8[%c0, %c0_1, %c0_2, %c0_3], %4 {strides = array<i32>} : memref<2x10x10x32xbf16, #tpu.memory_space<vmem>>, vector<1x1x10x32xbf16>,
    %c0_4 = arith.constant 0 : index
    %c9 = arith.constant 9 : index
    %c0_5 = arith.constant 0 : index
    %c0_6 = arith.constant 0 : index
    %5 = vector.load %arg8[%c0_4, %c9, %c0_5, %c0_6] : memref<2x10x10x32xbf16, #tpu.memory_space<vmem>>, vector<1x1x10x32xbf16>
    %6 = vector.shape_cast %5 : vector<1x1x10x32xbf16> to vector<1x10x32xbf16>
    %7 = vector.shape_cast %0 : vector<1x10x32xbf16> to vector<1x1x10x32xbf16>
    tpu.vector_store %arg8[%c0_4, %c9, %c0_5, %c0_6], %7 {strides = array<i32>} : memref<2x10x10x32xbf16, #tpu.memory_space<vmem>>, vector<1x1x10x32xbf16>,
    %c0_7 = arith.constant 0 : index
    %c0_8 = arith.constant 0 : index
    %c0_9 = arith.constant 0 : index
    %c0_10 = arith.constant 0 : index
    %8 = vector.load %arg8[%c0_7, %c0_8, %c0_9, %c0_10] : memref<2x10x10x32xbf16, #tpu.memory_space<vmem>>, vector<1x10x1x32xbf16>
    %9 = vector.shape_cast %8 : vector<1x10x1x32xbf16> to vector<10x1x32xbf16>
    %10 = vector.shape_cast %1 : vector<10x1x32xbf16> to vector<1x10x1x32xbf16>
    tpu.vector_store %arg8[%c0_7, %c0_8, %c0_9, %c0_10], %10 {strides = array<i32>} : memref<2x10x10x32xbf16, #tpu.memory_space<vmem>>, vector<1x10x1x32xbf16>,
    %c0_11 = arith.constant 0 : index
    %c0_12 = arith.constant 0 : index
    %c9_13 = arith.constant 9 : index
    %c0_14 = arith.constant 0 : index
    %11 = vector.load %arg8[%c0_11, %c0_12, %c9_13, %c0_14] : memref<2x10x10x32xbf16, #tpu.memory_space<vmem>>, vector<1x10x1x32xbf16>
    %12 = vector.shape_cast %11 : vector<1x10x1x32xbf16> to vector<10x1x32xbf16>
    %13 = vector.shape_cast %1 : vector<10x1x32xbf16> to vector<1x10x1x32xbf16>
    tpu.vector_store %arg8[%c0_11, %c0_12, %c9_13, %c0_14], %13 {strides = array<i32>} : memref<2x10x10x32xbf16, #tpu.memory_space<vmem>>, vector<1x10x1x32xbf16>,
    %c1 = arith.constant 1 : index
    %c0_15 = arith.constant 0 : index
    %c0_16 = arith.constant 0 : index
    %c0_17 = arith.constant 0 : index
    %14 = vector.load %arg8[%c1, %c0_15, %c0_16, %c0_17] : memref<2x10x10x32xbf16, #tpu.memory_space<vmem>>, vector<1x1x10x32xbf16>
    %15 = vector.shape_cast %14 : vector<1x1x10x32xbf16> to vector<1x10x32xbf16>
    %16 = vector.shape_cast %0 : vector<1x10x32xbf16> to vector<1x1x10x32xbf16>
    tpu.vector_store %arg8[%c1, %c0_15, %c0_16, %c0_17], %16 {strides = array<i32>} : memref<2x10x10x32xbf16, #tpu.memory_space<vmem>>, vector<1x1x10x32xbf16>,
    %c1_18 = arith.constant 1 : index
    %c9_19 = arith.constant 9 : index
    %c0_20 = arith.constant 0 : index
    %c0_21 = arith.constant 0 : index
    %17 = vector.load %arg8[%c1_18, %c9_19, %c0_20, %c0_21] : memref<2x10x10x32xbf16, #tpu.memory_space<vmem>>, vector<1x1x10x32xbf16>
    %18 = vector.shape_cast %17 : vector<1x1x10x32xbf16> to vector<1x10x32xbf16>
    %19 = vector.shape_cast %0 : vector<1x10x32xbf16> to vector<1x1x10x32xbf16>
    tpu.vector_store %arg8[%c1_18, %c9_19, %c0_20, %c0_21], %19 {strides = array<i32>} : memref<2x10x10x32xbf16, #tpu.memory_space<vmem>>, vector<1x1x10x32xbf16>,
    %c1_22 = arith.constant 1 : index
    %c0_23 = arith.constant 0 : index
    %c0_24 = arith.constant 0 : index
    %c0_25 = arith.constant 0 : index
    %20 = vector.load %arg8[%c1_22, %c0_23, %c0_24, %c0_25] : memref<2x10x10x32xbf16, #tpu.memory_space<vmem>>, vector<1x10x1x32xbf16>
    %21 = vector.shape_cast %20 : vector<1x10x1x32xbf16> to vector<10x1x32xbf16>
    %22 = vector.shape_cast %1 : vector<10x1x32xbf16> to vector<1x10x1x32xbf16>
    tpu.vector_store %arg8[%c1_22, %c0_23, %c0_24, %c0_25], %22 {strides = array<i32>} : memref<2x10x10x32xbf16, #tpu.memory_space<vmem>>, vector<1x10x1x32xbf16>,
    %c1_26 = arith.constant 1 : index
    %c0_27 = arith.constant 0 : index
    %c9_28 = arith.constant 9 : index
    %c0_29 = arith.constant 0 : index
    %23 = vector.load %arg8[%c1_26, %c0_27, %c9_28, %c0_29] : memref<2x10x10x32xbf16, #tpu.memory_space<vmem>>, vector<1x10x1x32xbf16>
    %24 = vector.shape_cast %23 : vector<1x10x1x32xbf16> to vector<10x1x32xbf16>
    %25 = vector.shape_cast %1 : vector<10x1x32xbf16> to vector<1x10x1x32xbf16>
    tpu.vector_store %arg8[%c1_26, %c0_27, %c9_28, %c0_29], %25 {strides = array<i32>} : memref<2x10x10x32xbf16, #tpu.memory_space<vmem>>, vector<1x10x1x32xbf16>,
    %c0_30 = arith.constant 0 : index
    %c0_31 = arith.constant 0 : index
    %c0_32 = arith.constant 0 : index
    %c0_33 = arith.constant 0 : index
    %26 = vector.load %arg1[%c0_30, %c0_31, %c0_32, %c0_33] : memref<1x8x8x32xf32, #tpu.memory_space<vmem>>, vector<1x8x8x32xf32>
    %27 = vector.shape_cast %26 : vector<1x8x8x32xf32> to vector<8x8x32xf32>
    %28 = arith.truncf %27 : vector<8x8x32xf32> to vector<8x8x32xbf16>
    %c0_34 = arith.constant 0 : index
    %c1_35 = arith.constant 1 : index
    %c1_36 = arith.constant 1 : index
    %c0_37 = arith.constant 0 : index
    %29 = vector.load %arg8[%c0_34, %c1_35, %c1_36, %c0_37] : memref<2x10x10x32xbf16, #tpu.memory_space<vmem>>, vector<1x8x8x32xbf16>
    %30 = vector.shape_cast %29 : vector<1x8x8x32xbf16> to vector<8x8x32xbf16>
    %31 = vector.shape_cast %28 : vector<8x8x32xbf16> to vector<1x8x8x32xbf16>
    tpu.vector_store %arg8[%c0_34, %c1_35, %c1_36, %c0_37], %31 {strides = array<i32>} : memref<2x10x10x32xbf16, #tpu.memory_space<vmem>>, vector<1x8x8x32xbf16>,
    %c0_38 = arith.constant 0 : index
    %c0_39 = arith.constant 0 : index
    %32 = vector.load %arg3[%c0_38, %c0_39] : memref<2x32xf32, #tpu.memory_space<vmem>>, vector<1x32xf32>
    %33 = vector.shape_cast %32 : vector<1x32xf32> to vector<32xf32>
    %c0_40 = arith.constant 0 : index
    %c0_41 = arith.constant 0 : index
    %c0_42 = arith.constant 0 : index
    %c0_43 = arith.constant 0 : index
    %34 = vector.load %arg8[%c0_40, %c0_41, %c0_42, %c0_43] : memref<2x10x10x32xbf16, #tpu.memory_space<vmem>>, vector<1x8x8x32xbf16>
    %35 = vector.shape_cast %34 : vector<1x8x8x32xbf16> to vector<8x8x32xbf16>
    %36 = vector.shape_cast %35 : vector<8x8x32xbf16> to vector<64x32xbf16>
    %c0_44 = arith.constant 0 : index
    %c0_45 = arith.constant 0 : index
    %c0_46 = arith.constant 0 : index
    %37 = vector.load %arg2[%c0_44, %c0_45, %c0_46] : memref<2x288x32xbf16, #tpu.memory_space<vmem>>, vector<1x32x32xbf16>
    %38 = vector.shape_cast %37 : vector<1x32x32xbf16> to vector<32x32xbf16>
    %cst_47 = arith.constant dense<0.000000e+00> : vector<64x32xf32>
    %39 = tpu.matmul %36, %38, %cst_47 {dimension_numbers = #tpu.dot_dimension_numbers<[1], [0], [0], [1], [0, 0, 1, 1], [], []>} : vector<64x32xbf16>, vector<32x32xbf16>, vector<64x32xf32> -> vector<64x32xf32>
    %c0_48 = arith.constant 0 : index
    %c0_49 = arith.constant 0 : index
    %c1_50 = arith.constant 1 : index
    %c0_51 = arith.constant 0 : index
    %40 = vector.load %arg8[%c0_48, %c0_49, %c1_50, %c0_51] : memref<2x10x10x32xbf16, #tpu.memory_space<vmem>>, vector<1x8x8x32xbf16>
    %41 = vector.shape_cast %40 : vector<1x8x8x32xbf16> to vector<8x8x32xbf16>
    %42 = vector.shape_cast %41 : vector<8x8x32xbf16> to vector<64x32xbf16>
    %c0_52 = arith.constant 0 : index
    %c32 = arith.constant 32 : index
    %c0_53 = arith.constant 0 : index
    %43 = vector.load %arg2[%c0_52, %c32, %c0_53] : memref<2x288x32xbf16, #tpu.memory_space<vmem>>, vector<1x32x32xbf16>
    %44 = vector.shape_cast %43 : vector<1x32x32xbf16> to vector<32x32xbf16>
    %cst_54 = arith.constant dense<0.000000e+00> : vector<64x32xf32>
    %45 = tpu.matmul %42, %44, %cst_54 {dimension_numbers = #tpu.dot_dimension_numbers<[1], [0], [0], [1], [0, 0, 1, 1], [], []>} : vector<64x32xbf16>, vector<32x32xbf16>, vector<64x32xf32> -> vector<64x32xf32>
    %46 = arith.addf %39, %45 : vector<64x32xf32>
    %c0_55 = arith.constant 0 : index
    %c0_56 = arith.constant 0 : index
    %c2 = arith.constant 2 : index
    %c0_57 = arith.constant 0 : index
    %47 = vector.load %arg8[%c0_55, %c0_56, %c2, %c0_57] : memref<2x10x10x32xbf16, #tpu.memory_space<vmem>>, vector<1x8x8x32xbf16>
    %48 = vector.shape_cast %47 : vector<1x8x8x32xbf16> to vector<8x8x32xbf16>
    %49 = vector.shape_cast %48 : vector<8x8x32xbf16> to vector<64x32xbf16>
    %c0_58 = arith.constant 0 : index
    %c64 = arith.constant 64 : index
    %c0_59 = arith.constant 0 : index
    %50 = vector.load %arg2[%c0_58, %c64, %c0_59] : memref<2x288x32xbf16, #tpu.memory_space<vmem>>, vector<1x32x32xbf16>
    %51 = vector.shape_cast %50 : vector<1x32x32xbf16> to vector<32x32xbf16>
    %cst_60 = arith.constant dense<0.000000e+00> : vector<64x32xf32>
    %52 = tpu.matmul %49, %51, %cst_60 {dimension_numbers = #tpu.dot_dimension_numbers<[1], [0], [0], [1], [0, 0, 1, 1], [], []>} : vector<64x32xbf16>, vector<32x32xbf16>, vector<64x32xf32> -> vector<64x32xf32>
    %53 = arith.addf %46, %52 : vector<64x32xf32>
    %c0_61 = arith.constant 0 : index
    %c1_62 = arith.constant 1 : index
    %c0_63 = arith.constant 0 : index
    %c0_64 = arith.constant 0 : index
    %54 = vector.load %arg8[%c0_61, %c1_62, %c0_63, %c0_64] : memref<2x10x10x32xbf16, #tpu.memory_space<vmem>>, vector<1x8x8x32xbf16>
    %55 = vector.shape_cast %54 : vector<1x8x8x32xbf16> to vector<8x8x32xbf16>
    %56 = vector.shape_cast %55 : vector<8x8x32xbf16> to vector<64x32xbf16>
    %c0_65 = arith.constant 0 : index
    %c96 = arith.constant 96 : index
    %c0_66 = arith.constant 0 : index
    %57 = vector.load %arg2[%c0_65, %c96, %c0_66] : memref<2x288x32xbf16, #tpu.memory_space<vmem>>, vector<1x32x32xbf16>
    %58 = vector.shape_cast %57 : vector<1x32x32xbf16> to vector<32x32xbf16>
    %cst_67 = arith.constant dense<0.000000e+00> : vector<64x32xf32>
    %59 = tpu.matmul %56, %58, %cst_67 {dimension_numbers = #tpu.dot_dimension_numbers<[1], [0], [0], [1], [0, 0, 1, 1], [], []>} : vector<64x32xbf16>, vector<32x32xbf16>, vector<64x32xf32> -> vector<64x32xf32>
    %60 = arith.addf %53, %59 : vector<64x32xf32>
    %c0_68 = arith.constant 0 : index
    %c1_69 = arith.constant 1 : index
    %c1_70 = arith.constant 1 : index
    %c0_71 = arith.constant 0 : index
    %61 = vector.load %arg8[%c0_68, %c1_69, %c1_70, %c0_71] : memref<2x10x10x32xbf16, #tpu.memory_space<vmem>>, vector<1x8x8x32xbf16>
    %62 = vector.shape_cast %61 : vector<1x8x8x32xbf16> to vector<8x8x32xbf16>
    %63 = vector.shape_cast %62 : vector<8x8x32xbf16> to vector<64x32xbf16>
    %c0_72 = arith.constant 0 : index
    %c128 = arith.constant 128 : index
    %c0_73 = arith.constant 0 : index
    %64 = vector.load %arg2[%c0_72, %c128, %c0_73] : memref<2x288x32xbf16, #tpu.memory_space<vmem>>, vector<1x32x32xbf16>
    %65 = vector.shape_cast %64 : vector<1x32x32xbf16> to vector<32x32xbf16>
    %cst_74 = arith.constant dense<0.000000e+00> : vector<64x32xf32>
    %66 = tpu.matmul %63, %65, %cst_74 {dimension_numbers = #tpu.dot_dimension_numbers<[1], [0], [0], [1], [0, 0, 1, 1], [], []>} : vector<64x32xbf16>, vector<32x32xbf16>, vector<64x32xf32> -> vector<64x32xf32>
    %67 = arith.addf %60, %66 : vector<64x32xf32>
    %c0_75 = arith.constant 0 : index
    %c1_76 = arith.constant 1 : index
    %c2_77 = arith.constant 2 : index
    %c0_78 = arith.constant 0 : index
    %68 = vector.load %arg8[%c0_75, %c1_76, %c2_77, %c0_78] : memref<2x10x10x32xbf16, #tpu.memory_space<vmem>>, vector<1x8x8x32xbf16>
    %69 = vector.shape_cast %68 : vector<1x8x8x32xbf16> to vector<8x8x32xbf16>
    %70 = vector.shape_cast %69 : vector<8x8x32xbf16> to vector<64x32xbf16>
    %c0_79 = arith.constant 0 : index
    %c160 = arith.constant 160 : index
    %c0_80 = arith.constant 0 : index
    %71 = vector.load %arg2[%c0_79, %c160, %c0_80] : memref<2x288x32xbf16, #tpu.memory_space<vmem>>, vector<1x32x32xbf16>
    %72 = vector.shape_cast %71 : vector<1x32x32xbf16> to vector<32x32xbf16>
    %cst_81 = arith.constant dense<0.000000e+00> : vector<64x32xf32>
    %73 = tpu.matmul %70, %72, %cst_81 {dimension_numbers = #tpu.dot_dimension_numbers<[1], [0], [0], [1], [0, 0, 1, 1], [], []>} : vector<64x32xbf16>, vector<32x32xbf16>, vector<64x32xf32> -> vector<64x32xf32>
    %74 = arith.addf %67, %73 : vector<64x32xf32>
    %c0_82 = arith.constant 0 : index
    %c2_83 = arith.constant 2 : index
    %c0_84 = arith.constant 0 : index
    %c0_85 = arith.constant 0 : index
    %75 = vector.load %arg8[%c0_82, %c2_83, %c0_84, %c0_85] : memref<2x10x10x32xbf16, #tpu.memory_space<vmem>>, vector<1x8x8x32xbf16>
    %76 = vector.shape_cast %75 : vector<1x8x8x32xbf16> to vector<8x8x32xbf16>
    %77 = vector.shape_cast %76 : vector<8x8x32xbf16> to vector<64x32xbf16>
    %c0_86 = arith.constant 0 : index
    %c192 = arith.constant 192 : index
    %c0_87 = arith.constant 0 : index
    %78 = vector.load %arg2[%c0_86, %c192, %c0_87] : memref<2x288x32xbf16, #tpu.memory_space<vmem>>, vector<1x32x32xbf16>
    %79 = vector.shape_cast %78 : vector<1x32x32xbf16> to vector<32x32xbf16>
    %cst_88 = arith.constant dense<0.000000e+00> : vector<64x32xf32>
    %80 = tpu.matmul %77, %79, %cst_88 {dimension_numbers = #tpu.dot_dimension_numbers<[1], [0], [0], [1], [0, 0, 1, 1], [], []>} : vector<64x32xbf16>, vector<32x32xbf16>, vector<64x32xf32> -> vector<64x32xf32>
    %81 = arith.addf %74, %80 : vector<64x32xf32>
    %c0_89 = arith.constant 0 : index
    %c2_90 = arith.constant 2 : index
    %c1_91 = arith.constant 1 : index
    %c0_92 = arith.constant 0 : index
    %82 = vector.load %arg8[%c0_89, %c2_90, %c1_91, %c0_92] : memref<2x10x10x32xbf16, #tpu.memory_space<vmem>>, vector<1x8x8x32xbf16>
    %83 = vector.shape_cast %82 : vector<1x8x8x32xbf16> to vector<8x8x32xbf16>
    %84 = vector.shape_cast %83 : vector<8x8x32xbf16> to vector<64x32xbf16>
    %c0_93 = arith.constant 0 : index
    %c224 = arith.constant 224 : index
    %c0_94 = arith.constant 0 : index
    %85 = vector.load %arg2[%c0_93, %c224, %c0_94] : memref<2x288x32xbf16, #tpu.memory_space<vmem>>, vector<1x32x32xbf16>
    %86 = vector.shape_cast %85 : vector<1x32x32xbf16> to vector<32x32xbf16>
    %cst_95 = arith.constant dense<0.000000e+00> : vector<64x32xf32>
    %87 = tpu.matmul %84, %86, %cst_95 {dimension_numbers = #tpu.dot_dimension_numbers<[1], [0], [0], [1], [0, 0, 1, 1], [], []>} : vector<64x32xbf16>, vector<32x32xbf16>, vector<64x32xf32> -> vector<64x32xf32>
    %88 = arith.addf %81, %87 : vector<64x32xf32>
    %c0_96 = arith.constant 0 : index
    %c2_97 = arith.constant 2 : index
    %c2_98 = arith.constant 2 : index
    %c0_99 = arith.constant 0 : index
    %89 = vector.load %arg8[%c0_96, %c2_97, %c2_98, %c0_99] : memref<2x10x10x32xbf16, #tpu.memory_space<vmem>>, vector<1x8x8x32xbf16>
    %90 = vector.shape_cast %89 : vector<1x8x8x32xbf16> to vector<8x8x32xbf16>
    %91 = vector.shape_cast %90 : vector<8x8x32xbf16> to vector<64x32xbf16>
    %c0_100 = arith.constant 0 : index
    %c256 = arith.constant 256 : index
    %c0_101 = arith.constant 0 : index
    %92 = vector.load %arg2[%c0_100, %c256, %c0_101] : memref<2x288x32xbf16, #tpu.memory_space<vmem>>, vector<1x32x32xbf16>
    %93 = vector.shape_cast %92 : vector<1x32x32xbf16> to vector<32x32xbf16>
    %cst_102 = arith.constant dense<0.000000e+00> : vector<64x32xf32>
    %94 = tpu.matmul %91, %93, %cst_102 {dimension_numbers = #tpu.dot_dimension_numbers<[1], [0], [0], [1], [0, 0, 1, 1], [], []>} : vector<64x32xbf16>, vector<32x32xbf16>, vector<64x32xf32> -> vector<64x32xf32>
    %95 = arith.addf %88, %94 : vector<64x32xf32>
    %96 = vector.shape_cast %33 : vector<32xf32> to vector<1x32xf32>
    %97 = vector.broadcast %96 : vector<1x32xf32> to vector<64x32xf32>
    %98 = arith.addf %95, %97 : vector<64x32xf32>
    %cst_103 = arith.constant 0.000000e+00 : f32
    %99 = vector.broadcast %cst_103 : f32 to vector<64x32xf32>
    %100 = arith.maximumf %98, %99 : vector<64x32xf32>
    %101 = vector.shape_cast %100 : vector<64x32xf32> to vector<8x8x32xf32>
    %102 = arith.truncf %101 : vector<8x8x32xf32> to vector<8x8x32xbf16>
    %c1_104 = arith.constant 1 : index
    %c1_105 = arith.constant 1 : index
    %c1_106 = arith.constant 1 : index
    %c0_107 = arith.constant 0 : index
    %103 = vector.load %arg8[%c1_104, %c1_105, %c1_106, %c0_107] : memref<2x10x10x32xbf16, #tpu.memory_space<vmem>>, vector<1x8x8x32xbf16>
    %104 = vector.shape_cast %103 : vector<1x8x8x32xbf16> to vector<8x8x32xbf16>
    %105 = vector.shape_cast %102 : vector<8x8x32xbf16> to vector<1x8x8x32xbf16>
    tpu.vector_store %arg8[%c1_104, %c1_105, %c1_106, %c0_107], %105 {strides = array<i32>} : memref<2x10x10x32xbf16, #tpu.memory_space<vmem>>, vector<1x8x8x32xbf16>,
    %c1_108 = arith.constant 1 : index
    %c0_109 = arith.constant 0 : index
    %106 = vector.load %arg3[%c1_108, %c0_109] : memref<2x32xf32, #tpu.memory_space<vmem>>, vector<1x32xf32>
    %107 = vector.shape_cast %106 : vector<1x32xf32> to vector<32xf32>
    %c1_110 = arith.constant 1 : index
    %c0_111 = arith.constant 0 : index
    %c0_112 = arith.constant 0 : index
    %c0_113 = arith.constant 0 : index
    %108 = vector.load %arg8[%c1_110, %c0_111, %c0_112, %c0_113] : memref<2x10x10x32xbf16, #tpu.memory_space<vmem>>, vector<1x8x8x32xbf16>
    %109 = vector.shape_cast %108 : vector<1x8x8x32xbf16> to vector<8x8x32xbf16>
    %110 = vector.shape_cast %109 : vector<8x8x32xbf16> to vector<64x32xbf16>
    %c1_114 = arith.constant 1 : index
    %c0_115 = arith.constant 0 : index
    %c0_116 = arith.constant 0 : index
    %111 = vector.load %arg2[%c1_114, %c0_115, %c0_116] : memref<2x288x32xbf16, #tpu.memory_space<vmem>>, vector<1x32x32xbf16>
    %112 = vector.shape_cast %111 : vector<1x32x32xbf16> to vector<32x32xbf16>
    %cst_117 = arith.constant dense<0.000000e+00> : vector<64x32xf32>
    %113 = tpu.matmul %110, %112, %cst_117 {dimension_numbers = #tpu.dot_dimension_numbers<[1], [0], [0], [1], [0, 0, 1, 1], [], []>} : vector<64x32xbf16>, vector<32x32xbf16>, vector<64x32xf32> -> vector<64x32xf32>
    %c1_118 = arith.constant 1 : index
    %c0_119 = arith.constant 0 : index
    %c1_120 = arith.constant 1 : index
    %c0_121 = arith.constant 0 : index
    %114 = vector.load %arg8[%c1_118, %c0_119, %c1_120, %c0_121] : memref<2x10x10x32xbf16, #tpu.memory_space<vmem>>, vector<1x8x8x32xbf16>
    %115 = vector.shape_cast %114 : vector<1x8x8x32xbf16> to vector<8x8x32xbf16>
    %116 = vector.shape_cast %115 : vector<8x8x32xbf16> to vector<64x32xbf16>
    %c1_122 = arith.constant 1 : index
    %c32_123 = arith.constant 32 : index
    %c0_124 = arith.constant 0 : index
    %117 = vector.load %arg2[%c1_122, %c32_123, %c0_124] : memref<2x288x32xbf16, #tpu.memory_space<vmem>>, vector<1x32x32xbf16>
    %118 = vector.shape_cast %117 : vector<1x32x32xbf16> to vector<32x32xbf16>
    %cst_125 = arith.constant dense<0.000000e+00> : vector<64x32xf32>
    %119 = tpu.matmul %116, %118, %cst_125 {dimension_numbers = #tpu.dot_dimension_numbers<[1], [0], [0], [1], [0, 0, 1, 1], [], []>} : vector<64x32xbf16>, vector<32x32xbf16>, vector<64x32xf32> -> vector<64x32xf32>
    %120 = arith.addf %113, %119 : vector<64x32xf32>
    %c1_126 = arith.constant 1 : index
    %c0_127 = arith.constant 0 : index
    %c2_128 = arith.constant 2 : index
    %c0_129 = arith.constant 0 : index
    %121 = vector.load %arg8[%c1_126, %c0_127, %c2_128, %c0_129] : memref<2x10x10x32xbf16, #tpu.memory_space<vmem>>, vector<1x8x8x32xbf16>
    %122 = vector.shape_cast %121 : vector<1x8x8x32xbf16> to vector<8x8x32xbf16>
    %123 = vector.shape_cast %122 : vector<8x8x32xbf16> to vector<64x32xbf16>
    %c1_130 = arith.constant 1 : index
    %c64_131 = arith.constant 64 : index
    %c0_132 = arith.constant 0 : index
    %124 = vector.load %arg2[%c1_130, %c64_131, %c0_132] : memref<2x288x32xbf16, #tpu.memory_space<vmem>>, vector<1x32x32xbf16>
    %125 = vector.shape_cast %124 : vector<1x32x32xbf16> to vector<32x32xbf16>
    %cst_133 = arith.constant dense<0.000000e+00> : vector<64x32xf32>
    %126 = tpu.matmul %123, %125, %cst_133 {dimension_numbers = #tpu.dot_dimension_numbers<[1], [0], [0], [1], [0, 0, 1, 1], [], []>} : vector<64x32xbf16>, vector<32x32xbf16>, vector<64x32xf32> -> vector<64x32xf32>
    %127 = arith.addf %120, %126 : vector<64x32xf32>
    %c1_134 = arith.constant 1 : index
    %c1_135 = arith.constant 1 : index
    %c0_136 = arith.constant 0 : index
    %c0_137 = arith.constant 0 : index
    %128 = vector.load %arg8[%c1_134, %c1_135, %c0_136, %c0_137] : memref<2x10x10x32xbf16, #tpu.memory_space<vmem>>, vector<1x8x8x32xbf16>
    %129 = vector.shape_cast %128 : vector<1x8x8x32xbf16> to vector<8x8x32xbf16>
    %130 = vector.shape_cast %129 : vector<8x8x32xbf16> to vector<64x32xbf16>
    %c1_138 = arith.constant 1 : index
    %c96_139 = arith.constant 96 : index
    %c0_140 = arith.constant 0 : index
    %131 = vector.load %arg2[%c1_138, %c96_139, %c0_140] : memref<2x288x32xbf16, #tpu.memory_space<vmem>>, vector<1x32x32xbf16>
    %132 = vector.shape_cast %131 : vector<1x32x32xbf16> to vector<32x32xbf16>
    %cst_141 = arith.constant dense<0.000000e+00> : vector<64x32xf32>
    %133 = tpu.matmul %130, %132, %cst_141 {dimension_numbers = #tpu.dot_dimension_numbers<[1], [0], [0], [1], [0, 0, 1, 1], [], []>} : vector<64x32xbf16>, vector<32x32xbf16>, vector<64x32xf32> -> vector<64x32xf32>
    %134 = arith.addf %127, %133 : vector<64x32xf32>
    %c1_142 = arith.constant 1 : index
    %c1_143 = arith.constant 1 : index
    %c1_144 = arith.constant 1 : index
    %c0_145 = arith.constant 0 : index
    %135 = vector.load %arg8[%c1_142, %c1_143, %c1_144, %c0_145] : memref<2x10x10x32xbf16, #tpu.memory_space<vmem>>, vector<1x8x8x32xbf16>
    %136 = vector.shape_cast %135 : vector<1x8x8x32xbf16> to vector<8x8x32xbf16>
    %137 = vector.shape_cast %136 : vector<8x8x32xbf16> to vector<64x32xbf16>
    %c1_146 = arith.constant 1 : index
    %c128_147 = arith.constant 128 : index
    %c0_148 = arith.constant 0 : index
    %138 = vector.load %arg2[%c1_146, %c128_147, %c0_148] : memref<2x288x32xbf16, #tpu.memory_space<vmem>>, vector<1x32x32xbf16>
    %139 = vector.shape_cast %138 : vector<1x32x32xbf16> to vector<32x32xbf16>
    %cst_149 = arith.constant dense<0.000000e+00> : vector<64x32xf32>
    %140 = tpu.matmul %137, %139, %cst_149 {dimension_numbers = #tpu.dot_dimension_numbers<[1], [0], [0], [1], [0, 0, 1, 1], [], []>} : vector<64x32xbf16>, vector<32x32xbf16>, vector<64x32xf32> -> vector<64x32xf32>
    %141 = arith.addf %134, %140 : vector<64x32xf32>
    %c1_150 = arith.constant 1 : index
    %c1_151 = arith.constant 1 : index
    %c2_152 = arith.constant 2 : index
    %c0_153 = arith.constant 0 : index
    %142 = vector.load %arg8[%c1_150, %c1_151, %c2_152, %c0_153] : memref<2x10x10x32xbf16, #tpu.memory_space<vmem>>, vector<1x8x8x32xbf16>
    %143 = vector.shape_cast %142 : vector<1x8x8x32xbf16> to vector<8x8x32xbf16>
    %144 = vector.shape_cast %143 : vector<8x8x32xbf16> to vector<64x32xbf16>
    %c1_154 = arith.constant 1 : index
    %c160_155 = arith.constant 160 : index
    %c0_156 = arith.constant 0 : index
    %145 = vector.load %arg2[%c1_154, %c160_155, %c0_156] : memref<2x288x32xbf16, #tpu.memory_space<vmem>>, vector<1x32x32xbf16>
    %146 = vector.shape_cast %145 : vector<1x32x32xbf16> to vector<32x32xbf16>
    %cst_157 = arith.constant dense<0.000000e+00> : vector<64x32xf32>
    %147 = tpu.matmul %144, %146, %cst_157 {dimension_numbers = #tpu.dot_dimension_numbers<[1], [0], [0], [1], [0, 0, 1, 1], [], []>} : vector<64x32xbf16>, vector<32x32xbf16>, vector<64x32xf32> -> vector<64x32xf32>
    %148 = arith.addf %141, %147 : vector<64x32xf32>
    %c1_158 = arith.constant 1 : index
    %c2_159 = arith.constant 2 : index
    %c0_160 = arith.constant 0 : index
    %c0_161 = arith.constant 0 : index
    %149 = vector.load %arg8[%c1_158, %c2_159, %c0_160, %c0_161] : memref<2x10x10x32xbf16, #tpu.memory_space<vmem>>, vector<1x8x8x32xbf16>
    %150 = vector.shape_cast %149 : vector<1x8x8x32xbf16> to vector<8x8x32xbf16>
    %151 = vector.shape_cast %150 : vector<8x8x32xbf16> to vector<64x32xbf16>
    %c1_162 = arith.constant 1 : index
    %c192_163 = arith.constant 192 : index
    %c0_164 = arith.constant 0 : index
    %152 = vector.load %arg2[%c1_162, %c192_163, %c0_164] : memref<2x288x32xbf16, #tpu.memory_space<vmem>>, vector<1x32x32xbf16>
    %153 = vector.shape_cast %152 : vector<1x32x32xbf16> to vector<32x32xbf16>
    %cst_165 = arith.constant dense<0.000000e+00> : vector<64x32xf32>
    %154 = tpu.matmul %151, %153, %cst_165 {dimension_numbers = #tpu.dot_dimension_numbers<[1], [0], [0], [1], [0, 0, 1, 1], [], []>} : vector<64x32xbf16>, vector<32x32xbf16>, vector<64x32xf32> -> vector<64x32xf32>
    %155 = arith.addf %148, %154 : vector<64x32xf32>
    %c1_166 = arith.constant 1 : index
    %c2_167 = arith.constant 2 : index
    %c1_168 = arith.constant 1 : index
    %c0_169 = arith.constant 0 : index
    %156 = vector.load %arg8[%c1_166, %c2_167, %c1_168, %c0_169] : memref<2x10x10x32xbf16, #tpu.memory_space<vmem>>, vector<1x8x8x32xbf16>
    %157 = vector.shape_cast %156 : vector<1x8x8x32xbf16> to vector<8x8x32xbf16>
    %158 = vector.shape_cast %157 : vector<8x8x32xbf16> to vector<64x32xbf16>
    %c1_170 = arith.constant 1 : index
    %c224_171 = arith.constant 224 : index
    %c0_172 = arith.constant 0 : index
    %159 = vector.load %arg2[%c1_170, %c224_171, %c0_172] : memref<2x288x32xbf16, #tpu.memory_space<vmem>>, vector<1x32x32xbf16>
    %160 = vector.shape_cast %159 : vector<1x32x32xbf16> to vector<32x32xbf16>
    %cst_173 = arith.constant dense<0.000000e+00> : vector<64x32xf32>
    %161 = tpu.matmul %158, %160, %cst_173 {dimension_numbers = #tpu.dot_dimension_numbers<[1], [0], [0], [1], [0, 0, 1, 1], [], []>} : vector<64x32xbf16>, vector<32x32xbf16>, vector<64x32xf32> -> vector<64x32xf32>
    %162 = arith.addf %155, %161 : vector<64x32xf32>
    %c1_174 = arith.constant 1 : index
    %c2_175 = arith.constant 2 : index
    %c2_176 = arith.constant 2 : index
    %c0_177 = arith.constant 0 : index
    %163 = vector.load %arg8[%c1_174, %c2_175, %c2_176, %c0_177] : memref<2x10x10x32xbf16, #tpu.memory_space<vmem>>, vector<1x8x8x32xbf16>
    %164 = vector.shape_cast %163 : vector<1x8x8x32xbf16> to vector<8x8x32xbf16>
    %165 = vector.shape_cast %164 : vector<8x8x32xbf16> to vector<64x32xbf16>
    %c1_178 = arith.constant 1 : index
    %c256_179 = arith.constant 256 : index
    %c0_180 = arith.constant 0 : index
    %166 = vector.load %arg2[%c1_178, %c256_179, %c0_180] : memref<2x288x32xbf16, #tpu.memory_space<vmem>>, vector<1x32x32xbf16>
    %167 = vector.shape_cast %166 : vector<1x32x32xbf16> to vector<32x32xbf16>
    %cst_181 = arith.constant dense<0.000000e+00> : vector<64x32xf32>
    %168 = tpu.matmul %165, %167, %cst_181 {dimension_numbers = #tpu.dot_dimension_numbers<[1], [0], [0], [1], [0, 0, 1, 1], [], []>} : vector<64x32xbf16>, vector<32x32xbf16>, vector<64x32xf32> -> vector<64x32xf32>
    %169 = arith.addf %162, %168 : vector<64x32xf32>
    %170 = vector.shape_cast %107 : vector<32xf32> to vector<1x32xf32>
    %171 = vector.broadcast %170 : vector<1x32xf32> to vector<64x32xf32>
    %172 = arith.addf %169, %171 : vector<64x32xf32>
    %cst_182 = arith.constant 0.000000e+00 : f32
    %173 = vector.broadcast %cst_182 : f32 to vector<64x32xf32>
    %174 = arith.maximumf %172, %173 : vector<64x32xf32>
    %175 = vector.shape_cast %174 : vector<64x32xf32> to vector<8x8x32xf32>
    %c0_183 = arith.constant 0 : index
    %c0_184 = arith.constant 0 : index
    %c0_185 = arith.constant 0 : index
    %c0_186 = arith.constant 0 : index
    %176 = vector.load %arg6[%c0_183, %c0_184, %c0_185, %c0_186] : memref<1x8x8x32xf32, #tpu.memory_space<vmem>>, vector<1x8x8x32xf32>
    %177 = vector.shape_cast %176 : vector<1x8x8x32xf32> to vector<8x8x32xf32>
    %178 = vector.shape_cast %175 : vector<8x8x32xf32> to vector<1x8x8x32xf32>
    tpu.vector_store %arg6[%c0_183, %c0_184, %c0_185, %c0_186], %178 {strides = array<i32>} : memref<1x8x8x32xf32, #tpu.memory_space<vmem>>, vector<1x8x8x32xf32>,
    %179 = arith.truncf %174 : vector<64x32xf32> to vector<64x32xbf16>
    %c0_187 = arith.constant 0 : index
    %c0_188 = arith.constant 0 : index
    %180 = vector.load %arg4[%c0_187, %c0_188] : memref<32x16xbf16, #tpu.memory_space<vmem>>, vector<32x16xbf16>
    %cst_189 = arith.constant dense<0.000000e+00> : vector<64x16xf32>
    %181 = tpu.matmul %179, %180, %cst_189 {dimension_numbers = #tpu.dot_dimension_numbers<[1], [0], [0], [1], [0, 0, 1, 1], [], []>} : vector<64x32xbf16>, vector<32x16xbf16>, vector<64x16xf32> -> vector<64x16xf32>
    %c0_190 = arith.constant 0 : index
    %c0_191 = arith.constant 0 : index
    %182 = vector.load %arg5[%c0_190, %c0_191] : memref<1x16xf32, #tpu.memory_space<vmem>>, vector<1x16xf32>
    %183 = vector.broadcast %182 : vector<1x16xf32> to vector<64x16xf32>
    %184 = arith.addf %181, %183 : vector<64x16xf32>
    %185 = vector.shape_cast %184 : vector<64x16xf32> to vector<8x8x16xf32>
    %c0_192 = arith.constant 0 : index
    %c0_193 = arith.constant 0 : index
    %c0_194 = arith.constant 0 : index
    %c0_195 = arith.constant 0 : index
    %186 = vector.load %arg7[%c0_192, %c0_193, %c0_194, %c0_195] : memref<1x8x8x16xf32, #tpu.memory_space<vmem>>, vector<1x8x8x16xf32>
    %187 = vector.shape_cast %186 : vector<1x8x8x16xf32> to vector<8x8x16xf32>
    %188 = vector.shape_cast %185 : vector<8x8x16xf32> to vector<1x8x8x16xf32>
    tpu.vector_store %arg7[%c0_192, %c0_193, %c0_194, %c0_195], %188 {strides = array<i32>} : memref<1x8x8x16xf32, #tpu.memory_space<vmem>>, vector<1x8x8x16xf32>,
    return
  }
  func.func @transform_0(%arg0: i32) -> (i32, i32, i32, i32) {
    %c0_i32 = arith.constant 0 : i32
    %c0_i32_0 = arith.constant 0 : i32
    %c0_i32_1 = arith.constant 0 : i32
    %c0_i32_2 = arith.constant 0 : i32
    return %arg0, %c0_i32, %c0_i32_0, %c0_i32_1 : i32, i32, i32, i32
  }
  func.func @transform_1(%arg0: i32) -> (i32, i32, i32) {
    %c0_i32 = arith.constant 0 : i32
    %c0_i32_0 = arith.constant 0 : i32
    %c0_i32_1 = arith.constant 0 : i32
    %c0_i32_2 = arith.constant 0 : i32
    return %c0_i32, %c0_i32_0, %c0_i32_1 : i32, i32, i32
  }
  func.func @transform_2(%arg0: i32) -> (i32, i32) {
    %c0_i32 = arith.constant 0 : i32
    %c0_i32_0 = arith.constant 0 : i32
    %c0_i32_1 = arith.constant 0 : i32
    return %c0_i32, %c0_i32_0 : i32, i32
  }
  func.func @transform_3(%arg0: i32) -> (i32, i32) {
    %c0_i32 = arith.constant 0 : i32
    %c0_i32_0 = arith.constant 0 : i32
    %c0_i32_1 = arith.constant 0 : i32
    return %c0_i32, %c0_i32_0 : i32, i32
  }
  func.func @transform_4(%arg0: i32) -> (i32, i32) {
    %c0_i32 = arith.constant 0 : i32
    %c0_i32_0 = arith.constant 0 : i32
    %c0_i32_1 = arith.constant 0 : i32
    return %c0_i32, %c0_i32_0 : i32, i32
  }
  func.func @transform_5(%arg0: i32) -> (i32, i32, i32, i32) {
    %c0_i32 = arith.constant 0 : i32
    %c0_i32_0 = arith.constant 0 : i32
    %c0_i32_1 = arith.constant 0 : i32
    %c0_i32_2 = arith.constant 0 : i32
    return %arg0, %c0_i32, %c0_i32_0, %c0_i32_1 : i32, i32, i32, i32
  }
  func.func @transform_6(%arg0: i32) -> (i32, i32, i32, i32) {
    %c0_i32 = arith.constant 0 : i32
    %c0_i32_0 = arith.constant 0 : i32
    %c0_i32_1 = arith.constant 0 : i32
    %c0_i32_2 = arith.constant 0 : i32
    return %arg0, %c0_i32, %c0_i32_0, %c0_i32_1 : i32, i32, i32, i32
  }
}

</mosaic_0001>

<llo_original>
// kernel: tpu_custom_call.1
$region0: #{tpu_custom_call.1}
  #allocation0 [shape = 'u32[]', space=smem, size = 0x4, offset = 0x4, fixed_abs, tag = 'smem constant byte address 0x4 - core index']
  #allocation1 [shape = 'u32[144,128]{1,0:T(1,128)}', space=vmem, size = 0x12000, scoped, tag = 'internal scratch']
  #allocation2 [shape = 'bf16[2,10,10,32]{3,2,1,0:T(8,128)(2,1)}', space=vmem, size = 0x14000, scoped, tag = 'scratch operand']
  %s0 = inlined_call_operand.vmem [shape: f32[4,8,8,32], index: 0, kind: input, shape index: {}]
  %s1 = inlined_call_operand.vmem [shape: bf16[2,288,32], index: 1, kind: input, shape index: {}]
  %s2 = inlined_call_operand.vmem [shape: f32[2,32], index: 2, kind: input, shape index: {}]
  %s3 = inlined_call_operand.vmem [shape: bf16[32,16], index: 3, kind: input, shape index: {}]
  %s4 = inlined_call_operand.vmem [shape: f32[1,16], index: 4, kind: input, shape index: {}]
  %s5 = inlined_call_operand.hbm [shape: f32[4,8,8,32], index: 5, kind: output, shape index: {0}]
  %s6 = inlined_call_operand.hbm [shape: f32[4,8,8,16], index: 6, kind: output, shape index: {1}]
  %7 = xla_tuple %s5, %s6
  %s8 = sld [smem:[#allocation0]]
  $region61: #{tpu_custom_call.1} parent=0
    _
  %s10 = ssub.s32 1, %s8
  %s11 = scalar_select 0, %s10, %s8
  $region1: #{tpu_custom_call.1} parent=0
    #allocation3 [shape = 'u8[65536]{0}', space=vmem, size = 0x10000, scoped, tag = 'output window, operand 0']
    #allocation4 [shape = 's32[2]{0}', space=sflag, size = 0x8, scoped, tag = 'scoped memory for tpu_custom_call.1']
    #allocation5 [shape = 'u8[65536]{0}', space=vmem, size = 0x10000, scoped, tag = 'output window, operand 1']
    #allocation6 [shape = 's32[2]{0}', space=sflag, size = 0x8, scoped, tag = 'scoped memory for tpu_custom_call.1']
    %12 = vsyncpa [#allocation4], 0
    %s13 = scalar_lea.sflag [#allocation4], 1
    %14 = vsyncpa %s13, 0
    %15 = vsyncpa [#allocation6], 0
    %s16 = scalar_lea.sflag [#allocation6], 1
    %17 = vsyncpa %s16, 0
    loop: start=0, step=1, limit=6
    $region2: #{tpu_custom_call.1} parent=1 // loop_pre_header
      _
    $region3: #{tpu_custom_call.1} parent=1 // loop_header
      %s19 = sphi 0, %s23
      %p20 = scmp.ge.s32.totalorder %s19, 6
      %s29 = sphi 0, %s31
      %s32 = sphi 0, %s29
      %s33 = sphi 0, %s32
      %s49 = sphi 0, %s33
      %s53 = sphi 0, %s53
      %s55 = sphi 0, %s53
      %s56 = sphi 0, %s55
      %s70 = sphi 0, %s56
      %s74 = sphi 0, %s74
      %s76 = sphi 0, %s74
      %s77 = sphi 0, %s76
      %s91 = sphi 0, %s77
      %s95 = sphi 0, %s95
      %s97 = sphi 0, %s95
      %s98 = sphi 0, %s97
      %s112 = sphi 0, %s98
      %s116 = sphi 0, %s116
      %s118 = sphi 0, %s116
      %s119 = sphi 0, %s118
      %s133 = sphi 0, %s119
      %s139 = sphi 0, %s141
      %s142 = sphi 0, %s139
      %s143 = sphi 0, %s142
      %s159 = sphi 0, %s143
      %s165 = sphi 0, %s167
      %s168 = sphi 0, %s165
      %s169 = sphi 0, %s168
      %s185 = sphi 0, %s169
    $region4: #{tpu_custom_call.1} parent=1 // loop_header_branch
      %22 = sbr.rel (%p20) target = $region8
    $region5: #{tpu_custom_call.1} parent=1 // loop_body
      %s24 = ssub.s32 %s19, 1
      %s25 = ssub.s32 %s19, 2
      %s26 = sadd.s32 %s19, 1
      %s27 = ssub.s32 %s19, %s26
      %p28 = scmp.eq.s32.totalorder %s27, 0
      %s30 = sadd.s32 %s29, 1
      %s31 = scalar_select %p28, %s29, %s30
      %p34 = pneg %p28
      %p35 = scmp.eq.s32.totalorder %s19, 3
      %p36 = por %p34, %p35
      %p37 = scmp.ne.s32.totalorder %s29, %s32
      %p38 = scmp.eq.s32.totalorder %s19, 0
      %p39 = por %p37, %p38
      %p40 = scmp.ne.s32.totalorder %s29, %s32
      %p41 = scmp.eq.s32.totalorder %s24, 3
      %p42 = por %p40, %p41
      %p43 = scmp.ne.s32.totalorder %s32, %s33
      %p44 = scmp.eq.s32.totalorder %s24, 0
      %p45 = por %p43, %p44
      %p46 = scmp.ne.s32.totalorder %s32, %s33
      %p47 = scmp.eq.s32.totalorder %s25, 3
      %p48 = por %p46, %p47
      %p50 = scmp.ne.s32.totalorder %s33, %s49
      %p51 = scmp.eq.s32.totalorder %s25, 0
      %p52 = por %p50, %p51
      %s54 = sadd.s32 %s53, 1
      %p57 = scmp.eq.s32.totalorder %s19, 3
      %p58 = scmp.ne.s32.totalorder %s53, %s55
      %p59 = scmp.eq.s32.totalorder %s19, 0
      %p60 = por %p58, %p59
      %p61 = scmp.ne.s32.totalorder %s53, %s55
      %p62 = scmp.eq.s32.totalorder %s24, 3
      %p63 = por %p61, %p62
      %p64 = scmp.ne.s32.totalorder %s55, %s56
      %p65 = scmp.eq.s32.totalorder %s24, 0
      %p66 = por %p64, %p65
      %p67 = scmp.ne.s32.totalorder %s55, %s56
      %p68 = scmp.eq.s32.totalorder %s25, 3
      %p69 = por %p67, %p68
      %p71 = scmp.ne.s32.totalorder %s56, %s70
      %p72 = scmp.eq.s32.totalorder %s25, 0
      %p73 = por %p71, %p72
      %s75 = sadd.s32 %s74, 1
      %p78 = scmp.eq.s32.totalorder %s19, 3
      %p79 = scmp.ne.s32.totalorder %s74, %s76
      %p80 = scmp.eq.s32.totalorder %s19, 0
      %p81 = por %p79, %p80
      %p82 = scmp.ne.s32.totalorder %s74, %s76
      %p83 = scmp.eq.s32.totalorder %s24, 3
      %p84 = por %p82, %p83
      %p85 = scmp.ne.s32.totalorder %s76, %s77
      %p86 = scmp.eq.s32.totalorder %s24, 0
      %p87 = por %p85, %p86
      %p88 = scmp.ne.s32.totalorder %s76, %s77
      %p89 = scmp.eq.s32.totalorder %s25, 3
      %p90 = por %p88, %p89
      %p92 = scmp.ne.s32.totalorder %s77, %s91
      %p93 = scmp.eq.s32.totalorder %s25, 0
      %p94 = por %p92, %p93
      %s96 = sadd.s32 %s95, 1
      %p99 = scmp.eq.s32.totalorder %s19, 3
      %p100 = scmp.ne.s32.totalorder %s95, %s97
      %p101 = scmp.eq.s32.totalorder %s19, 0
      %p102 = por %p100, %p101
      %p103 = scmp.ne.s32.totalorder %s95, %s97
      %p104 = scmp.eq.s32.totalorder %s24, 3
      %p105 = por %p103, %p104
      %p106 = scmp.ne.s32.totalorder %s97, %s98
      %p107 = scmp.eq.s32.totalorder %s24, 0
      %p108 = por %p106, %p107
      %p109 = scmp.ne.s32.totalorder %s97, %s98
      %p110 = scmp.eq.s32.totalorder %s25, 3
      %p111 = por %p109, %p110
      %p113 = scmp.ne.s32.totalorder %s98, %s112
      %p114 = scmp.eq.s32.totalorder %s25, 0
      %p115 = por %p113, %p114
      %s117 = sadd.s32 %s116, 1
      %p120 = scmp.eq.s32.totalorder %s19, 3
      %p121 = scmp.ne.s32.totalorder %s116, %s118
      %p122 = scmp.eq.s32.totalorder %s19, 0
      %p123 = por %p121, %p122
      %p124 = scmp.ne.s32.totalorder %s116, %s118
      %p125 = scmp.eq.s32.totalorder %s24, 3
      %p126 = por %p124, %p125
      %p127 = scmp.ne.s32.totalorder %s118, %s119
      %p128 = scmp.eq.s32.totalorder %s24, 0
      %p129 = por %p127, %p128
      %p130 = scmp.ne.s32.totalorder %s118, %s119
      %p131 = scmp.eq.s32.totalorder %s25, 3
      %p132 = por %p130, %p131
      %p134 = scmp.ne.s32.totalorder %s119, %s133
      %p135 = scmp.eq.s32.totalorder %s25, 0
      %p136 = por %p134, %p135
      %s137 = ssub.s32 %s19, %s26
      %p138 = scmp.eq.s32.totalorder %s137, 0
      %s140 = sadd.s32 %s139, 1
      %s141 = scalar_select %p138, %s139, %s140
      %p144 = pneg %p138
      %p145 = scmp.eq.s32.totalorder %s19, 3
      %p146 = por %p144, %p145
      %p147 = scmp.ne.s32.totalorder %s139, %s142
      %p148 = scmp.eq.s32.totalorder %s19, 0
      %p149 = por %p147, %p148
      %p150 = scmp.ne.s32.totalorder %s139, %s142
      %p151 = scmp.eq.s32.totalorder %s24, 3
      %p152 = por %p150, %p151
      %p153 = scmp.ne.s32.totalorder %s142, %s143
      %p154 = scmp.eq.s32.totalorder %s24, 0
      %p155 = por %p153, %p154
      %p156 = scmp.ne.s32.totalorder %s142, %s143
      %p157 = scmp.eq.s32.totalorder %s25, 3
      %p158 = por %p156, %p157
      %p160 = scmp.ne.s32.totalorder %s143, %s159
      %p161 = scmp.eq.s32.totalorder %s25, 0
      %p162 = por %p160, %p161
      %s163 = ssub.s32 %s19, %s26
      %p164 = scmp.eq.s32.totalorder %s163, 0
      %s166 = sadd.s32 %s165, 1
      %s167 = scalar_select %p164, %s165, %s166
      %p170 = pneg %p164
      %p171 = scmp.eq.s32.totalorder %s19, 3
      %p172 = por %p170, %p171
      %p173 = scmp.ne.s32.totalorder %s165, %s168
      %p174 = scmp.eq.s32.totalorder %s19, 0
      %p175 = por %p173, %p174
      %p176 = scmp.ne.s32.totalorder %s165, %s168
      %p177 = scmp.eq.s32.totalorder %s24, 3
      %p178 = por %p176, %p177
      %p179 = scmp.ne.s32.totalorder %s168, %s169
      %p180 = scmp.eq.s32.totalorder %s24, 0
      %p181 = por %p179, %p180
      %p182 = scmp.ne.s32.totalorder %s168, %s169
      %p183 = scmp.eq.s32.totalorder %s25, 3
      %p184 = por %p182, %p183
      %p186 = scmp.ne.s32.totalorder %s169, %s185
      %p187 = scmp.eq.s32.totalorder %s25, 0
      %p188 = por %p186, %p187
      %p189 = scmp.le.s32.totalorder 1, %s19
      %p190 = scmp.lt.s32.totalorder %s19, 5
      %p191 = pnand %p189, %p190
      %p192 = pneg %p191
      // Predicated region
      $region9: #{tpu_custom_call.1} parent=5 // pred_check
        _
      $region10: #{tpu_custom_call.1} parent=5 // pred_check_branch
        %194 = sbr.rel (%p191) target = $region12
      $region11: #{tpu_custom_call.1} parent=5 // pred_region
        %s195 = ssub.s32 %s19, 1
        // Predicated region
        $region13: #{tpu_custom_call.1} parent=11 // pred_check
          %p196 = pneg %p66
        $region14: #{tpu_custom_call.1} parent=11 // pred_check_branch
          %198 = sbr.rel (%p196) target = $region16
        $region15: #{tpu_custom_call.1} parent=11 // pred_region
          _
        $region16: #{tpu_custom_call.1} parent=11 // pred_fallthru
          _
        // Predicated region
        $region17: #{tpu_custom_call.1} parent=11 // pred_check
          %p199 = pneg %p87
        $region18: #{tpu_custom_call.1} parent=11 // pred_check_branch
          %201 = sbr.rel (%p199) target = $region20
        $region19: #{tpu_custom_call.1} parent=11 // pred_region
          _
        $region20: #{tpu_custom_call.1} parent=11 // pred_fallthru
          _
        // Predicated region
        $region21: #{tpu_custom_call.1} parent=11 // pred_check
          %p202 = pneg %p108
        $region22: #{tpu_custom_call.1} parent=11 // pred_check_branch
          %204 = sbr.rel (%p202) target = $region24
        $region23: #{tpu_custom_call.1} parent=11 // pred_region
          _
        $region24: #{tpu_custom_call.1} parent=11 // pred_fallthru
          _
        // Predicated region
        $region25: #{tpu_custom_call.1} parent=11 // pred_check
          %p205 = pneg %p129
        $region26: #{tpu_custom_call.1} parent=11 // pred_check_branch
          %207 = sbr.rel (%p205) target = $region28
        $region27: #{tpu_custom_call.1} parent=11 // pred_region
          _
        $region28: #{tpu_custom_call.1} parent=11 // pred_fallthru
          _
      $region12: #{tpu_custom_call.1} parent=5 // pred_fallthru
        _
      %p208 = scmp.lt.s32.totalorder %s19, 4
      // Predicated region
      $region29: #{tpu_custom_call.1} parent=5 // pred_check
        %p209 = pneg %p208
      $region30: #{tpu_custom_call.1} parent=5 // pred_check_branch
        %211 = sbr.rel (%p209) target = $region32
      $region31: #{tpu_custom_call.1} parent=5 // pred_region
        // Predicated region
        $region33: #{tpu_custom_call.1} parent=31 // pred_check
          %p212 = pneg %p39
        $region34: #{tpu_custom_call.1} parent=31 // pred_check_branch
          %214 = sbr.rel (%p212) target = $region36
        $region35: #{tpu_custom_call.1} parent=31 // pred_region
          %p215 = scmp.lt.s32.totalorder %s19, 3
          %s216 = scalar_select %p215, %s19, 3
          %s217 = smul.addr %s216, 8
          %s218 = smul.addr %s217, 8
          %s219 = scalar_lea.vmem %s0, %s218
        $region36: #{tpu_custom_call.1} parent=31 // pred_fallthru
          _
      $region32: #{tpu_custom_call.1} parent=5 // pred_fallthru
        _
      %p220 = scmp.le.s32.totalorder 1, %s19
      %p221 = scmp.lt.s32.totalorder %s19, 5
      %p222 = pnand %p220, %p221
      %p223 = pneg %p222
      // Predicated region
      $region37: #{tpu_custom_call.1} parent=5 // pred_check
        _
      $region38: #{tpu_custom_call.1} parent=5 // pred_check_branch
        %225 = sbr.rel (%p222) target = $region40
      $region39: #{tpu_custom_call.1} parent=5 // pred_region
        %s226 = ssub.s32 %s19, 1
        %p227 = scmp.lt.s32.totalorder %s24, 3
        %s228 = scalar_select %p227, %s24, 3
        %s229 = smul.addr %s228, 8
        %s230 = smul.addr %s229, 8
        %s231 = scalar_lea.vmem %s0, %s230
        %p232 = pneg %p45
        %p233 = pneg %p42
        %p234 = pneg %p66
        %p235 = pneg %p63
        %p236 = pneg %p87
        %p237 = pneg %p84
        %p238 = pneg %p108
        %p239 = pneg %p105
        %p240 = pneg %p129
        %p241 = pneg %p126
        %p242 = pneg %p155
        %p243 = pneg %p152
        %s244 = sand.u32 %s142, 1
        %s245 = scalar_lea.sflag [#allocation4], %s244
        %s246 = sand.u32 %s142, 1
        %s247 = smul.addr %s246, 64
        %s248 = scalar_lea.vmem [#allocation3], %s247
        %p249 = pneg %p181
        %p250 = pneg %p178
        %s251 = sand.u32 %s168, 1
        %s252 = scalar_lea.sflag [#allocation6], %s251
        %s253 = sand.u32 %s168, 1
        %s254 = smul.addr %s253, 64
        %s255 = scalar_lea.vmem [#allocation5], %s254
        %p256 = scmp.lt.s32.totalorder %s24, 3
        %s257 = scalar_select %p256, %s24, 3
        %s258 = smul.addr %s257, 8
        %s259 = smul.addr %s258, 8
        %s260 = scalar_lea.vmem %s0, %s259
        %vm262 = vcmask 257024
        %263 = vst.msk [vmem:[#allocation2] sm:$0xf] %vm262, 0
        %vm264 = vcmask 253952
        %265 = vst.msk [vmem:[#allocation2 + $0x4] sm:$0x1] %vm264, 0
        %s266 = scalar_lea.vmem [#allocation2], 72
        %267 = vst.msk [vmem:[%s266] sm:$0xf] %vm262, 0
        %268 = vst.msk [vmem:[%s266 + $0x4] sm:$0x1] %vm264, 0
        %vm269 = vcmask 253952
        %vm270 = vsmask.f32 256
        %vm271 = vmand %vm269, %vm270
        %v272 = vld [vmem:[#allocation2] sm:$0x1]
        %v273 = vsel %vm271, 0, %v272
        %274 = vst [vmem:[#allocation2] sm:$0x1] %v273
        %v275 = vld [vmem:[#allocation2 + $0x8] sm:$0x1]
        %v276 = vsel %vm271, 0, %v275
        %277 = vst [vmem:[#allocation2 + $0x8] sm:$0x1] %v276
        %v278 = vld [vmem:[#allocation2 + $0x10] sm:$0x1]
        %v279 = vsel %vm271, 0, %v278
        %280 = vst [vmem:[#allocation2 + $0x10] sm:$0x1] %v279
        %v281 = vld [vmem:[#allocation2 + $0x18] sm:$0x1]
        %v282 = vsel %vm271, 0, %v281
        %283 = vst [vmem:[#allocation2 + $0x18] sm:$0x1] %v282
        %v284 = vld [vmem:[#allocation2 + $0x20] sm:$0x1]
        %v285 = vsel %vm271, 0, %v284
        %286 = vst [vmem:[#allocation2 + $0x20] sm:$0x1] %v285
        %v287 = vld [vmem:[#allocation2 + $0x28] sm:$0x1]
        %v288 = vsel %vm271, 0, %v287
        %289 = vst [vmem:[#allocation2 + $0x28] sm:$0x1] %v288
        %v290 = vld [vmem:[#allocation2 + $0x30] sm:$0x1]
        %v291 = vsel %vm271, 0, %v290
        %292 = vst [vmem:[#allocation2 + $0x30] sm:$0x1] %v291
        %v293 = vld [vmem:[#allocation2 + $0x38] sm:$0x1]
        %v294 = vsel %vm271, 0, %v293
        %295 = vst [vmem:[#allocation2 + $0x38] sm:$0x1] %v294
        %v296 = vld [vmem:[#allocation2 + $0x40] sm:$0x1]
        %v297 = vsel %vm271, 0, %v296
        %298 = vst [vmem:[#allocation2 + $0x40] sm:$0x1] %v297
        %v299 = vld [vmem:[#allocation2 + $0x48] sm:$0x1]
        %v300 = vsel %vm271, 0, %v299
        %301 = vst [vmem:[#allocation2 + $0x48] sm:$0x1] %v300
        %vm302 = vsmask.f32 7938
        %vm303 = vmand %vm269, %vm302
        %v304 = vld [vmem:[#allocation2 + $0x4] sm:$0x1]
        %v305 = vsel %vm303, 0, %v304
        %306 = vst [vmem:[#allocation2 + $0x4] sm:$0x1] %v305
        %v307 = vld [vmem:[#allocation2 + $0xc] sm:$0x1]
        %v308 = vsel %vm303, 0, %v307
        %309 = vst [vmem:[#allocation2 + $0xc] sm:$0x1] %v308
        %v310 = vld [vmem:[#allocation2 + $0x14] sm:$0x1]
        %v311 = vsel %vm303, 0, %v310
        %312 = vst [vmem:[#allocation2 + $0x14] sm:$0x1] %v311
        %v313 = vld [vmem:[#allocation2 + $0x1c] sm:$0x1]
        %v314 = vsel %vm303, 0, %v313
        %315 = vst [vmem:[#allocation2 + $0x1c] sm:$0x1] %v314
        %v316 = vld [vmem:[#allocation2 + $0x24] sm:$0x1]
        %v317 = vsel %vm303, 0, %v316
        %318 = vst [vmem:[#allocation2 + $0x24] sm:$0x1] %v317
        %v319 = vld [vmem:[#allocation2 + $0x2c] sm:$0x1]
        %v320 = vsel %vm303, 0, %v319
        %321 = vst [vmem:[#allocation2 + $0x2c] sm:$0x1] %v320
        %v322 = vld [vmem:[#allocation2 + $0x34] sm:$0x1]
        %v323 = vsel %vm303, 0, %v322
        %324 = vst [vmem:[#allocation2 + $0x34] sm:$0x1] %v323
        %v325 = vld [vmem:[#allocation2 + $0x3c] sm:$0x1]
        %v326 = vsel %vm303, 0, %v325
        %327 = vst [vmem:[#allocation2 + $0x3c] sm:$0x1] %v326
        %v328 = vld [vmem:[#allocation2 + $0x44] sm:$0x1]
        %v329 = vsel %vm303, 0, %v328
        %330 = vst [vmem:[#allocation2 + $0x44] sm:$0x1] %v329
        %v331 = vld [vmem:[#allocation2 + $0x4c] sm:$0x1]
        %v332 = vsel %vm303, 0, %v331
        %333 = vst [vmem:[#allocation2 + $0x4c] sm:$0x1] %v332
        %s334 = scalar_lea.vmem [#allocation2], 80
        %335 = vst.msk [vmem:[%s334] sm:$0xf] %vm262, 0
        %336 = vst.msk [vmem:[%s334 + $0x4] sm:$0x1] %vm264, 0
        %s337 = scalar_lea.vmem [#allocation2], 152
        %338 = vst.msk [vmem:[%s337] sm:$0xf] %vm262, 0
        %339 = vst.msk [vmem:[%s337 + $0x4] sm:$0x1] %vm264, 0
        %v340 = vld [vmem:[%s334] sm:$0x1]
        %v341 = vsel %vm271, 0, %v340
        %342 = vst [vmem:[%s334] sm:$0x1] %v341
        %v343 = vld [vmem:[%s334 + $0x8] sm:$0x1]
        %v344 = vsel %vm271, 0, %v343
        %345 = vst [vmem:[%s334 + $0x8] sm:$0x1] %v344
        %v346 = vld [vmem:[%s334 + $0x10] sm:$0x1]
        %v347 = vsel %vm271, 0, %v346
        %348 = vst [vmem:[%s334 + $0x10] sm:$0x1] %v347
        %v349 = vld [vmem:[%s334 + $0x18] sm:$0x1]
        %v350 = vsel %vm271, 0, %v349
        %351 = vst [vmem:[%s334 + $0x18] sm:$0x1] %v350
        %v352 = vld [vmem:[%s334 + $0x20] sm:$0x1]
        %v353 = vsel %vm271, 0, %v352
        %354 = vst [vmem:[%s334 + $0x20] sm:$0x1] %v353
        %v355 = vld [vmem:[%s334 + $0x28] sm:$0x1]
        %v356 = vsel %vm271, 0, %v355
        %357 = vst [vmem:[%s334 + $0x28] sm:$0x1] %v356
        %v358 = vld [vmem:[%s334 + $0x30] sm:$0x1]
        %v359 = vsel %vm271, 0, %v358
        %360 = vst [vmem:[%s334 + $0x30] sm:$0x1] %v359
        %v361 = vld [vmem:[%s334 + $0x38] sm:$0x1]
        %v362 = vsel %vm271, 0, %v361
        %363 = vst [vmem:[%s334 + $0x38] sm:$0x1] %v362
        %v364 = vld [vmem:[%s334 + $0x40] sm:$0x1]
        %v365 = vsel %vm271, 0, %v364
        %366 = vst [vmem:[%s334 + $0x40] sm:$0x1] %v365
        %v367 = vld [vmem:[%s334 + $0x48] sm:$0x1]
        %v368 = vsel %vm271, 0, %v367
        %369 = vst [vmem:[%s334 + $0x48] sm:$0x1] %v368
        %v370 = vld [vmem:[%s334 + $0x4] sm:$0x1]
        %v371 = vsel %vm303, 0, %v370
        %372 = vst [vmem:[%s334 + $0x4] sm:$0x1] %v371
        %v373 = vld [vmem:[%s334 + $0xc] sm:$0x1]
        %v374 = vsel %vm303, 0, %v373
        %375 = vst [vmem:[%s334 + $0xc] sm:$0x1] %v374
        %v376 = vld [vmem:[%s334 + $0x14] sm:$0x1]
        %v377 = vsel %vm303, 0, %v376
        %378 = vst [vmem:[%s334 + $0x14] sm:$0x1] %v377
        %v379 = vld [vmem:[%s334 + $0x1c] sm:$0x1]
        %v380 = vsel %vm303, 0, %v379
        %381 = vst [vmem:[%s334 + $0x1c] sm:$0x1] %v380
        %v382 = vld [vmem:[%s334 + $0x24] sm:$0x1]
        %v383 = vsel %vm303, 0, %v382
        %384 = vst [vmem:[%s334 + $0x24] sm:$0x1] %v383
        %v385 = vld [vmem:[%s334 + $0x2c] sm:$0x1]
        %v386 = vsel %vm303, 0, %v385
        %387 = vst [vmem:[%s334 + $0x2c] sm:$0x1] %v386
        %v388 = vld [vmem:[%s334 + $0x34] sm:$0x1]
        %v389 = vsel %vm303, 0, %v388
        %390 = vst [vmem:[%s334 + $0x34] sm:$0x1] %v389
        %v391 = vld [vmem:[%s334 + $0x3c] sm:$0x1]
        %v392 = vsel %vm303, 0, %v391
        %393 = vst [vmem:[%s334 + $0x3c] sm:$0x1] %v392
        %v394 = vld [vmem:[%s334 + $0x44] sm:$0x1]
        %v395 = vsel %vm303, 0, %v394
        %396 = vst [vmem:[%s334 + $0x44] sm:$0x1] %v395
        %v397 = vld [vmem:[%s334 + $0x4c] sm:$0x1]
        %v398 = vsel %vm303, 0, %v397
        %399 = vst [vmem:[%s334 + $0x4c] sm:$0x1] %v398
        %v400 = vld [vmem:[%s260] sm:$0xff]
        %v401 = vld [vmem:[%s260 + $0x8] sm:$0xff]
        %v402 = vld [vmem:[%s260 + $0x10] sm:$0xff]
        %v403 = vld [vmem:[%s260 + $0x18] sm:$0xff]
        %v404 = vld [vmem:[%s260 + $0x20] sm:$0xff]
        %v405 = vld [vmem:[%s260 + $0x28] sm:$0xff]
        %v406 = vld [vmem:[%s260 + $0x30] sm:$0xff]
        %v407 = vld [vmem:[%s260 + $0x38] sm:$0xff]
        %v408 = vpack.c.bf16 %v400, %v400
        %v409 = vpack.c.bf16 %v401, %v401
        %v410 = vpack.c.bf16 %v402, %v402
        %v411 = vpack.c.bf16 %v403, %v403
        %v412 = vpack.c.bf16 %v404, %v404
        %v413 = vpack.c.bf16 %v405, %v405
        %v414 = vpack.c.bf16 %v406, %v406
        %v415 = vpack.c.bf16 %v407, %v407
        %v424 = vunpack.c.l.b16 %v408
        %v425 = vunpack.c.l.b16 %v409
        %v426 = vunpack.c.l.b16 %v410
        %v427 = vunpack.c.l.b16 %v411
        %v428 = vunpack.c.l.b16 %v412
        %v429 = vunpack.c.l.b16 %v413
        %v430 = vunpack.c.l.b16 %v414
        %v431 = vunpack.c.l.b16 %v415
        %v432 = vpack.c.b16 %v424, %v424
        %v433 = vpack.c.b16 %v425, %v425
        %v434 = vpack.c.b16 %v426, %v426
        %v435 = vpack.c.b16 %v427, %v427
        %v436 = vpack.c.b16 %v428, %v428
        %v437 = vpack.c.b16 %v429, %v429
        %v438 = vpack.c.b16 %v430, %v430
        %v439 = vpack.c.b16 %v431, %v431
        %v441 = vshrl.u32 %v432, 16
        %v443 = vrot.slane %v441, 7
        %v444 = vshll.u32 %v432, 16
        %v446 = vor.u32 %v443, %v444
        %v447 = vrot.slane %v443, 4
        %v449 = vshrl.u32 %v433, 16
        %v451 = vrot.slane %v449, 7
        %v452 = vshll.u32 %v433, 16
        %v454 = vor.u32 %v451, %v452
        %v455 = vrot.slane %v451, 4
        %v457 = vshrl.u32 %v434, 16
        %v459 = vrot.slane %v457, 7
        %v460 = vshll.u32 %v434, 16
        %v462 = vor.u32 %v459, %v460
        %v463 = vrot.slane %v459, 4
        %v465 = vshrl.u32 %v435, 16
        %v467 = vrot.slane %v465, 7
        %v468 = vshll.u32 %v435, 16
        %v470 = vor.u32 %v467, %v468
        %v471 = vrot.slane %v467, 4
        %v473 = vshrl.u32 %v436, 16
        %v475 = vrot.slane %v473, 7
        %v476 = vshll.u32 %v436, 16
        %v478 = vor.u32 %v475, %v476
        %v479 = vrot.slane %v475, 4
        %v481 = vshrl.u32 %v437, 16
        %v483 = vrot.slane %v481, 7
        %v484 = vshll.u32 %v437, 16
        %v486 = vor.u32 %v483, %v484
        %v487 = vrot.slane %v483, 4
        %v489 = vshrl.u32 %v438, 16
        %v491 = vrot.slane %v489, 7
        %v492 = vshll.u32 %v438, 16
        %v494 = vor.u32 %v491, %v492
        %v495 = vrot.slane %v491, 4
        %v497 = vshrl.u32 %v439, 16
        %v499 = vrot.slane %v497, 7
        %v500 = vshll.u32 %v439, 16
        %v502 = vor.u32 %v499, %v500
        %v503 = vrot.slane %v499, 4
        %s520 = scalar_lea.vmem [#allocation2], 8
        %vm521 = vcmask 257024
        %vm522 = vmand %vm521, %vm302
        %v523 = vld [vmem:[%s520] sm:$0xf]
        %v524 = vsel %vm522, %v446, %v523
        %525 = vst [vmem:[%s520] sm:$0xf] %v524
        %v526 = vld [vmem:[%s520 + $0x4] sm:$0x1]
        %v527 = vsel %vm271, %v447, %v526
        %528 = vst [vmem:[%s520 + $0x4] sm:$0x1] %v527
        %v529 = vld [vmem:[%s520 + $0x8] sm:$0xf]
        %v530 = vsel %vm522, %v454, %v529
        %531 = vst [vmem:[%s520 + $0x8] sm:$0xf] %v530
        %v532 = vld [vmem:[%s520 + $0xc] sm:$0x1]
        %v533 = vsel %vm271, %v455, %v532
        %534 = vst [vmem:[%s520 + $0xc] sm:$0x1] %v533
        %v535 = vld [vmem:[%s520 + $0x10] sm:$0xf]
        %v536 = vsel %vm522, %v462, %v535
        %537 = vst [vmem:[%s520 + $0x10] sm:$0xf] %v536
        %v538 = vld [vmem:[%s520 + $0x14] sm:$0x1]
        %v539 = vsel %vm271, %v463, %v538
        %540 = vst [vmem:[%s520 + $0x14] sm:$0x1] %v539
        %v541 = vld [vmem:[%s520 + $0x18] sm:$0xf]
        %v542 = vsel %vm522, %v470, %v541
        %543 = vst [vmem:[%s520 + $0x18] sm:$0xf] %v542
        %v544 = vld [vmem:[%s520 + $0x1c] sm:$0x1]
        %v545 = vsel %vm271, %v471, %v544
        %546 = vst [vmem:[%s520 + $0x1c] sm:$0x1] %v545
        %v547 = vld [vmem:[%s520 + $0x20] sm:$0xf]
        %v548 = vsel %vm522, %v478, %v547
        %549 = vst [vmem:[%s520 + $0x20] sm:$0xf] %v548
        %v550 = vld [vmem:[%s520 + $0x24] sm:$0x1]
        %v551 = vsel %vm271, %v479, %v550
        %552 = vst [vmem:[%s520 + $0x24] sm:$0x1] %v551
        %v553 = vld [vmem:[%s520 + $0x28] sm:$0xf]
        %v554 = vsel %vm522, %v486, %v553
        %555 = vst [vmem:[%s520 + $0x28] sm:$0xf] %v554
        %v556 = vld [vmem:[%s520 + $0x2c] sm:$0x1]
        %v557 = vsel %vm271, %v487, %v556
        %558 = vst [vmem:[%s520 + $0x2c] sm:$0x1] %v557
        %v559 = vld [vmem:[%s520 + $0x30] sm:$0xf]
        %v560 = vsel %vm522, %v494, %v559
        %561 = vst [vmem:[%s520 + $0x30] sm:$0xf] %v560
        %v562 = vld [vmem:[%s520 + $0x34] sm:$0x1]
        %v563 = vsel %vm271, %v495, %v562
        %564 = vst [vmem:[%s520 + $0x34] sm:$0x1] %v563
        %v565 = vld [vmem:[%s520 + $0x38] sm:$0xf]
        %v566 = vsel %vm522, %v502, %v565
        %567 = vst [vmem:[%s520 + $0x38] sm:$0xf] %v566
        %v568 = vld [vmem:[%s520 + $0x3c] sm:$0x1]
        %v569 = vsel %vm271, %v503, %v568
        %570 = vst [vmem:[%s520 + $0x3c] sm:$0x1] %v569
        %v571 = vld [vmem:[%s2] sm:$0x1]
        %v572 = vld [vmem:[#allocation2] sm:$0xf]
        %v573 = vld [vmem:[#allocation2 + $0x8] sm:$0xf]
        %v574 = vld [vmem:[#allocation2 + $0x10] sm:$0xf]
        %v575 = vld [vmem:[#allocation2 + $0x18] sm:$0xf]
        %v576 = vld [vmem:[#allocation2 + $0x20] sm:$0xf]
        %v577 = vld [vmem:[#allocation2 + $0x28] sm:$0xf]
        %v578 = vld [vmem:[#allocation2 + $0x30] sm:$0xf]
        %v579 = vld [vmem:[#allocation2 + $0x38] sm:$0xf]
        %v580 = vld [vmem:[%s1] sm:$0xf]
        %v581 = vld [vmem:[%s1 + $0x4] sm:$0xf]
        %v582 = vld [vmem:[%s1 + $0x8] sm:$0xf]
        %v583 = vld [vmem:[%s1 + $0xc] sm:$0xf]
        %v584 = vld [vmem:[#allocation2 + $0x4] sm:$0x1]
        %v585 = vld [vmem:[#allocation2 + $0xc] sm:$0x1]
        %v586 = vld [vmem:[#allocation2 + $0x14] sm:$0x1]
        %v587 = vld [vmem:[#allocation2 + $0x1c] sm:$0x1]
        %v588 = vld [vmem:[#allocation2 + $0x24] sm:$0x1]
        %v589 = vld [vmem:[#allocation2 + $0x2c] sm:$0x1]
        %v590 = vld [vmem:[#allocation2 + $0x34] sm:$0x1]
        %v591 = vld [vmem:[#allocation2 + $0x3c] sm:$0x1]
        %vm592 = vsmask.f32 3328
        %vm593 = vsmask.f32 7440
        %vm594 = vmor %vm592, %vm593
        %v596 = vshrl.u32 %v572, 16
        %v598 = vrot.slane %v596, 4
        %v599 = vshll.u32 %v572, 16
        %v601 = vrot.slane %v599, 5
        %v602 = vor.u32 %v598, %v601
        %v603 = vrot.slane %v602, 4
        %v605 = vshll.u32 %v584, 16
        %v607 = vrot.slane %v605, 5
        %v608 = vsel %vm594, %v603, %v607
        %v610 = vshrl.u32 %v573, 16
        %v612 = vrot.slane %v610, 4
        %v613 = vshll.u32 %v573, 16
        %v615 = vrot.slane %v613, 5
        %v616 = vor.u32 %v612, %v615
        %v617 = vrot.slane %v616, 4
        %v619 = vshll.u32 %v585, 16
        %v621 = vrot.slane %v619, 5
        %v622 = vsel %vm594, %v617, %v621
        %v624 = vshrl.u32 %v574, 16
        %v626 = vrot.slane %v624, 4
        %v627 = vshll.u32 %v574, 16
        %v629 = vrot.slane %v627, 5
        %v630 = vor.u32 %v626, %v629
        %v631 = vrot.slane %v630, 4
        %v633 = vshll.u32 %v586, 16
        %v635 = vrot.slane %v633, 5
        %v636 = vsel %vm594, %v631, %v635
        %v638 = vshrl.u32 %v575, 16
        %v640 = vrot.slane %v638, 4
        %v641 = vshll.u32 %v575, 16
        %v643 = vrot.slane %v641, 5
        %v644 = vor.u32 %v640, %v643
        %v645 = vrot.slane %v644, 4
        %v647 = vshll.u32 %v587, 16
        %v649 = vrot.slane %v647, 5
        %v650 = vsel %vm594, %v645, %v649
        %v652 = vshrl.u32 %v576, 16
        %v654 = vrot.slane %v652, 4
        %v655 = vshll.u32 %v576, 16
        %v657 = vrot.slane %v655, 5
        %v658 = vor.u32 %v654, %v657
        %v659 = vrot.slane %v658, 4
        %v661 = vshll.u32 %v588, 16
        %v663 = vrot.slane %v661, 5
        %v664 = vsel %vm594, %v659, %v663
        %v666 = vshrl.u32 %v577, 16
        %v668 = vrot.slane %v666, 4
        %v669 = vshll.u32 %v577, 16
        %v671 = vrot.slane %v669, 5
        %v672 = vor.u32 %v668, %v671
        %v673 = vrot.slane %v672, 4
        %v675 = vshll.u32 %v589, 16
        %v677 = vrot.slane %v675, 5
        %v678 = vsel %vm594, %v673, %v677
        %v680 = vshrl.u32 %v578, 16
        %v682 = vrot.slane %v680, 4
        %v683 = vshll.u32 %v578, 16
        %v685 = vrot.slane %v683, 5
        %v686 = vor.u32 %v682, %v685
        %v687 = vrot.slane %v686, 4
        %v689 = vshll.u32 %v590, 16
        %v691 = vrot.slane %v689, 5
        %v692 = vsel %vm594, %v687, %v691
        %v694 = vshrl.u32 %v579, 16
        %v696 = vrot.slane %v694, 4
        %v697 = vshll.u32 %v579, 16
        %v699 = vrot.slane %v697, 5
        %v700 = vor.u32 %v696, %v699
        %v701 = vrot.slane %v700, 4
        %v703 = vshll.u32 %v591, 16
        %v705 = vrot.slane %v703, 5
        %v706 = vsel %vm594, %v701, %v705
        %v707 = vld [vmem:[%s1 + $0x10] sm:$0xf]
        %v708 = vld [vmem:[%s1 + $0x14] sm:$0xf]
        %v709 = vld [vmem:[%s1 + $0x18] sm:$0xf]
        %v710 = vld [vmem:[%s1 + $0x1c] sm:$0xf]
        %v711 = vunpack.c.l.b16 %v608
        %v712 = vunpack.c.l.b16 %v622
        %v713 = vunpack.c.l.b16 %v636
        %v714 = vunpack.c.l.b16 %v650
        %v715 = vunpack.c.l.b16 %v664
        %v716 = vunpack.c.l.b16 %v678
        %v717 = vunpack.c.l.b16 %v692
        %v718 = vunpack.c.l.b16 %v706
        %v719 = vpack.c.b16 %v712, %v711
        %v720 = vpack.c.b16 %v714, %v713
        %v721 = vpack.c.b16 %v716, %v715
        %v722 = vpack.c.b16 %v718, %v717
        %v727 = vunpack.c.l.b16 %v707
        %v728 = vunpack.c.l.b16 %v708
        %v729 = vunpack.c.l.b16 %v709
        %v730 = vunpack.c.l.b16 %v710
        %v731 = vpack.c.b16 %v728, %v727
        %v732 = vpack.c.b16 %v730, %v729
        %vm735 = vcmask 261120
        %v737 = vsel %vm735, %v719, 0
        %v740 = vsel %vm735, %v720, 0
        %v743 = vsel %vm735, %v721, 0
        %v746 = vsel %vm735, %v722, 0
        %748 = vmatprep.subr.bf16.mxu0 0
        %749 = vmatpush1.bf16.msra.mxu0 %v731
        %750 = vmatprep.subr.bf16.mxu0 0
        %751 = vmatpush1.bf16.msra.mxu0 %v732
        %752 = vmatprep.subr.bf16.mxu0 0
        %753 = vmatpush1.bf16.msra.mxu0 0
        %754 = vmatprep.subr.bf16.mxu0 0
        %755 = vmatpush1.bf16.msra.mxu0 0
        %756 = vmatprep.subr.bf16.mxu0 0
        %757 = vmatpush1.bf16.msra.mxu0 0
        %758 = vmatprep.subr.bf16.mxu0 0
        %759 = vmatpush1.bf16.msra.mxu0 0
        %760 = vmatprep.subr.bf16.mxu0 0
        %761 = vmatpush1.bf16.msra.mxu0 0
        %762 = vmatprep.subr.bf16.mxu0 0
        %763 = vmatpush1.bf16.msra.mxu0 0
        %764 = vmatprep.subr.bf16.mxu0 0
        %765 = vmatpush1.bf16.msra.mxu0 0
        %766 = vmatprep.subr.bf16.mxu0 0
        %767 = vmatpush1.bf16.msra.mxu0 0
        %768 = vmatprep.subr.bf16.mxu0 0
        %769 = vmatpush1.bf16.msra.mxu0 0
        %770 = vmatprep.subr.bf16.mxu0 0
        %771 = vmatpush1.bf16.msra.mxu0 0
        %772 = vmatprep.subr.bf16.mxu0 0
        %773 = vmatpush1.bf16.msra.mxu0 0
        %774 = vmatprep.subr.bf16.mxu0 0
        %775 = vmatpush1.bf16.msra.mxu0 0
        %776 = vmatprep.subr.bf16.mxu0 0
        %777 = vmatpush1.bf16.msra.mxu0 0
        %778 = vmatprep.subr.bf16.mxu0 0
        %779 = vmatpush1.bf16.msra.mxu0 0
        %780 = vmatprep.mubr.bf16.mxu0 0
        %781 = vmatmul.mubr.bf16.gmra.mrb[0].mxu0 %v737
        %v782 = vpop.f32.mrb[0].mxu0
        %v783 = vadd.f32 0.0, %v782
        %v784 = vpop.f32.mrb[0].mxu0
        %v785 = vpop.f32.mrb[0].mxu0
        %v786 = vadd.f32 0.0, %v785
        %v787 = vpop.f32.mrb[0].mxu0
        %788 = vmatprep.mubr.bf16.mxu0 0
        %789 = vmatmul.mubr.bf16.gmra.mrb[0].mxu0 %v740
        %v790 = vpop.f32.mrb[0].mxu0
        %v791 = vadd.f32 0.0, %v790
        %v792 = vpop.f32.mrb[0].mxu0
        %v793 = vpop.f32.mrb[0].mxu0
        %v794 = vadd.f32 0.0, %v793
        %v795 = vpop.f32.mrb[0].mxu0
        %796 = vmatprep.mubr.bf16.mxu0 0
        %797 = vmatmul.mubr.bf16.gmra.mrb[0].mxu0 %v743
        %v798 = vpop.f32.mrb[0].mxu0
        %v799 = vadd.f32 0.0, %v798
        %v800 = vpop.f32.mrb[0].mxu0
        %v801 = vpop.f32.mrb[0].mxu0
        %v802 = vadd.f32 0.0, %v801
        %v803 = vpop.f32.mrb[0].mxu0
        %804 = vmatprep.mubr.bf16.mxu0 0
        %805 = vmatmul.mubr.bf16.gmra.mrb[0].mxu0 %v746
        %v806 = vpop.f32.mrb[0].mxu0
        %v807 = vadd.f32 0.0, %v806
        %v808 = vpop.f32.mrb[0].mxu0
        %v809 = vpop.f32.mrb[0].mxu0
        %v810 = vadd.f32 0.0, %v809
        %v811 = vpop.f32.mrb[0].mxu0
        %812 = vdwg.mxu0
        %v821 = vunpack.c.l.b16 %v572
        %v822 = vunpack.c.l.b16 %v573
        %v823 = vunpack.c.l.b16 %v574
        %v824 = vunpack.c.l.b16 %v575
        %v825 = vunpack.c.l.b16 %v576
        %v826 = vunpack.c.l.b16 %v577
        %v827 = vunpack.c.l.b16 %v578
        %v828 = vunpack.c.l.b16 %v579
        %v829 = vpack.c.b16 %v822, %v821
        %v830 = vpack.c.b16 %v824, %v823
        %v831 = vpack.c.b16 %v826, %v825
        %v832 = vpack.c.b16 %v828, %v827
        %v837 = vunpack.c.l.b16 %v580
        %v838 = vunpack.c.l.b16 %v581
        %v839 = vunpack.c.l.b16 %v582
        %v840 = vunpack.c.l.b16 %v583
        %v841 = vpack.c.b16 %v838, %v837
        %v842 = vpack.c.b16 %v840, %v839
        %v846 = vsel %vm735, %v829, 0
        %v849 = vsel %vm735, %v830, 0
        %v852 = vsel %vm735, %v831, 0
        %v855 = vsel %vm735, %v832, 0
        %857 = vmatprep.subr.bf16.mxu0 0
        %858 = vmatpush1.bf16.msra.mxu0 %v841
        %859 = vmatprep.subr.bf16.mxu0 0
        %860 = vmatpush1.bf16.msra.mxu0 %v842
        %861 = vmatprep.subr.bf16.mxu0 0
        %862 = vmatpush1.bf16.msra.mxu0 0
        %863 = vmatprep.subr.bf16.mxu0 0
        %864 = vmatpush1.bf16.msra.mxu0 0
        %865 = vmatprep.subr.bf16.mxu0 0
        %866 = vmatpush1.bf16.msra.mxu0 0
        %867 = vmatprep.subr.bf16.mxu0 0
        %868 = vmatpush1.bf16.msra.mxu0 0
        %869 = vmatprep.subr.bf16.mxu0 0
        %870 = vmatpush1.bf16.msra.mxu0 0
        %871 = vmatprep.subr.bf16.mxu0 0
        %872 = vmatpush1.bf16.msra.mxu0 0
        %873 = vmatprep.subr.bf16.mxu0 0
        %874 = vmatpush1.bf16.msra.mxu0 0
        %875 = vmatprep.subr.bf16.mxu0 0
        %876 = vmatpush1.bf16.msra.mxu0 0
        %877 = vmatprep.subr.bf16.mxu0 0
        %878 = vmatpush1.bf16.msra.mxu0 0
        %879 = vmatprep.subr.bf16.mxu0 0
        %880 = vmatpush1.bf16.msra.mxu0 0
        %881 = vmatprep.subr.bf16.mxu0 0
        %882 = vmatpush1.bf16.msra.mxu0 0
        %883 = vmatprep.subr.bf16.mxu0 0
        %884 = vmatpush1.bf16.msra.mxu0 0
        %885 = vmatprep.subr.bf16.mxu0 0
        %886 = vmatpush1.bf16.msra.mxu0 0
        %887 = vmatprep.subr.bf16.mxu0 0
        %888 = vmatpush1.bf16.msra.mxu0 0
        %889 = vmatprep.mubr.bf16.mxu0 0
        %890 = vmatmul.mubr.bf16.gmra.mrb[0].mxu0 %v846
        %v891 = vpop.f32.mrb[0].mxu0
        %v892 = vadd.f32 %v783, %v891
        %v893 = vpop.f32.mrb[0].mxu0
        %v894 = vpop.f32.mrb[0].mxu0
        %v895 = vadd.f32 %v786, %v894
        %v896 = vpop.f32.mrb[0].mxu0
        %897 = vmatprep.mubr.bf16.mxu0 0
        %898 = vmatmul.mubr.bf16.gmra.mrb[0].mxu0 %v849
        %v899 = vpop.f32.mrb[0].mxu0
        %v900 = vadd.f32 %v791, %v899
        %v901 = vpop.f32.mrb[0].mxu0
        %v902 = vpop.f32.mrb[0].mxu0
        %v903 = vadd.f32 %v794, %v902
        %v904 = vpop.f32.mrb[0].mxu0
        %905 = vmatprep.mubr.bf16.mxu0 0
        %906 = vmatmul.mubr.bf16.gmra.mrb[0].mxu0 %v852
        %v907 = vpop.f32.mrb[0].mxu0
        %v908 = vadd.f32 %v799, %v907
        %v909 = vpop.f32.mrb[0].mxu0
        %v910 = vpop.f32.mrb[0].mxu0
        %v911 = vadd.f32 %v802, %v910
        %v912 = vpop.f32.mrb[0].mxu0
        %913 = vmatprep.mubr.bf16.mxu0 0
        %914 = vmatmul.mubr.bf16.gmra.mrb[0].mxu0 %v855
        %v915 = vpop.f32.mrb[0].mxu0
        %v916 = vadd.f32 %v807, %v915
        %v917 = vpop.f32.mrb[0].mxu0
        %v918 = vpop.f32.mrb[0].mxu0
        %v919 = vadd.f32 %v810, %v918
        %v920 = vpop.f32.mrb[0].mxu0
        %921 = vdwg.mxu0
        %v922 = vld [vmem:[#allocation2] sm:$0xe]
        %v923 = vld [vmem:[#allocation2 + $0x8] sm:$0xe]
        %v924 = vld [vmem:[#allocation2 + $0x10] sm:$0xe]
        %v925 = vld [vmem:[#allocation2 + $0x18] sm:$0xe]
        %v926 = vld [vmem:[#allocation2 + $0x20] sm:$0xe]
        %v927 = vld [vmem:[#allocation2 + $0x28] sm:$0xe]
        %v928 = vld [vmem:[#allocation2 + $0x30] sm:$0xe]
        %v929 = vld [vmem:[#allocation2 + $0x38] sm:$0xe]
        %vm946 = vcmask 1042432
        %vm947 = vcmask 1046532
        %vm948 = vmor %vm946, %vm947
        %v949 = vrot.slane %v922, 5
        %v950 = vrot.slane %v949, 4
        %v951 = vrot.slane %v584, 5
        %v952 = vsel %vm948, %v950, %v951
        %v953 = vrot.slane %v923, 5
        %v954 = vrot.slane %v953, 4
        %v955 = vrot.slane %v585, 5
        %v956 = vsel %vm948, %v954, %v955
        %v957 = vrot.slane %v924, 5
        %v958 = vrot.slane %v957, 4
        %v959 = vrot.slane %v586, 5
        %v960 = vsel %vm948, %v958, %v959
        %v961 = vrot.slane %v925, 5
        %v962 = vrot.slane %v961, 4
        %v963 = vrot.slane %v587, 5
        %v964 = vsel %vm948, %v962, %v963
        %v965 = vrot.slane %v926, 5
        %v966 = vrot.slane %v965, 4
        %v967 = vrot.slane %v588, 5
        %v968 = vsel %vm948, %v966, %v967
        %v969 = vrot.slane %v927, 5
        %v970 = vrot.slane %v969, 4
        %v971 = vrot.slane %v589, 5
        %v972 = vsel %vm948, %v970, %v971
        %v973 = vrot.slane %v928, 5
        %v974 = vrot.slane %v973, 4
        %v975 = vrot.slane %v590, 5
        %v976 = vsel %vm948, %v974, %v975
        %v977 = vrot.slane %v929, 5
        %v978 = vrot.slane %v977, 4
        %v979 = vrot.slane %v591, 5
        %v980 = vsel %vm948, %v978, %v979
        %v981 = vld [vmem:[%s1 + $0x20] sm:$0xf]
        %v982 = vld [vmem:[%s1 + $0x24] sm:$0xf]
        %v983 = vld [vmem:[%s1 + $0x28] sm:$0xf]
        %v984 = vld [vmem:[%s1 + $0x2c] sm:$0xf]
        %v985 = vunpack.c.l.b16 %v952
        %v986 = vunpack.c.l.b16 %v956
        %v987 = vunpack.c.l.b16 %v960
        %v988 = vunpack.c.l.b16 %v964
        %v989 = vunpack.c.l.b16 %v968
        %v990 = vunpack.c.l.b16 %v972
        %v991 = vunpack.c.l.b16 %v976
        %v992 = vunpack.c.l.b16 %v980
        %v993 = vpack.c.b16 %v986, %v985
        %v994 = vpack.c.b16 %v988, %v987
        %v995 = vpack.c.b16 %v990, %v989
        %v996 = vpack.c.b16 %v992, %v991
        %v1001 = vunpack.c.l.b16 %v981
        %v1002 = vunpack.c.l.b16 %v982
        %v1003 = vunpack.c.l.b16 %v983
        %v1004 = vunpack.c.l.b16 %v984
        %v1005 = vpack.c.b16 %v1002, %v1001
        %v1006 = vpack.c.b16 %v1004, %v1003
        %v1010 = vsel %vm735, %v993, 0
        %v1013 = vsel %vm735, %v994, 0
        %v1016 = vsel %vm735, %v995, 0
        %v1019 = vsel %vm735, %v996, 0
        %1021 = vmatprep.subr.bf16.mxu0 0
        %1022 = vmatpush1.bf16.msra.mxu0 %v1005
        %1023 = vmatprep.subr.bf16.mxu0 0
        %1024 = vmatpush1.bf16.msra.mxu0 %v1006
        %1025 = vmatprep.subr.bf16.mxu0 0
        %1026 = vmatpush1.bf16.msra.mxu0 0
        %1027 = vmatprep.subr.bf16.mxu0 0
        %1028 = vmatpush1.bf16.msra.mxu0 0
        %1029 = vmatprep.subr.bf16.mxu0 0
        %1030 = vmatpush1.bf16.msra.mxu0 0
        %1031 = vmatprep.subr.bf16.mxu0 0
        %1032 = vmatpush1.bf16.msra.mxu0 0
        %1033 = vmatprep.subr.bf16.mxu0 0
        %1034 = vmatpush1.bf16.msra.mxu0 0
        %1035 = vmatprep.subr.bf16.mxu0 0
        %1036 = vmatpush1.bf16.msra.mxu0 0
        %1037 = vmatprep.subr.bf16.mxu0 0
        %1038 = vmatpush1.bf16.msra.mxu0 0
        %1039 = vmatprep.subr.bf16.mxu0 0
        %1040 = vmatpush1.bf16.msra.mxu0 0
        %1041 = vmatprep.subr.bf16.mxu0 0
        %1042 = vmatpush1.bf16.msra.mxu0 0
        %1043 = vmatprep.subr.bf16.mxu0 0
        %1044 = vmatpush1.bf16.msra.mxu0 0
        %1045 = vmatprep.subr.bf16.mxu0 0
        %1046 = vmatpush1.bf16.msra.mxu0 0
        %1047 = vmatprep.subr.bf16.mxu0 0
        %1048 = vmatpush1.bf16.msra.mxu0 0
        %1049 = vmatprep.subr.bf16.mxu0 0
        %1050 = vmatpush1.bf16.msra.mxu0 0
        %1051 = vmatprep.subr.bf16.mxu0 0
        %1052 = vmatpush1.bf16.msra.mxu0 0
        %1053 = vmatprep.mubr.bf16.mxu0 0
        %1054 = vmatmul.mubr.bf16.gmra.mrb[0].mxu0 %v1010
        %v1055 = vpop.f32.mrb[0].mxu0
        %v1056 = vadd.f32 0.0, %v1055
        %v1057 = vpop.f32.mrb[0].mxu0
        %v1058 = vpop.f32.mrb[0].mxu0
        %v1059 = vadd.f32 0.0, %v1058
        %v1060 = vpop.f32.mrb[0].mxu0
        %1061 = vmatprep.mubr.bf16.mxu0 0
        %1062 = vmatmul.mubr.bf16.gmra.mrb[0].mxu0 %v1013
        %v1063 = vpop.f32.mrb[0].mxu0
        %v1064 = vadd.f32 0.0, %v1063
        %v1065 = vpop.f32.mrb[0].mxu0
        %v1066 = vpop.f32.mrb[0].mxu0
        %v1067 = vadd.f32 0.0, %v1066
        %v1068 = vpop.f32.mrb[0].mxu0
        %1069 = vmatprep.mubr.bf16.mxu0 0
        %1070 = vmatmul.mubr.bf16.gmra.mrb[0].mxu0 %v1016
        %v1071 = vpop.f32.mrb[0].mxu0
        %v1072 = vadd.f32 0.0, %v1071
        %v1073 = vpop.f32.mrb[0].mxu0
        %v1074 = vpop.f32.mrb[0].mxu0
        %v1075 = vadd.f32 0.0, %v1074
        %v1076 = vpop.f32.mrb[0].mxu0
        %1077 = vmatprep.mubr.bf16.mxu0 0
        %1078 = vmatmul.mubr.bf16.gmra.mrb[0].mxu0 %v1019
        %v1079 = vpop.f32.mrb[0].mxu0
        %v1080 = vadd.f32 0.0, %v1079
        %v1081 = vpop.f32.mrb[0].mxu0
        %v1082 = vpop.f32.mrb[0].mxu0
        %v1083 = vadd.f32 0.0, %v1082
        %v1084 = vpop.f32.mrb[0].mxu0
        %1085 = vdwg.mxu0
        %v1086 = vadd.f32 %v892, %v1056
        %v1087 = vadd.f32 %v895, %v1059
        %v1088 = vadd.f32 %v900, %v1064
        %v1089 = vadd.f32 %v903, %v1067
        %v1090 = vadd.f32 %v908, %v1072
        %v1091 = vadd.f32 %v911, %v1075
        %v1092 = vadd.f32 %v916, %v1080
        %v1093 = vadd.f32 %v919, %v1083
        %v1094 = vld [vmem:[%s520] sm:$0xf]
        %v1095 = vld [vmem:[%s520 + $0x8] sm:$0xf]
        %v1096 = vld [vmem:[%s520 + $0x10] sm:$0xf]
        %v1097 = vld [vmem:[%s520 + $0x18] sm:$0xf]
        %v1098 = vld [vmem:[%s520 + $0x20] sm:$0xf]
        %v1099 = vld [vmem:[%s520 + $0x28] sm:$0xf]
        %v1100 = vld [vmem:[%s520 + $0x30] sm:$0xf]
        %v1101 = vld [vmem:[%s520 + $0x38] sm:$0xf]
        %v1102 = vld [vmem:[%s1 + $0x30] sm:$0xf]
        %v1103 = vld [vmem:[%s1 + $0x34] sm:$0xf]
        %v1104 = vld [vmem:[%s1 + $0x38] sm:$0xf]
        %v1105 = vld [vmem:[%s1 + $0x3c] sm:$0xf]
        %v1114 = vunpack.c.l.b16 %v1094
        %v1115 = vunpack.c.l.b16 %v1095
        %v1116 = vunpack.c.l.b16 %v1096
        %v1117 = vunpack.c.l.b16 %v1097
        %v1118 = vunpack.c.l.b16 %v1098
        %v1119 = vunpack.c.l.b16 %v1099
        %v1120 = vunpack.c.l.b16 %v1100
        %v1121 = vunpack.c.l.b16 %v1101
        %v1122 = vpack.c.b16 %v1115, %v1114
        %v1123 = vpack.c.b16 %v1117, %v1116
        %v1124 = vpack.c.b16 %v1119, %v1118
        %v1125 = vpack.c.b16 %v1121, %v1120
        %v1130 = vunpack.c.l.b16 %v1102
        %v1131 = vunpack.c.l.b16 %v1103
        %v1132 = vunpack.c.l.b16 %v1104
        %v1133 = vunpack.c.l.b16 %v1105
        %v1134 = vpack.c.b16 %v1131, %v1130
        %v1135 = vpack.c.b16 %v1133, %v1132
        %v1139 = vsel %vm735, %v1122, 0
        %v1142 = vsel %vm735, %v1123, 0
        %v1145 = vsel %vm735, %v1124, 0
        %v1148 = vsel %vm735, %v1125, 0
        %1150 = vmatprep.subr.bf16.mxu0 0
        %1151 = vmatpush1.bf16.msra.mxu0 %v1134
        %1152 = vmatprep.subr.bf16.mxu0 0
        %1153 = vmatpush1.bf16.msra.mxu0 %v1135
        %1154 = vmatprep.subr.bf16.mxu0 0
        %1155 = vmatpush1.bf16.msra.mxu0 0
        %1156 = vmatprep.subr.bf16.mxu0 0
        %1157 = vmatpush1.bf16.msra.mxu0 0
        %1158 = vmatprep.subr.bf16.mxu0 0
        %1159 = vmatpush1.bf16.msra.mxu0 0
        %1160 = vmatprep.subr.bf16.mxu0 0
        %1161 = vmatpush1.bf16.msra.mxu0 0
        %1162 = vmatprep.subr.bf16.mxu0 0
        %1163 = vmatpush1.bf16.msra.mxu0 0
        %1164 = vmatprep.subr.bf16.mxu0 0
        %1165 = vmatpush1.bf16.msra.mxu0 0
        %1166 = vmatprep.subr.bf16.mxu0 0
        %1167 = vmatpush1.bf16.msra.mxu0 0
        %1168 = vmatprep.subr.bf16.mxu0 0
        %1169 = vmatpush1.bf16.msra.mxu0 0
        %1170 = vmatprep.subr.bf16.mxu0 0
        %1171 = vmatpush1.bf16.msra.mxu0 0
        %1172 = vmatprep.subr.bf16.mxu0 0
        %1173 = vmatpush1.bf16.msra.mxu0 0
        %1174 = vmatprep.subr.bf16.mxu0 0
        %1175 = vmatpush1.bf16.msra.mxu0 0
        %1176 = vmatprep.subr.bf16.mxu0 0
        %1177 = vmatpush1.bf16.msra.mxu0 0
        %1178 = vmatprep.subr.bf16.mxu0 0
        %1179 = vmatpush1.bf16.msra.mxu0 0
        %1180 = vmatprep.subr.bf16.mxu0 0
        %1181 = vmatpush1.bf16.msra.mxu0 0
        %1182 = vmatprep.mubr.bf16.mxu0 0
        %1183 = vmatmul.mubr.bf16.gmra.mrb[0].mxu0 %v1139
        %v1184 = vpop.f32.mrb[0].mxu0
        %v1185 = vadd.f32 0.0, %v1184
        %v1186 = vpop.f32.mrb[0].mxu0
        %v1187 = vpop.f32.mrb[0].mxu0
        %v1188 = vadd.f32 0.0, %v1187
        %v1189 = vpop.f32.mrb[0].mxu0
        %1190 = vmatprep.mubr.bf16.mxu0 0
        %1191 = vmatmul.mubr.bf16.gmra.mrb[0].mxu0 %v1142
        %v1192 = vpop.f32.mrb[0].mxu0
        %v1193 = vadd.f32 0.0, %v1192
        %v1194 = vpop.f32.mrb[0].mxu0
        %v1195 = vpop.f32.mrb[0].mxu0
        %v1196 = vadd.f32 0.0, %v1195
        %v1197 = vpop.f32.mrb[0].mxu0
        %1198 = vmatprep.mubr.bf16.mxu0 0
        %1199 = vmatmul.mubr.bf16.gmra.mrb[0].mxu0 %v1145
        %v1200 = vpop.f32.mrb[0].mxu0
        %v1201 = vadd.f32 0.0, %v1200
        %v1202 = vpop.f32.mrb[0].mxu0
        %v1203 = vpop.f32.mrb[0].mxu0
        %v1204 = vadd.f32 0.0, %v1203
        %v1205 = vpop.f32.mrb[0].mxu0
        %1206 = vmatprep.mubr.bf16.mxu0 0
        %1207 = vmatmul.mubr.bf16.gmra.mrb[0].mxu0 %v1148
        %v1208 = vpop.f32.mrb[0].mxu0
        %v1209 = vadd.f32 0.0, %v1208
        %v1210 = vpop.f32.mrb[0].mxu0
        %v1211 = vpop.f32.mrb[0].mxu0
        %v1212 = vadd.f32 0.0, %v1211
        %v1213 = vpop.f32.mrb[0].mxu0
        %1214 = vdwg.mxu0
        %v1215 = vadd.f32 %v1086, %v1185
        %v1216 = vadd.f32 %v1087, %v1188
        %v1217 = vadd.f32 %v1088, %v1193
        %v1218 = vadd.f32 %v1089, %v1196
        %v1219 = vadd.f32 %v1090, %v1201
        %v1220 = vadd.f32 %v1091, %v1204
        %v1221 = vadd.f32 %v1092, %v1209
        %v1222 = vadd.f32 %v1093, %v1212
        %v1223 = vld [vmem:[%s520] sm:$0xf]
        %v1224 = vld [vmem:[%s520 + $0x4] sm:$0x1]
        %v1225 = vld [vmem:[%s520 + $0x8] sm:$0xf]
        %v1226 = vld [vmem:[%s520 + $0xc] sm:$0x1]
        %v1227 = vld [vmem:[%s520 + $0x10] sm:$0xf]
        %v1228 = vld [vmem:[%s520 + $0x14] sm:$0x1]
        %v1229 = vld [vmem:[%s520 + $0x18] sm:$0xf]
        %v1230 = vld [vmem:[%s520 + $0x1c] sm:$0x1]
        %v1231 = vld [vmem:[%s520 + $0x20] sm:$0xf]
        %v1232 = vld [vmem:[%s520 + $0x24] sm:$0x1]
        %v1233 = vld [vmem:[%s520 + $0x28] sm:$0xf]
        %v1234 = vld [vmem:[%s520 + $0x2c] sm:$0x1]
        %v1235 = vld [vmem:[%s520 + $0x30] sm:$0xf]
        %v1236 = vld [vmem:[%s520 + $0x34] sm:$0x1]
        %v1237 = vld [vmem:[%s520 + $0x38] sm:$0xf]
        %v1238 = vld [vmem:[%s520 + $0x3c] sm:$0x1]
        %v1240 = vshrl.u32 %v1223, 16
        %v1242 = vrot.slane %v1240, 4
        %v1243 = vshll.u32 %v1223, 16
        %v1245 = vrot.slane %v1243, 5
        %v1246 = vor.u32 %v1242, %v1245
        %v1247 = vrot.slane %v1246, 4
        %v1249 = vshll.u32 %v1224, 16
        %v1251 = vrot.slane %v1249, 5
        %v1252 = vsel %vm594, %v1247, %v1251
        %v1254 = vshrl.u32 %v1225, 16
        %v1256 = vrot.slane %v1254, 4
        %v1257 = vshll.u32 %v1225, 16
        %v1259 = vrot.slane %v1257, 5
        %v1260 = vor.u32 %v1256, %v1259
        %v1261 = vrot.slane %v1260, 4
        %v1263 = vshll.u32 %v1226, 16
        %v1265 = vrot.slane %v1263, 5
        %v1266 = vsel %vm594, %v1261, %v1265
        %v1268 = vshrl.u32 %v1227, 16
        %v1270 = vrot.slane %v1268, 4
        %v1271 = vshll.u32 %v1227, 16
        %v1273 = vrot.slane %v1271, 5
        %v1274 = vor.u32 %v1270, %v1273
        %v1275 = vrot.slane %v1274, 4
        %v1277 = vshll.u32 %v1228, 16
        %v1279 = vrot.slane %v1277, 5
        %v1280 = vsel %vm594, %v1275, %v1279
        %v1282 = vshrl.u32 %v1229, 16
        %v1284 = vrot.slane %v1282, 4
        %v1285 = vshll.u32 %v1229, 16
        %v1287 = vrot.slane %v1285, 5
        %v1288 = vor.u32 %v1284, %v1287
        %v1289 = vrot.slane %v1288, 4
        %v1291 = vshll.u32 %v1230, 16
        %v1293 = vrot.slane %v1291, 5
        %v1294 = vsel %vm594, %v1289, %v1293
        %v1296 = vshrl.u32 %v1231, 16
        %v1298 = vrot.slane %v1296, 4
        %v1299 = vshll.u32 %v1231, 16
        %v1301 = vrot.slane %v1299, 5
        %v1302 = vor.u32 %v1298, %v1301
        %v1303 = vrot.slane %v1302, 4
        %v1305 = vshll.u32 %v1232, 16
        %v1307 = vrot.slane %v1305, 5
        %v1308 = vsel %vm594, %v1303, %v1307
        %v1310 = vshrl.u32 %v1233, 16
        %v1312 = vrot.slane %v1310, 4
        %v1313 = vshll.u32 %v1233, 16
        %v1315 = vrot.slane %v1313, 5
        %v1316 = vor.u32 %v1312, %v1315
        %v1317 = vrot.slane %v1316, 4
        %v1319 = vshll.u32 %v1234, 16
        %v1321 = vrot.slane %v1319, 5
        %v1322 = vsel %vm594, %v1317, %v1321
        %v1324 = vshrl.u32 %v1235, 16
        %v1326 = vrot.slane %v1324, 4
        %v1327 = vshll.u32 %v1235, 16
        %v1329 = vrot.slane %v1327, 5
        %v1330 = vor.u32 %v1326, %v1329
        %v1331 = vrot.slane %v1330, 4
        %v1333 = vshll.u32 %v1236, 16
        %v1335 = vrot.slane %v1333, 5
        %v1336 = vsel %vm594, %v1331, %v1335
        %v1338 = vshrl.u32 %v1237, 16
        %v1340 = vrot.slane %v1338, 4
        %v1341 = vshll.u32 %v1237, 16
        %v1343 = vrot.slane %v1341, 5
        %v1344 = vor.u32 %v1340, %v1343
        %v1345 = vrot.slane %v1344, 4
        %v1347 = vshll.u32 %v1238, 16
        %v1349 = vrot.slane %v1347, 5
        %v1350 = vsel %vm594, %v1345, %v1349
        %v1351 = vld [vmem:[%s1 + $0x40] sm:$0xf]
        %v1352 = vld [vmem:[%s1 + $0x44] sm:$0xf]
        %v1353 = vld [vmem:[%s1 + $0x48] sm:$0xf]
        %v1354 = vld [vmem:[%s1 + $0x4c] sm:$0xf]
        %v1355 = vunpack.c.l.b16 %v1252
        %v1356 = vunpack.c.l.b16 %v1266
        %v1357 = vunpack.c.l.b16 %v1280
        %v1358 = vunpack.c.l.b16 %v1294
        %v1359 = vunpack.c.l.b16 %v1308
        %v1360 = vunpack.c.l.b16 %v1322
        %v1361 = vunpack.c.l.b16 %v1336
        %v1362 = vunpack.c.l.b16 %v1350
        %v1363 = vpack.c.b16 %v1356, %v1355
        %v1364 = vpack.c.b16 %v1358, %v1357
        %v1365 = vpack.c.b16 %v1360, %v1359
        %v1366 = vpack.c.b16 %v1362, %v1361
        %v1371 = vunpack.c.l.b16 %v1351
        %v1372 = vunpack.c.l.b16 %v1352
        %v1373 = vunpack.c.l.b16 %v1353
        %v1374 = vunpack.c.l.b16 %v1354
        %v1375 = vpack.c.b16 %v1372, %v1371
        %v1376 = vpack.c.b16 %v1374, %v1373
        %v1380 = vsel %vm735, %v1363, 0
        %v1383 = vsel %vm735, %v1364, 0
        %v1386 = vsel %vm735, %v1365, 0
        %v1389 = vsel %vm735, %v1366, 0
        %1391 = vmatprep.subr.bf16.mxu0 0
        %1392 = vmatpush1.bf16.msra.mxu0 %v1375
        %1393 = vmatprep.subr.bf16.mxu0 0
        %1394 = vmatpush1.bf16.msra.mxu0 %v1376
        %1395 = vmatprep.subr.bf16.mxu0 0
        %1396 = vmatpush1.bf16.msra.mxu0 0
        %1397 = vmatprep.subr.bf16.mxu0 0
        %1398 = vmatpush1.bf16.msra.mxu0 0
        %1399 = vmatprep.subr.bf16.mxu0 0
        %1400 = vmatpush1.bf16.msra.mxu0 0
        %1401 = vmatprep.subr.bf16.mxu0 0
        %1402 = vmatpush1.bf16.msra.mxu0 0
        %1403 = vmatprep.subr.bf16.mxu0 0
        %1404 = vmatpush1.bf16.msra.mxu0 0
        %1405 = vmatprep.subr.bf16.mxu0 0
        %1406 = vmatpush1.bf16.msra.mxu0 0
        %1407 = vmatprep.subr.bf16.mxu0 0
        %1408 = vmatpush1.bf16.msra.mxu0 0
        %1409 = vmatprep.subr.bf16.mxu0 0
        %1410 = vmatpush1.bf16.msra.mxu0 0
        %1411 = vmatprep.subr.bf16.mxu0 0
        %1412 = vmatpush1.bf16.msra.mxu0 0
        %1413 = vmatprep.subr.bf16.mxu0 0
        %1414 = vmatpush1.bf16.msra.mxu0 0
        %1415 = vmatprep.subr.bf16.mxu0 0
        %1416 = vmatpush1.bf16.msra.mxu0 0
        %1417 = vmatprep.subr.bf16.mxu0 0
        %1418 = vmatpush1.bf16.msra.mxu0 0
        %1419 = vmatprep.subr.bf16.mxu0 0
        %1420 = vmatpush1.bf16.msra.mxu0 0
        %1421 = vmatprep.subr.bf16.mxu0 0
        %1422 = vmatpush1.bf16.msra.mxu0 0
        %1423 = vmatprep.mubr.bf16.mxu0 0
        %1424 = vmatmul.mubr.bf16.gmra.mrb[0].mxu0 %v1380
        %v1425 = vpop.f32.mrb[0].mxu0
        %v1426 = vadd.f32 0.0, %v1425
        %v1427 = vpop.f32.mrb[0].mxu0
        %v1428 = vpop.f32.mrb[0].mxu0
        %v1429 = vadd.f32 0.0, %v1428
        %v1430 = vpop.f32.mrb[0].mxu0
        %1431 = vmatprep.mubr.bf16.mxu0 0
        %1432 = vmatmul.mubr.bf16.gmra.mrb[0].mxu0 %v1383
        %v1433 = vpop.f32.mrb[0].mxu0
        %v1434 = vadd.f32 0.0, %v1433
        %v1435 = vpop.f32.mrb[0].mxu0
        %v1436 = vpop.f32.mrb[0].mxu0
        %v1437 = vadd.f32 0.0, %v1436
        %v1438 = vpop.f32.mrb[0].mxu0
        %1439 = vmatprep.mubr.bf16.mxu0 0
        %1440 = vmatmul.mubr.bf16.gmra.mrb[0].mxu0 %v1386
        %v1441 = vpop.f32.mrb[0].mxu0
        %v1442 = vadd.f32 0.0, %v1441
        %v1443 = vpop.f32.mrb[0].mxu0
        %v1444 = vpop.f32.mrb[0].mxu0
        %v1445 = vadd.f32 0.0, %v1444
        %v1446 = vpop.f32.mrb[0].mxu0
        %1447 = vmatprep.mubr.bf16.mxu0 0
        %1448 = vmatmul.mubr.bf16.gmra.mrb[0].mxu0 %v1389
        %v1449 = vpop.f32.mrb[0].mxu0
        %v1450 = vadd.f32 0.0, %v1449
        %v1451 = vpop.f32.mrb[0].mxu0
        %v1452 = vpop.f32.mrb[0].mxu0
        %v1453 = vadd.f32 0.0, %v1452
        %v1454 = vpop.f32.mrb[0].mxu0
        %1455 = vdwg.mxu0
        %v1456 = vadd.f32 %v1215, %v1426
        %v1457 = vadd.f32 %v1216, %v1429
        %v1458 = vadd.f32 %v1217, %v1434
        %v1459 = vadd.f32 %v1218, %v1437
        %v1460 = vadd.f32 %v1219, %v1442
        %v1461 = vadd.f32 %v1220, %v1445
        %v1462 = vadd.f32 %v1221, %v1450
        %v1463 = vadd.f32 %v1222, %v1453
        %v1464 = vld [vmem:[%s520] sm:$0xe]
        %v1465 = vld [vmem:[%s520 + $0x8] sm:$0xe]
        %v1466 = vld [vmem:[%s520 + $0x10] sm:$0xe]
        %v1467 = vld [vmem:[%s520 + $0x18] sm:$0xe]
        %v1468 = vld [vmem:[%s520 + $0x20] sm:$0xe]
        %v1469 = vld [vmem:[%s520 + $0x28] sm:$0xe]
        %v1470 = vld [vmem:[%s520 + $0x30] sm:$0xe]
        %v1471 = vld [vmem:[%s520 + $0x38] sm:$0xe]
        %v1488 = vrot.slane %v1464, 5
        %v1489 = vrot.slane %v1488, 4
        %v1490 = vrot.slane %v1224, 5
        %v1491 = vsel %vm948, %v1489, %v1490
        %v1492 = vrot.slane %v1465, 5
        %v1493 = vrot.slane %v1492, 4
        %v1494 = vrot.slane %v1226, 5
        %v1495 = vsel %vm948, %v1493, %v1494
        %v1496 = vrot.slane %v1466, 5
        %v1497 = vrot.slane %v1496, 4
        %v1498 = vrot.slane %v1228, 5
        %v1499 = vsel %vm948, %v1497, %v1498
        %v1500 = vrot.slane %v1467, 5
        %v1501 = vrot.slane %v1500, 4
        %v1502 = vrot.slane %v1230, 5
        %v1503 = vsel %vm948, %v1501, %v1502
        %v1504 = vrot.slane %v1468, 5
        %v1505 = vrot.slane %v1504, 4
        %v1506 = vrot.slane %v1232, 5
        %v1507 = vsel %vm948, %v1505, %v1506
        %v1508 = vrot.slane %v1469, 5
        %v1509 = vrot.slane %v1508, 4
        %v1510 = vrot.slane %v1234, 5
        %v1511 = vsel %vm948, %v1509, %v1510
        %v1512 = vrot.slane %v1470, 5
        %v1513 = vrot.slane %v1512, 4
        %v1514 = vrot.slane %v1236, 5
        %v1515 = vsel %vm948, %v1513, %v1514
        %v1516 = vrot.slane %v1471, 5
        %v1517 = vrot.slane %v1516, 4
        %v1518 = vrot.slane %v1238, 5
        %v1519 = vsel %vm948, %v1517, %v1518
        %v1520 = vld [vmem:[%s1 + $0x50] sm:$0xf]
        %v1521 = vld [vmem:[%s1 + $0x54] sm:$0xf]
        %v1522 = vld [vmem:[%s1 + $0x58] sm:$0xf]
        %v1523 = vld [vmem:[%s1 + $0x5c] sm:$0xf]
        %v1524 = vunpack.c.l.b16 %v1491
        %v1525 = vunpack.c.l.b16 %v1495
        %v1526 = vunpack.c.l.b16 %v1499
        %v1527 = vunpack.c.l.b16 %v1503
        %v1528 = vunpack.c.l.b16 %v1507
        %v1529 = vunpack.c.l.b16 %v1511
        %v1530 = vunpack.c.l.b16 %v1515
        %v1531 = vunpack.c.l.b16 %v1519
        %v1532 = vpack.c.b16 %v1525, %v1524
        %v1533 = vpack.c.b16 %v1527, %v1526
        %v1534 = vpack.c.b16 %v1529, %v1528
        %v1535 = vpack.c.b16 %v1531, %v1530
        %v1540 = vunpack.c.l.b16 %v1520
        %v1541 = vunpack.c.l.b16 %v1521
        %v1542 = vunpack.c.l.b16 %v1522
        %v1543 = vunpack.c.l.b16 %v1523
        %v1544 = vpack.c.b16 %v1541, %v1540
        %v1545 = vpack.c.b16 %v1543, %v1542
        %v1549 = vsel %vm735, %v1532, 0
        %v1552 = vsel %vm735, %v1533, 0
        %v1555 = vsel %vm735, %v1534, 0
        %v1558 = vsel %vm735, %v1535, 0
        %1560 = vmatprep.subr.bf16.mxu0 0
        %1561 = vmatpush1.bf16.msra.mxu0 %v1544
        %1562 = vmatprep.subr.bf16.mxu0 0
        %1563 = vmatpush1.bf16.msra.mxu0 %v1545
        %1564 = vmatprep.subr.bf16.mxu0 0
        %1565 = vmatpush1.bf16.msra.mxu0 0
        %1566 = vmatprep.subr.bf16.mxu0 0
        %1567 = vmatpush1.bf16.msra.mxu0 0
        %1568 = vmatprep.subr.bf16.mxu0 0
        %1569 = vmatpush1.bf16.msra.mxu0 0
        %1570 = vmatprep.subr.bf16.mxu0 0
        %1571 = vmatpush1.bf16.msra.mxu0 0
        %1572 = vmatprep.subr.bf16.mxu0 0
        %1573 = vmatpush1.bf16.msra.mxu0 0
        %1574 = vmatprep.subr.bf16.mxu0 0
        %1575 = vmatpush1.bf16.msra.mxu0 0
        %1576 = vmatprep.subr.bf16.mxu0 0
        %1577 = vmatpush1.bf16.msra.mxu0 0
        %1578 = vmatprep.subr.bf16.mxu0 0
        %1579 = vmatpush1.bf16.msra.mxu0 0
        %1580 = vmatprep.subr.bf16.mxu0 0
        %1581 = vmatpush1.bf16.msra.mxu0 0
        %1582 = vmatprep.subr.bf16.mxu0 0
        %1583 = vmatpush1.bf16.msra.mxu0 0
        %1584 = vmatprep.subr.bf16.mxu0 0
        %1585 = vmatpush1.bf16.msra.mxu0 0
        %1586 = vmatprep.subr.bf16.mxu0 0
        %1587 = vmatpush1.bf16.msra.mxu0 0
        %1588 = vmatprep.subr.bf16.mxu0 0
        %1589 = vmatpush1.bf16.msra.mxu0 0
        %1590 = vmatprep.subr.bf16.mxu0 0
        %1591 = vmatpush1.bf16.msra.mxu0 0
        %1592 = vmatprep.mubr.bf16.mxu0 0
        %1593 = vmatmul.mubr.bf16.gmra.mrb[0].mxu0 %v1549
        %v1594 = vpop.f32.mrb[0].mxu0
        %v1595 = vadd.f32 0.0, %v1594
        %v1596 = vpop.f32.mrb[0].mxu0
        %v1597 = vpop.f32.mrb[0].mxu0
        %v1598 = vadd.f32 0.0, %v1597
        %v1599 = vpop.f32.mrb[0].mxu0
        %1600 = vmatprep.mubr.bf16.mxu0 0
        %1601 = vmatmul.mubr.bf16.gmra.mrb[0].mxu0 %v1552
        %v1602 = vpop.f32.mrb[0].mxu0
        %v1603 = vadd.f32 0.0, %v1602
        %v1604 = vpop.f32.mrb[0].mxu0
        %v1605 = vpop.f32.mrb[0].mxu0
        %v1606 = vadd.f32 0.0, %v1605
        %v1607 = vpop.f32.mrb[0].mxu0
        %1608 = vmatprep.mubr.bf16.mxu0 0
        %1609 = vmatmul.mubr.bf16.gmra.mrb[0].mxu0 %v1555
        %v1610 = vpop.f32.mrb[0].mxu0
        %v1611 = vadd.f32 0.0, %v1610
        %v1612 = vpop.f32.mrb[0].mxu0
        %v1613 = vpop.f32.mrb[0].mxu0
        %v1614 = vadd.f32 0.0, %v1613
        %v1615 = vpop.f32.mrb[0].mxu0
        %1616 = vmatprep.mubr.bf16.mxu0 0
        %1617 = vmatmul.mubr.bf16.gmra.mrb[0].mxu0 %v1558
        %v1618 = vpop.f32.mrb[0].mxu0
        %v1619 = vadd.f32 0.0, %v1618
        %v1620 = vpop.f32.mrb[0].mxu0
        %v1621 = vpop.f32.mrb[0].mxu0
        %v1622 = vadd.f32 0.0, %v1621
        %v1623 = vpop.f32.mrb[0].mxu0
        %1624 = vdwg.mxu0
        %v1625 = vadd.f32 %v1456, %v1595
        %v1626 = vadd.f32 %v1457, %v1598
        %v1627 = vadd.f32 %v1458, %v1603
        %v1628 = vadd.f32 %v1459, %v1606
        %v1629 = vadd.f32 %v1460, %v1611
        %v1630 = vadd.f32 %v1461, %v1614
        %v1631 = vadd.f32 %v1462, %v1619
        %v1632 = vadd.f32 %v1463, %v1622
        %s1633 = scalar_lea.vmem [#allocation2], 16
        %v1634 = vld [vmem:[%s1633] sm:$0xf]
        %v1635 = vld [vmem:[%s1633 + $0x8] sm:$0xf]
        %v1636 = vld [vmem:[%s1633 + $0x10] sm:$0xf]
        %v1637 = vld [vmem:[%s1633 + $0x18] sm:$0xf]
        %v1638 = vld [vmem:[%s1633 + $0x20] sm:$0xf]
        %v1639 = vld [vmem:[%s1633 + $0x28] sm:$0xf]
        %v1640 = vld [vmem:[%s1633 + $0x30] sm:$0xf]
        %v1641 = vld [vmem:[%s1633 + $0x38] sm:$0xf]
        %v1642 = vld [vmem:[%s1 + $0x60] sm:$0xf]
        %v1643 = vld [vmem:[%s1 + $0x64] sm:$0xf]
        %v1644 = vld [vmem:[%s1 + $0x68] sm:$0xf]
        %v1645 = vld [vmem:[%s1 + $0x6c] sm:$0xf]
        %v1654 = vunpack.c.l.b16 %v1634
        %v1655 = vunpack.c.l.b16 %v1635
        %v1656 = vunpack.c.l.b16 %v1636
        %v1657 = vunpack.c.l.b16 %v1637
        %v1658 = vunpack.c.l.b16 %v1638
        %v1659 = vunpack.c.l.b16 %v1639
        %v1660 = vunpack.c.l.b16 %v1640
        %v1661 = vunpack.c.l.b16 %v1641
        %v1662 = vpack.c.b16 %v1655, %v1654
        %v1663 = vpack.c.b16 %v1657, %v1656
        %v1664 = vpack.c.b16 %v1659, %v1658
        %v1665 = vpack.c.b16 %v1661, %v1660
        %v1670 = vunpack.c.l.b16 %v1642
        %v1671 = vunpack.c.l.b16 %v1643
        %v1672 = vunpack.c.l.b16 %v1644
        %v1673 = vunpack.c.l.b16 %v1645
        %v1674 = vpack.c.b16 %v1671, %v1670
        %v1675 = vpack.c.b16 %v1673, %v1672
        %v1679 = vsel %vm735, %v1662, 0
        %v1682 = vsel %vm735, %v1663, 0
        %v1685 = vsel %vm735, %v1664, 0
        %v1688 = vsel %vm735, %v1665, 0
        %1690 = vmatprep.subr.bf16.mxu0 0
        %1691 = vmatpush1.bf16.msra.mxu0 %v1674
        %1692 = vmatprep.subr.bf16.mxu0 0
        %1693 = vmatpush1.bf16.msra.mxu0 %v1675
        %1694 = vmatprep.subr.bf16.mxu0 0
        %1695 = vmatpush1.bf16.msra.mxu0 0
        %1696 = vmatprep.subr.bf16.mxu0 0
        %1697 = vmatpush1.bf16.msra.mxu0 0
        %1698 = vmatprep.subr.bf16.mxu0 0
        %1699 = vmatpush1.bf16.msra.mxu0 0
        %1700 = vmatprep.subr.bf16.mxu0 0
        %1701 = vmatpush1.bf16.msra.mxu0 0
        %1702 = vmatprep.subr.bf16.mxu0 0
        %1703 = vmatpush1.bf16.msra.mxu0 0
        %1704 = vmatprep.subr.bf16.mxu0 0
        %1705 = vmatpush1.bf16.msra.mxu0 0
        %1706 = vmatprep.subr.bf16.mxu0 0
        %1707 = vmatpush1.bf16.msra.mxu0 0
        %1708 = vmatprep.subr.bf16.mxu0 0
        %1709 = vmatpush1.bf16.msra.mxu0 0
        %1710 = vmatprep.subr.bf16.mxu0 0
        %1711 = vmatpush1.bf16.msra.mxu0 0
        %1712 = vmatprep.subr.bf16.mxu0 0
        %1713 = vmatpush1.bf16.msra.mxu0 0
        %1714 = vmatprep.subr.bf16.mxu0 0
        %1715 = vmatpush1.bf16.msra.mxu0 0
        %1716 = vmatprep.subr.bf16.mxu0 0
        %1717 = vmatpush1.bf16.msra.mxu0 0
        %1718 = vmatprep.subr.bf16.mxu0 0
        %1719 = vmatpush1.bf16.msra.mxu0 0
        %1720 = vmatprep.subr.bf16.mxu0 0
        %1721 = vmatpush1.bf16.msra.mxu0 0
        %1722 = vmatprep.mubr.bf16.mxu0 0
        %1723 = vmatmul.mubr.bf16.gmra.mrb[0].mxu0 %v1679
        %v1724 = vpop.f32.mrb[0].mxu0
        %v1725 = vadd.f32 0.0, %v1724
        %v1726 = vpop.f32.mrb[0].mxu0
        %v1727 = vpop.f32.mrb[0].mxu0
        %v1728 = vadd.f32 0.0, %v1727
        %v1729 = vpop.f32.mrb[0].mxu0
        %1730 = vmatprep.mubr.bf16.mxu0 0
        %1731 = vmatmul.mubr.bf16.gmra.mrb[0].mxu0 %v1682
        %v1732 = vpop.f32.mrb[0].mxu0
        %v1733 = vadd.f32 0.0, %v1732
        %v1734 = vpop.f32.mrb[0].mxu0
        %v1735 = vpop.f32.mrb[0].mxu0
        %v1736 = vadd.f32 0.0, %v1735
        %v1737 = vpop.f32.mrb[0].mxu0
        %1738 = vmatprep.mubr.bf16.mxu0 0
        %1739 = vmatmul.mubr.bf16.gmra.mrb[0].mxu0 %v1685
        %v1740 = vpop.f32.mrb[0].mxu0
        %v1741 = vadd.f32 0.0, %v1740
        %v1742 = vpop.f32.mrb[0].mxu0
        %v1743 = vpop.f32.mrb[0].mxu0
        %v1744 = vadd.f32 0.0, %v1743
        %v1745 = vpop.f32.mrb[0].mxu0
        %1746 = vmatprep.mubr.bf16.mxu0 0
        %1747 = vmatmul.mubr.bf16.gmra.mrb[0].mxu0 %v1688
        %v1748 = vpop.f32.mrb[0].mxu0
        %v1749 = vadd.f32 0.0, %v1748
        %v1750 = vpop.f32.mrb[0].mxu0
        %v1751 = vpop.f32.mrb[0].mxu0
        %v1752 = vadd.f32 0.0, %v1751
        %v1753 = vpop.f32.mrb[0].mxu0
        %1754 = vdwg.mxu0
        %v1755 = vadd.f32 %v1625, %v1725
        %v1756 = vadd.f32 %v1626, %v1728
        %v1757 = vadd.f32 %v1627, %v1733
        %v1758 = vadd.f32 %v1628, %v1736
        %v1759 = vadd.f32 %v1629, %v1741
        %v1760 = vadd.f32 %v1630, %v1744
        %v1761 = vadd.f32 %v1631, %v1749
        %v1762 = vadd.f32 %v1632, %v1752
        %v1763 = vld [vmem:[%s1633] sm:$0xf]
        %v1764 = vld [vmem:[%s1633 + $0x4] sm:$0x1]
        %v1765 = vld [vmem:[%s1633 + $0x8] sm:$0xf]
        %v1766 = vld [vmem:[%s1633 + $0xc] sm:$0x1]
        %v1767 = vld [vmem:[%s1633 + $0x10] sm:$0xf]
        %v1768 = vld [vmem:[%s1633 + $0x14] sm:$0x1]
        %v1769 = vld [vmem:[%s1633 + $0x18] sm:$0xf]
        %v1770 = vld [vmem:[%s1633 + $0x1c] sm:$0x1]
        %v1771 = vld [vmem:[%s1633 + $0x20] sm:$0xf]
        %v1772 = vld [vmem:[%s1633 + $0x24] sm:$0x1]
        %v1773 = vld [vmem:[%s1633 + $0x28] sm:$0xf]
        %v1774 = vld [vmem:[%s1633 + $0x2c] sm:$0x1]
        %v1775 = vld [vmem:[%s1633 + $0x30] sm:$0xf]
        %v1776 = vld [vmem:[%s1633 + $0x34] sm:$0x1]
        %v1777 = vld [vmem:[%s1633 + $0x38] sm:$0xf]
        %v1778 = vld [vmem:[%s1633 + $0x3c] sm:$0x1]
        %v1780 = vshrl.u32 %v1763, 16
        %v1782 = vrot.slane %v1780, 4
        %v1783 = vshll.u32 %v1763, 16
        %v1785 = vrot.slane %v1783, 5
        %v1786 = vor.u32 %v1782, %v1785
        %v1787 = vrot.slane %v1786, 4
        %v1789 = vshll.u32 %v1764, 16
        %v1791 = vrot.slane %v1789, 5
        %v1792 = vsel %vm594, %v1787, %v1791
        %v1794 = vshrl.u32 %v1765, 16
        %v1796 = vrot.slane %v1794, 4
        %v1797 = vshll.u32 %v1765, 16
        %v1799 = vrot.slane %v1797, 5
        %v1800 = vor.u32 %v1796, %v1799
        %v1801 = vrot.slane %v1800, 4
        %v1803 = vshll.u32 %v1766, 16
        %v1805 = vrot.slane %v1803, 5
        %v1806 = vsel %vm594, %v1801, %v1805
        %v1808 = vshrl.u32 %v1767, 16
        %v1810 = vrot.slane %v1808, 4
        %v1811 = vshll.u32 %v1767, 16
        %v1813 = vrot.slane %v1811, 5
        %v1814 = vor.u32 %v1810, %v1813
        %v1815 = vrot.slane %v1814, 4
        %v1817 = vshll.u32 %v1768, 16
        %v1819 = vrot.slane %v1817, 5
        %v1820 = vsel %vm594, %v1815, %v1819
        %v1822 = vshrl.u32 %v1769, 16
        %v1824 = vrot.slane %v1822, 4
        %v1825 = vshll.u32 %v1769, 16
        %v1827 = vrot.slane %v1825, 5
        %v1828 = vor.u32 %v1824, %v1827
        %v1829 = vrot.slane %v1828, 4
        %v1831 = vshll.u32 %v1770, 16
        %v1833 = vrot.slane %v1831, 5
        %v1834 = vsel %vm594, %v1829, %v1833
        %v1836 = vshrl.u32 %v1771, 16
        %v1838 = vrot.slane %v1836, 4
        %v1839 = vshll.u32 %v1771, 16
        %v1841 = vrot.slane %v1839, 5
        %v1842 = vor.u32 %v1838, %v1841
        %v1843 = vrot.slane %v1842, 4
        %v1845 = vshll.u32 %v1772, 16
        %v1847 = vrot.slane %v1845, 5
        %v1848 = vsel %vm594, %v1843, %v1847
        %v1850 = vshrl.u32 %v1773, 16
        %v1852 = vrot.slane %v1850, 4
        %v1853 = vshll.u32 %v1773, 16
        %v1855 = vrot.slane %v1853, 5
        %v1856 = vor.u32 %v1852, %v1855
        %v1857 = vrot.slane %v1856, 4
        %v1859 = vshll.u32 %v1774, 16
        %v1861 = vrot.slane %v1859, 5
        %v1862 = vsel %vm594, %v1857, %v1861
        %v1864 = vshrl.u32 %v1775, 16
        %v1866 = vrot.slane %v1864, 4
        %v1867 = vshll.u32 %v1775, 16
        %v1869 = vrot.slane %v1867, 5
        %v1870 = vor.u32 %v1866, %v1869
        %v1871 = vrot.slane %v1870, 4
        %v1873 = vshll.u32 %v1776, 16
        %v1875 = vrot.slane %v1873, 5
        %v1876 = vsel %vm594, %v1871, %v1875
        %v1878 = vshrl.u32 %v1777, 16
        %v1880 = vrot.slane %v1878, 4
        %v1881 = vshll.u32 %v1777, 16
        %v1883 = vrot.slane %v1881, 5
        %v1884 = vor.u32 %v1880, %v1883
        %v1885 = vrot.slane %v1884, 4
        %v1887 = vshll.u32 %v1778, 16
        %v1889 = vrot.slane %v1887, 5
        %v1890 = vsel %vm594, %v1885, %v1889
        %v1891 = vld [vmem:[%s1 + $0x70] sm:$0xf]
        %v1892 = vld [vmem:[%s1 + $0x74] sm:$0xf]
        %v1893 = vld [vmem:[%s1 + $0x78] sm:$0xf]
        %v1894 = vld [vmem:[%s1 + $0x7c] sm:$0xf]
        %v1895 = vunpack.c.l.b16 %v1792
        %v1896 = vunpack.c.l.b16 %v1806
        %v1897 = vunpack.c.l.b16 %v1820
        %v1898 = vunpack.c.l.b16 %v1834
        %v1899 = vunpack.c.l.b16 %v1848
        %v1900 = vunpack.c.l.b16 %v1862
        %v1901 = vunpack.c.l.b16 %v1876
        %v1902 = vunpack.c.l.b16 %v1890
        %v1903 = vpack.c.b16 %v1896, %v1895
        %v1904 = vpack.c.b16 %v1898, %v1897
        %v1905 = vpack.c.b16 %v1900, %v1899
        %v1906 = vpack.c.b16 %v1902, %v1901
        %v1911 = vunpack.c.l.b16 %v1891
        %v1912 = vunpack.c.l.b16 %v1892
        %v1913 = vunpack.c.l.b16 %v1893
        %v1914 = vunpack.c.l.b16 %v1894
        %v1915 = vpack.c.b16 %v1912, %v1911
        %v1916 = vpack.c.b16 %v1914, %v1913
        %v1920 = vsel %vm735, %v1903, 0
        %v1923 = vsel %vm735, %v1904, 0
        %v1926 = vsel %vm735, %v1905, 0
        %v1929 = vsel %vm735, %v1906, 0
        %1931 = vmatprep.subr.bf16.mxu0 0
        %1932 = vmatpush1.bf16.msra.mxu0 %v1915
        %1933 = vmatprep.subr.bf16.mxu0 0
        %1934 = vmatpush1.bf16.msra.mxu0 %v1916
        %1935 = vmatprep.subr.bf16.mxu0 0
        %1936 = vmatpush1.bf16.msra.mxu0 0
        %1937 = vmatprep.subr.bf16.mxu0 0
        %1938 = vmatpush1.bf16.msra.mxu0 0
        %1939 = vmatprep.subr.bf16.mxu0 0
        %1940 = vmatpush1.bf16.msra.mxu0 0
        %1941 = vmatprep.subr.bf16.mxu0 0
        %1942 = vmatpush1.bf16.msra.mxu0 0
        %1943 = vmatprep.subr.bf16.mxu0 0
        %1944 = vmatpush1.bf16.msra.mxu0 0
        %1945 = vmatprep.subr.bf16.mxu0 0
        %1946 = vmatpush1.bf16.msra.mxu0 0
        %1947 = vmatprep.subr.bf16.mxu0 0
        %1948 = vmatpush1.bf16.msra.mxu0 0
        %1949 = vmatprep.subr.bf16.mxu0 0
        %1950 = vmatpush1.bf16.msra.mxu0 0
        %1951 = vmatprep.subr.bf16.mxu0 0
        %1952 = vmatpush1.bf16.msra.mxu0 0
        %1953 = vmatprep.subr.bf16.mxu0 0
        %1954 = vmatpush1.bf16.msra.mxu0 0
        %1955 = vmatprep.subr.bf16.mxu0 0
        %1956 = vmatpush1.bf16.msra.mxu0 0
        %1957 = vmatprep.subr.bf16.mxu0 0
        %1958 = vmatpush1.bf16.msra.mxu0 0
        %1959 = vmatprep.subr.bf16.mxu0 0
        %1960 = vmatpush1.bf16.msra.mxu0 0
        %1961 = vmatprep.subr.bf16.mxu0 0
        %1962 = vmatpush1.bf16.msra.mxu0 0
        %1963 = vmatprep.mubr.bf16.mxu0 0
        %1964 = vmatmul.mubr.bf16.gmra.mrb[0].mxu0 %v1920
        %v1965 = vpop.f32.mrb[0].mxu0
        %v1966 = vadd.f32 0.0, %v1965
        %v1967 = vpop.f32.mrb[0].mxu0
        %v1968 = vpop.f32.mrb[0].mxu0
        %v1969 = vadd.f32 0.0, %v1968
        %v1970 = vpop.f32.mrb[0].mxu0
        %1971 = vmatprep.mubr.bf16.mxu0 0
        %1972 = vmatmul.mubr.bf16.gmra.mrb[0].mxu0 %v1923
        %v1973 = vpop.f32.mrb[0].mxu0
        %v1974 = vadd.f32 0.0, %v1973
        %v1975 = vpop.f32.mrb[0].mxu0
        %v1976 = vpop.f32.mrb[0].mxu0
        %v1977 = vadd.f32 0.0, %v1976
        %v1978 = vpop.f32.mrb[0].mxu0
        %1979 = vmatprep.mubr.bf16.mxu0 0
        %1980 = vmatmul.mubr.bf16.gmra.mrb[0].mxu0 %v1926
        %v1981 = vpop.f32.mrb[0].mxu0
        %v1982 = vadd.f32 0.0, %v1981
        %v1983 = vpop.f32.mrb[0].mxu0
        %v1984 = vpop.f32.mrb[0].mxu0
        %v1985 = vadd.f32 0.0, %v1984
        %v1986 = vpop.f32.mrb[0].mxu0
        %1987 = vmatprep.mubr.bf16.mxu0 0
        %1988 = vmatmul.mubr.bf16.gmra.mrb[0].mxu0 %v1929
        %v1989 = vpop.f32.mrb[0].mxu0
        %v1990 = vadd.f32 0.0, %v1989
        %v1991 = vpop.f32.mrb[0].mxu0
        %v1992 = vpop.f32.mrb[0].mxu0
        %v1993 = vadd.f32 0.0, %v1992
        %v1994 = vpop.f32.mrb[0].mxu0
        %1995 = vdwg.mxu0
        %v1996 = vadd.f32 %v1755, %v1966
        %v1997 = vadd.f32 %v1756, %v1969
        %v1998 = vadd.f32 %v1757, %v1974
        %v1999 = vadd.f32 %v1758, %v1977
        %v2000 = vadd.f32 %v1759, %v1982
        %v2001 = vadd.f32 %v1760, %v1985
        %v2002 = vadd.f32 %v1761, %v1990
        %v2003 = vadd.f32 %v1762, %v1993
        %v2004 = vld [vmem:[%s1633] sm:$0xe]
        %v2005 = vld [vmem:[%s1633 + $0x8] sm:$0xe]
        %v2006 = vld [vmem:[%s1633 + $0x10] sm:$0xe]
        %v2007 = vld [vmem:[%s1633 + $0x18] sm:$0xe]
        %v2008 = vld [vmem:[%s1633 + $0x20] sm:$0xe]
        %v2009 = vld [vmem:[%s1633 + $0x28] sm:$0xe]
        %v2010 = vld [vmem:[%s1633 + $0x30] sm:$0xe]
        %v2011 = vld [vmem:[%s1633 + $0x38] sm:$0xe]
        %v2028 = vrot.slane %v2004, 5
        %v2029 = vrot.slane %v2028, 4
        %v2030 = vrot.slane %v1764, 5
        %v2031 = vsel %vm948, %v2029, %v2030
        %v2032 = vrot.slane %v2005, 5
        %v2033 = vrot.slane %v2032, 4
        %v2034 = vrot.slane %v1766, 5
        %v2035 = vsel %vm948, %v2033, %v2034
        %v2036 = vrot.slane %v2006, 5
        %v2037 = vrot.slane %v2036, 4
        %v2038 = vrot.slane %v1768, 5
        %v2039 = vsel %vm948, %v2037, %v2038
        %v2040 = vrot.slane %v2007, 5
        %v2041 = vrot.slane %v2040, 4
        %v2042 = vrot.slane %v1770, 5
        %v2043 = vsel %vm948, %v2041, %v2042
        %v2044 = vrot.slane %v2008, 5
        %v2045 = vrot.slane %v2044, 4
        %v2046 = vrot.slane %v1772, 5
        %v2047 = vsel %vm948, %v2045, %v2046
        %v2048 = vrot.slane %v2009, 5
        %v2049 = vrot.slane %v2048, 4
        %v2050 = vrot.slane %v1774, 5
        %v2051 = vsel %vm948, %v2049, %v2050
        %v2052 = vrot.slane %v2010, 5
        %v2053 = vrot.slane %v2052, 4
        %v2054 = vrot.slane %v1776, 5
        %v2055 = vsel %vm948, %v2053, %v2054
        %v2056 = vrot.slane %v2011, 5
        %v2057 = vrot.slane %v2056, 4
        %v2058 = vrot.slane %v1778, 5
        %v2059 = vsel %vm948, %v2057, %v2058
        %v2060 = vld [vmem:[%s1 + $0x80] sm:$0xf]
        %v2061 = vld [vmem:[%s1 + $0x84] sm:$0xf]
        %v2062 = vld [vmem:[%s1 + $0x88] sm:$0xf]
        %v2063 = vld [vmem:[%s1 + $0x8c] sm:$0xf]
        %v2064 = vunpack.c.l.b16 %v2031
        %v2065 = vunpack.c.l.b16 %v2035
        %v2066 = vunpack.c.l.b16 %v2039
        %v2067 = vunpack.c.l.b16 %v2043
        %v2068 = vunpack.c.l.b16 %v2047
        %v2069 = vunpack.c.l.b16 %v2051
        %v2070 = vunpack.c.l.b16 %v2055
        %v2071 = vunpack.c.l.b16 %v2059
        %v2072 = vpack.c.b16 %v2065, %v2064
        %v2073 = vpack.c.b16 %v2067, %v2066
        %v2074 = vpack.c.b16 %v2069, %v2068
        %v2075 = vpack.c.b16 %v2071, %v2070
        %v2080 = vunpack.c.l.b16 %v2060
        %v2081 = vunpack.c.l.b16 %v2061
        %v2082 = vunpack.c.l.b16 %v2062
        %v2083 = vunpack.c.l.b16 %v2063
        %v2084 = vpack.c.b16 %v2081, %v2080
        %v2085 = vpack.c.b16 %v2083, %v2082
        %v2089 = vsel %vm735, %v2072, 0
        %v2092 = vsel %vm735, %v2073, 0
        %v2095 = vsel %vm735, %v2074, 0
        %v2098 = vsel %vm735, %v2075, 0
        %2100 = vmatprep.subr.bf16.mxu0 0
        %2101 = vmatpush1.bf16.msra.mxu0 %v2084
        %2102 = vmatprep.subr.bf16.mxu0 0
        %2103 = vmatpush1.bf16.msra.mxu0 %v2085
        %2104 = vmatprep.subr.bf16.mxu0 0
        %2105 = vmatpush1.bf16.msra.mxu0 0
        %2106 = vmatprep.subr.bf16.mxu0 0
        %2107 = vmatpush1.bf16.msra.mxu0 0
        %2108 = vmatprep.subr.bf16.mxu0 0
        %2109 = vmatpush1.bf16.msra.mxu0 0
        %2110 = vmatprep.subr.bf16.mxu0 0
        %2111 = vmatpush1.bf16.msra.mxu0 0
        %2112 = vmatprep.subr.bf16.mxu0 0
        %2113 = vmatpush1.bf16.msra.mxu0 0
        %2114 = vmatprep.subr.bf16.mxu0 0
        %2115 = vmatpush1.bf16.msra.mxu0 0
        %2116 = vmatprep.subr.bf16.mxu0 0
        %2117 = vmatpush1.bf16.msra.mxu0 0
        %2118 = vmatprep.subr.bf16.mxu0 0
        %2119 = vmatpush1.bf16.msra.mxu0 0
        %2120 = vmatprep.subr.bf16.mxu0 0
        %2121 = vmatpush1.bf16.msra.mxu0 0
        %2122 = vmatprep.subr.bf16.mxu0 0
        %2123 = vmatpush1.bf16.msra.mxu0 0
        %2124 = vmatprep.subr.bf16.mxu0 0
        %2125 = vmatpush1.bf16.msra.mxu0 0
        %2126 = vmatprep.subr.bf16.mxu0 0
        %2127 = vmatpush1.bf16.msra.mxu0 0
        %2128 = vmatprep.subr.bf16.mxu0 0
        %2129 = vmatpush1.bf16.msra.mxu0 0
        %2130 = vmatprep.subr.bf16.mxu0 0
        %2131 = vmatpush1.bf16.msra.mxu0 0
        %2132 = vmatprep.mubr.bf16.mxu0 0
        %2133 = vmatmul.mubr.bf16.gmra.mrb[0].mxu0 %v2089
        %v2134 = vpop.f32.mrb[0].mxu0
        %v2135 = vadd.f32 0.0, %v2134
        %v2136 = vpop.f32.mrb[0].mxu0
        %v2137 = vpop.f32.mrb[0].mxu0
        %v2138 = vadd.f32 0.0, %v2137
        %v2139 = vpop.f32.mrb[0].mxu0
        %2140 = vmatprep.mubr.bf16.mxu0 0
        %2141 = vmatmul.mubr.bf16.gmra.mrb[0].mxu0 %v2092
        %v2142 = vpop.f32.mrb[0].mxu0
        %v2143 = vadd.f32 0.0, %v2142
        %v2144 = vpop.f32.mrb[0].mxu0
        %v2145 = vpop.f32.mrb[0].mxu0
        %v2146 = vadd.f32 0.0, %v2145
        %v2147 = vpop.f32.mrb[0].mxu0
        %2148 = vmatprep.mubr.bf16.mxu0 0
        %2149 = vmatmul.mubr.bf16.gmra.mrb[0].mxu0 %v2095
        %v2150 = vpop.f32.mrb[0].mxu0
        %v2151 = vadd.f32 0.0, %v2150
        %v2152 = vpop.f32.mrb[0].mxu0
        %v2153 = vpop.f32.mrb[0].mxu0
        %v2154 = vadd.f32 0.0, %v2153
        %v2155 = vpop.f32.mrb[0].mxu0
        %2156 = vmatprep.mubr.bf16.mxu0 0
        %2157 = vmatmul.mubr.bf16.gmra.mrb[0].mxu0 %v2098
        %v2158 = vpop.f32.mrb[0].mxu0
        %v2159 = vadd.f32 0.0, %v2158
        %v2160 = vpop.f32.mrb[0].mxu0
        %v2161 = vpop.f32.mrb[0].mxu0
        %v2162 = vadd.f32 0.0, %v2161
        %v2163 = vpop.f32.mrb[0].mxu0
        %2164 = vdwg.mxu0
        %v2165 = vadd.f32 %v1996, %v2135
        %v2166 = vadd.f32 %v1997, %v2138
        %v2167 = vadd.f32 %v1998, %v2143
        %v2168 = vadd.f32 %v1999, %v2146
        %v2169 = vadd.f32 %v2000, %v2151
        %v2170 = vadd.f32 %v2001, %v2154
        %v2171 = vadd.f32 %v2002, %v2159
        %v2172 = vadd.f32 %v2003, %v2162
        %v2173 = vlaneseq
        %v2174 = vshrl.u32 %v2173, 7
        %v2175 = vsub.s32 0, %v2174
        %v2176 = vrot.slane %v571, %v2175
        %v2177 = vadd.f32 %v2165, %v2176
        %v2178 = vadd.f32 %v2166, %v2176
        %v2179 = vadd.f32 %v2167, %v2176
        %v2180 = vadd.f32 %v2168, %v2176
        %v2181 = vadd.f32 %v2169, %v2176
        %v2182 = vadd.f32 %v2170, %v2176
        %v2183 = vadd.f32 %v2171, %v2176
        %v2184 = vadd.f32 %v2172, %v2176
        %v2185 = vmax.f32 %v2177, 0.0
        %v2186 = vmax.f32 %v2178, 0.0
        %v2187 = vmax.f32 %v2179, 0.0
        %v2188 = vmax.f32 %v2180, 0.0
        %v2189 = vmax.f32 %v2181, 0.0
        %v2190 = vmax.f32 %v2182, 0.0
        %v2191 = vmax.f32 %v2183, 0.0
        %v2192 = vmax.f32 %v2184, 0.0
        %v2193 = vpack.c.bf16 %v2185, %v2185
        %v2194 = vpack.c.bf16 %v2186, %v2186
        %v2195 = vpack.c.bf16 %v2187, %v2187
        %v2196 = vpack.c.bf16 %v2188, %v2188
        %v2197 = vpack.c.bf16 %v2189, %v2189
        %v2198 = vpack.c.bf16 %v2190, %v2190
        %v2199 = vpack.c.bf16 %v2191, %v2191
        %v2200 = vpack.c.bf16 %v2192, %v2192
        %v2209 = vunpack.c.l.b16 %v2193
        %v2210 = vunpack.c.l.b16 %v2194
        %v2211 = vunpack.c.l.b16 %v2195
        %v2212 = vunpack.c.l.b16 %v2196
        %v2213 = vunpack.c.l.b16 %v2197
        %v2214 = vunpack.c.l.b16 %v2198
        %v2215 = vunpack.c.l.b16 %v2199
        %v2216 = vunpack.c.l.b16 %v2200
        %v2217 = vpack.c.b16 %v2209, %v2209
        %v2218 = vpack.c.b16 %v2210, %v2210
        %v2219 = vpack.c.b16 %v2211, %v2211
        %v2220 = vpack.c.b16 %v2212, %v2212
        %v2221 = vpack.c.b16 %v2213, %v2213
        %v2222 = vpack.c.b16 %v2214, %v2214
        %v2223 = vpack.c.b16 %v2215, %v2215
        %v2224 = vpack.c.b16 %v2216, %v2216
        %v2226 = vshrl.u32 %v2217, 16
        %v2228 = vrot.slane %v2226, 7
        %v2229 = vshll.u32 %v2217, 16
        %v2231 = vor.u32 %v2228, %v2229
        %v2232 = vrot.slane %v2228, 4
        %v2234 = vshrl.u32 %v2218, 16
        %v2236 = vrot.slane %v2234, 7
        %v2237 = vshll.u32 %v2218, 16
        %v2239 = vor.u32 %v2236, %v2237
        %v2240 = vrot.slane %v2236, 4
        %v2242 = vshrl.u32 %v2219, 16
        %v2244 = vrot.slane %v2242, 7
        %v2245 = vshll.u32 %v2219, 16
        %v2247 = vor.u32 %v2244, %v2245
        %v2248 = vrot.slane %v2244, 4
        %v2250 = vshrl.u32 %v2220, 16
        %v2252 = vrot.slane %v2250, 7
        %v2253 = vshll.u32 %v2220, 16
        %v2255 = vor.u32 %v2252, %v2253
        %v2256 = vrot.slane %v2252, 4
        %v2258 = vshrl.u32 %v2221, 16
        %v2260 = vrot.slane %v2258, 7
        %v2261 = vshll.u32 %v2221, 16
        %v2263 = vor.u32 %v2260, %v2261
        %v2264 = vrot.slane %v2260, 4
        %v2266 = vshrl.u32 %v2222, 16
        %v2268 = vrot.slane %v2266, 7
        %v2269 = vshll.u32 %v2222, 16
        %v2271 = vor.u32 %v2268, %v2269
        %v2272 = vrot.slane %v2268, 4
        %v2274 = vshrl.u32 %v2223, 16
        %v2276 = vrot.slane %v2274, 7
        %v2277 = vshll.u32 %v2223, 16
        %v2279 = vor.u32 %v2276, %v2277
        %v2280 = vrot.slane %v2276, 4
        %v2282 = vshrl.u32 %v2224, 16
        %v2284 = vrot.slane %v2282, 7
        %v2285 = vshll.u32 %v2224, 16
        %v2287 = vor.u32 %v2284, %v2285
        %v2288 = vrot.slane %v2284, 4
        %s2305 = scalar_lea.vmem [#allocation2], 88
        %v2306 = vld [vmem:[%s2305] sm:$0xf]
        %v2307 = vsel %vm522, %v2231, %v2306
        %2308 = vst [vmem:[%s2305] sm:$0xf] %v2307
        %v2309 = vld [vmem:[%s2305 + $0x4] sm:$0x1]
        %v2310 = vsel %vm271, %v2232, %v2309
        %2311 = vst [vmem:[%s2305 + $0x4] sm:$0x1] %v2310
        %v2312 = vld [vmem:[%s2305 + $0x8] sm:$0xf]
        %v2313 = vsel %vm522, %v2239, %v2312
        %2314 = vst [vmem:[%s2305 + $0x8] sm:$0xf] %v2313
        %v2315 = vld [vmem:[%s2305 + $0xc] sm:$0x1]
        %v2316 = vsel %vm271, %v2240, %v2315
        %2317 = vst [vmem:[%s2305 + $0xc] sm:$0x1] %v2316
        %v2318 = vld [vmem:[%s2305 + $0x10] sm:$0xf]
        %v2319 = vsel %vm522, %v2247, %v2318
        %2320 = vst [vmem:[%s2305 + $0x10] sm:$0xf] %v2319
        %v2321 = vld [vmem:[%s2305 + $0x14] sm:$0x1]
        %v2322 = vsel %vm271, %v2248, %v2321
        %2323 = vst [vmem:[%s2305 + $0x14] sm:$0x1] %v2322
        %v2324 = vld [vmem:[%s2305 + $0x18] sm:$0xf]
        %v2325 = vsel %vm522, %v2255, %v2324
        %2326 = vst [vmem:[%s2305 + $0x18] sm:$0xf] %v2325
        %v2327 = vld [vmem:[%s2305 + $0x1c] sm:$0x1]
        %v2328 = vsel %vm271, %v2256, %v2327
        %2329 = vst [vmem:[%s2305 + $0x1c] sm:$0x1] %v2328
        %v2330 = vld [vmem:[%s2305 + $0x20] sm:$0xf]
        %v2331 = vsel %vm522, %v2263, %v2330
        %2332 = vst [vmem:[%s2305 + $0x20] sm:$0xf] %v2331
        %v2333 = vld [vmem:[%s2305 + $0x24] sm:$0x1]
        %v2334 = vsel %vm271, %v2264, %v2333
        %2335 = vst [vmem:[%s2305 + $0x24] sm:$0x1] %v2334
        %v2336 = vld [vmem:[%s2305 + $0x28] sm:$0xf]
        %v2337 = vsel %vm522, %v2271, %v2336
        %2338 = vst [vmem:[%s2305 + $0x28] sm:$0xf] %v2337
        %v2339 = vld [vmem:[%s2305 + $0x2c] sm:$0x1]
        %v2340 = vsel %vm271, %v2272, %v2339
        %2341 = vst [vmem:[%s2305 + $0x2c] sm:$0x1] %v2340
        %v2342 = vld [vmem:[%s2305 + $0x30] sm:$0xf]
        %v2343 = vsel %vm522, %v2279, %v2342
        %2344 = vst [vmem:[%s2305 + $0x30] sm:$0xf] %v2343
        %v2345 = vld [vmem:[%s2305 + $0x34] sm:$0x1]
        %v2346 = vsel %vm271, %v2280, %v2345
        %2347 = vst [vmem:[%s2305 + $0x34] sm:$0x1] %v2346
        %v2348 = vld [vmem:[%s2305 + $0x38] sm:$0xf]
        %v2349 = vsel %vm522, %v2287, %v2348
        %2350 = vst [vmem:[%s2305 + $0x38] sm:$0xf] %v2349
        %v2351 = vld [vmem:[%s2305 + $0x3c] sm:$0x1]
        %v2352 = vsel %vm271, %v2288, %v2351
        %2353 = vst [vmem:[%s2305 + $0x3c] sm:$0x1] %v2352
        %v2354 = vld [vmem:[%s2 + $0x1] sm:$0x1]
        %v2355 = vld [vmem:[%s334] sm:$0xf]
        %v2356 = vld [vmem:[%s334 + $0x8] sm:$0xf]
        %v2357 = vld [vmem:[%s334 + $0x10] sm:$0xf]
        %v2358 = vld [vmem:[%s334 + $0x18] sm:$0xf]
        %v2359 = vld [vmem:[%s334 + $0x20] sm:$0xf]
        %v2360 = vld [vmem:[%s334 + $0x28] sm:$0xf]
        %v2361 = vld [vmem:[%s334 + $0x30] sm:$0xf]
        %v2362 = vld [vmem:[%s334 + $0x38] sm:$0xf]
        %s2363 = scalar_lea.vmem %s1, 144
        %v2364 = vld [vmem:[%s2363] sm:$0xf]
        %v2365 = vld [vmem:[%s2363 + $0x4] sm:$0xf]
        %v2366 = vld [vmem:[%s2363 + $0x8] sm:$0xf]
        %v2367 = vld [vmem:[%s2363 + $0xc] sm:$0xf]
        %v2368 = vld [vmem:[%s334 + $0x4] sm:$0x1]
        %v2369 = vld [vmem:[%s334 + $0xc] sm:$0x1]
        %v2370 = vld [vmem:[%s334 + $0x14] sm:$0x1]
        %v2371 = vld [vmem:[%s334 + $0x1c] sm:$0x1]
        %v2372 = vld [vmem:[%s334 + $0x24] sm:$0x1]
        %v2373 = vld [vmem:[%s334 + $0x2c] sm:$0x1]
        %v2374 = vld [vmem:[%s334 + $0x34] sm:$0x1]
        %v2375 = vld [vmem:[%s334 + $0x3c] sm:$0x1]
        %v2377 = vshrl.u32 %v2355, 16
        %v2379 = vrot.slane %v2377, 4
        %v2380 = vshll.u32 %v2355, 16
        %v2382 = vrot.slane %v2380, 5
        %v2383 = vor.u32 %v2379, %v2382
        %v2384 = vrot.slane %v2383, 4
        %v2386 = vshll.u32 %v2368, 16
        %v2388 = vrot.slane %v2386, 5
        %v2389 = vsel %vm594, %v2384, %v2388
        %v2391 = vshrl.u32 %v2356, 16
        %v2393 = vrot.slane %v2391, 4
        %v2394 = vshll.u32 %v2356, 16
        %v2396 = vrot.slane %v2394, 5
        %v2397 = vor.u32 %v2393, %v2396
        %v2398 = vrot.slane %v2397, 4
        %v2400 = vshll.u32 %v2369, 16
        %v2402 = vrot.slane %v2400, 5
        %v2403 = vsel %vm594, %v2398, %v2402
        %v2405 = vshrl.u32 %v2357, 16
        %v2407 = vrot.slane %v2405, 4
        %v2408 = vshll.u32 %v2357, 16
        %v2410 = vrot.slane %v2408, 5
        %v2411 = vor.u32 %v2407, %v2410
        %v2412 = vrot.slane %v2411, 4
        %v2414 = vshll.u32 %v2370, 16
        %v2416 = vrot.slane %v2414, 5
        %v2417 = vsel %vm594, %v2412, %v2416
        %v2419 = vshrl.u32 %v2358, 16
        %v2421 = vrot.slane %v2419, 4
        %v2422 = vshll.u32 %v2358, 16
        %v2424 = vrot.slane %v2422, 5
        %v2425 = vor.u32 %v2421, %v2424
        %v2426 = vrot.slane %v2425, 4
        %v2428 = vshll.u32 %v2371, 16
        %v2430 = vrot.slane %v2428, 5
        %v2431 = vsel %vm594, %v2426, %v2430
        %v2433 = vshrl.u32 %v2359, 16
        %v2435 = vrot.slane %v2433, 4
        %v2436 = vshll.u32 %v2359, 16
        %v2438 = vrot.slane %v2436, 5
        %v2439 = vor.u32 %v2435, %v2438
        %v2440 = vrot.slane %v2439, 4
        %v2442 = vshll.u32 %v2372, 16
        %v2444 = vrot.slane %v2442, 5
        %v2445 = vsel %vm594, %v2440, %v2444
        %v2447 = vshrl.u32 %v2360, 16
        %v2449 = vrot.slane %v2447, 4
        %v2450 = vshll.u32 %v2360, 16
        %v2452 = vrot.slane %v2450, 5
        %v2453 = vor.u32 %v2449, %v2452
        %v2454 = vrot.slane %v2453, 4
        %v2456 = vshll.u32 %v2373, 16
        %v2458 = vrot.slane %v2456, 5
        %v2459 = vsel %vm594, %v2454, %v2458
        %v2461 = vshrl.u32 %v2361, 16
        %v2463 = vrot.slane %v2461, 4
        %v2464 = vshll.u32 %v2361, 16
        %v2466 = vrot.slane %v2464, 5
        %v2467 = vor.u32 %v2463, %v2466
        %v2468 = vrot.slane %v2467, 4
        %v2470 = vshll.u32 %v2374, 16
        %v2472 = vrot.slane %v2470, 5
        %v2473 = vsel %vm594, %v2468, %v2472
        %v2475 = vshrl.u32 %v2362, 16
        %v2477 = vrot.slane %v2475, 4
        %v2478 = vshll.u32 %v2362, 16
        %v2480 = vrot.slane %v2478, 5
        %v2481 = vor.u32 %v2477, %v2480
        %v2482 = vrot.slane %v2481, 4
        %v2484 = vshll.u32 %v2375, 16
        %v2486 = vrot.slane %v2484, 5
        %v2487 = vsel %vm594, %v2482, %v2486
        %v2488 = vld [vmem:[%s2363 + $0x10] sm:$0xf]
        %v2489 = vld [vmem:[%s2363 + $0x14] sm:$0xf]
        %v2490 = vld [vmem:[%s2363 + $0x18] sm:$0xf]
        %v2491 = vld [vmem:[%s2363 + $0x1c] sm:$0xf]
        %v2492 = vunpack.c.l.b16 %v2389
        %v2493 = vunpack.c.l.b16 %v2403
        %v2494 = vunpack.c.l.b16 %v2417
        %v2495 = vunpack.c.l.b16 %v2431
        %v2496 = vunpack.c.l.b16 %v2445
        %v2497 = vunpack.c.l.b16 %v2459
        %v2498 = vunpack.c.l.b16 %v2473
        %v2499 = vunpack.c.l.b16 %v2487
        %v2500 = vpack.c.b16 %v2493, %v2492
        %v2501 = vpack.c.b16 %v2495, %v2494
        %v2502 = vpack.c.b16 %v2497, %v2496
        %v2503 = vpack.c.b16 %v2499, %v2498
        %v2508 = vunpack.c.l.b16 %v2488
        %v2509 = vunpack.c.l.b16 %v2489
        %v2510 = vunpack.c.l.b16 %v2490
        %v2511 = vunpack.c.l.b16 %v2491
        %v2512 = vpack.c.b16 %v2509, %v2508
        %v2513 = vpack.c.b16 %v2511, %v2510
        %v2517 = vsel %vm735, %v2500, 0
        %v2520 = vsel %vm735, %v2501, 0
        %v2523 = vsel %vm735, %v2502, 0
        %v2526 = vsel %vm735, %v2503, 0
        %2528 = vmatprep.subr.bf16.mxu0 0
        %2529 = vmatpush1.bf16.msra.mxu0 %v2512
        %2530 = vmatprep.subr.bf16.mxu0 0
        %2531 = vmatpush1.bf16.msra.mxu0 %v2513
        %2532 = vmatprep.subr.bf16.mxu0 0
        %2533 = vmatpush1.bf16.msra.mxu0 0
        %2534 = vmatprep.subr.bf16.mxu0 0
        %2535 = vmatpush1.bf16.msra.mxu0 0
        %2536 = vmatprep.subr.bf16.mxu0 0
        %2537 = vmatpush1.bf16.msra.mxu0 0
        %2538 = vmatprep.subr.bf16.mxu0 0
        %2539 = vmatpush1.bf16.msra.mxu0 0
        %2540 = vmatprep.subr.bf16.mxu0 0
        %2541 = vmatpush1.bf16.msra.mxu0 0
        %2542 = vmatprep.subr.bf16.mxu0 0
        %2543 = vmatpush1.bf16.msra.mxu0 0
        %2544 = vmatprep.subr.bf16.mxu0 0
        %2545 = vmatpush1.bf16.msra.mxu0 0
        %2546 = vmatprep.subr.bf16.mxu0 0
        %2547 = vmatpush1.bf16.msra.mxu0 0
        %2548 = vmatprep.subr.bf16.mxu0 0
        %2549 = vmatpush1.bf16.msra.mxu0 0
        %2550 = vmatprep.subr.bf16.mxu0 0
        %2551 = vmatpush1.bf16.msra.mxu0 0
        %2552 = vmatprep.subr.bf16.mxu0 0
        %2553 = vmatpush1.bf16.msra.mxu0 0
        %2554 = vmatprep.subr.bf16.mxu0 0
        %2555 = vmatpush1.bf16.msra.mxu0 0
        %2556 = vmatprep.subr.bf16.mxu0 0
        %2557 = vmatpush1.bf16.msra.mxu0 0
        %2558 = vmatprep.subr.bf16.mxu0 0
        %2559 = vmatpush1.bf16.msra.mxu0 0
        %2560 = vmatprep.mubr.bf16.mxu0 0
        %2561 = vmatmul.mubr.bf16.gmra.mrb[0].mxu0 %v2517
        %v2562 = vpop.f32.mrb[0].mxu0
        %v2563 = vadd.f32 0.0, %v2562
        %v2564 = vpop.f32.mrb[0].mxu0
        %v2565 = vpop.f32.mrb[0].mxu0
        %v2566 = vadd.f32 0.0, %v2565
        %v2567 = vpop.f32.mrb[0].mxu0
        %2568 = vmatprep.mubr.bf16.mxu0 0
        %2569 = vmatmul.mubr.bf16.gmra.mrb[0].mxu0 %v2520
        %v2570 = vpop.f32.mrb[0].mxu0
        %v2571 = vadd.f32 0.0, %v2570
        %v2572 = vpop.f32.mrb[0].mxu0
        %v2573 = vpop.f32.mrb[0].mxu0
        %v2574 = vadd.f32 0.0, %v2573
        %v2575 = vpop.f32.mrb[0].mxu0
        %2576 = vmatprep.mubr.bf16.mxu0 0
        %2577 = vmatmul.mubr.bf16.gmra.mrb[0].mxu0 %v2523
        %v2578 = vpop.f32.mrb[0].mxu0
        %v2579 = vadd.f32 0.0, %v2578
        %v2580 = vpop.f32.mrb[0].mxu0
        %v2581 = vpop.f32.mrb[0].mxu0
        %v2582 = vadd.f32 0.0, %v2581
        %v2583 = vpop.f32.mrb[0].mxu0
        %2584 = vmatprep.mubr.bf16.mxu0 0
        %2585 = vmatmul.mubr.bf16.gmra.mrb[0].mxu0 %v2526
        %v2586 = vpop.f32.mrb[0].mxu0
        %v2587 = vadd.f32 0.0, %v2586
        %v2588 = vpop.f32.mrb[0].mxu0
        %v2589 = vpop.f32.mrb[0].mxu0
        %v2590 = vadd.f32 0.0, %v2589
        %v2591 = vpop.f32.mrb[0].mxu0
        %2592 = vdwg.mxu0
        %v2601 = vunpack.c.l.b16 %v2355
        %v2602 = vunpack.c.l.b16 %v2356
        %v2603 = vunpack.c.l.b16 %v2357
        %v2604 = vunpack.c.l.b16 %v2358
        %v2605 = vunpack.c.l.b16 %v2359
        %v2606 = vunpack.c.l.b16 %v2360
        %v2607 = vunpack.c.l.b16 %v2361
        %v2608 = vunpack.c.l.b16 %v2362
        %v2609 = vpack.c.b16 %v2602, %v2601
        %v2610 = vpack.c.b16 %v2604, %v2603
        %v2611 = vpack.c.b16 %v2606, %v2605
        %v2612 = vpack.c.b16 %v2608, %v2607
        %v2617 = vunpack.c.l.b16 %v2364
        %v2618 = vunpack.c.l.b16 %v2365
        %v2619 = vunpack.c.l.b16 %v2366
        %v2620 = vunpack.c.l.b16 %v2367
        %v2621 = vpack.c.b16 %v2618, %v2617
        %v2622 = vpack.c.b16 %v2620, %v2619
        %v2626 = vsel %vm735, %v2609, 0
        %v2629 = vsel %vm735, %v2610, 0
        %v2632 = vsel %vm735, %v2611, 0
        %v2635 = vsel %vm735, %v2612, 0
        %2637 = vmatprep.subr.bf16.mxu0 0
        %2638 = vmatpush1.bf16.msra.mxu0 %v2621
        %2639 = vmatprep.subr.bf16.mxu0 0
        %2640 = vmatpush1.bf16.msra.mxu0 %v2622
        %2641 = vmatprep.subr.bf16.mxu0 0
        %2642 = vmatpush1.bf16.msra.mxu0 0
        %2643 = vmatprep.subr.bf16.mxu0 0
        %2644 = vmatpush1.bf16.msra.mxu0 0
        %2645 = vmatprep.subr.bf16.mxu0 0
        %2646 = vmatpush1.bf16.msra.mxu0 0
        %2647 = vmatprep.subr.bf16.mxu0 0
        %2648 = vmatpush1.bf16.msra.mxu0 0
        %2649 = vmatprep.subr.bf16.mxu0 0
        %2650 = vmatpush1.bf16.msra.mxu0 0
        %2651 = vmatprep.subr.bf16.mxu0 0
        %2652 = vmatpush1.bf16.msra.mxu0 0
        %2653 = vmatprep.subr.bf16.mxu0 0
        %2654 = vmatpush1.bf16.msra.mxu0 0
        %2655 = vmatprep.subr.bf16.mxu0 0
        %2656 = vmatpush1.bf16.msra.mxu0 0
        %2657 = vmatprep.subr.bf16.mxu0 0
        %2658 = vmatpush1.bf16.msra.mxu0 0
        %2659 = vmatprep.subr.bf16.mxu0 0
        %2660 = vmatpush1.bf16.msra.mxu0 0
        %2661 = vmatprep.subr.bf16.mxu0 0
        %2662 = vmatpush1.bf16.msra.mxu0 0
        %2663 = vmatprep.subr.bf16.mxu0 0
        %2664 = vmatpush1.bf16.msra.mxu0 0
        %2665 = vmatprep.subr.bf16.mxu0 0
        %2666 = vmatpush1.bf16.msra.mxu0 0
        %2667 = vmatprep.subr.bf16.mxu0 0
        %2668 = vmatpush1.bf16.msra.mxu0 0
        %2669 = vmatprep.mubr.bf16.mxu0 0
        %2670 = vmatmul.mubr.bf16.gmra.mrb[0].mxu0 %v2626
        %v2671 = vpop.f32.mrb[0].mxu0
        %v2672 = vadd.f32 %v2563, %v2671
        %v2673 = vpop.f32.mrb[0].mxu0
        %v2674 = vpop.f32.mrb[0].mxu0
        %v2675 = vadd.f32 %v2566, %v2674
        %v2676 = vpop.f32.mrb[0].mxu0
        %2677 = vmatprep.mubr.bf16.mxu0 0
        %2678 = vmatmul.mubr.bf16.gmra.mrb[0].mxu0 %v2629
        %v2679 = vpop.f32.mrb[0].mxu0
        %v2680 = vadd.f32 %v2571, %v2679
        %v2681 = vpop.f32.mrb[0].mxu0
        %v2682 = vpop.f32.mrb[0].mxu0
        %v2683 = vadd.f32 %v2574, %v2682
        %v2684 = vpop.f32.mrb[0].mxu0
        %2685 = vmatprep.mubr.bf16.mxu0 0
        %2686 = vmatmul.mubr.bf16.gmra.mrb[0].mxu0 %v2632
        %v2687 = vpop.f32.mrb[0].mxu0
        %v2688 = vadd.f32 %v2579, %v2687
        %v2689 = vpop.f32.mrb[0].mxu0
        %v2690 = vpop.f32.mrb[0].mxu0
        %v2691 = vadd.f32 %v2582, %v2690
        %v2692 = vpop.f32.mrb[0].mxu0
        %2693 = vmatprep.mubr.bf16.mxu0 0
        %2694 = vmatmul.mubr.bf16.gmra.mrb[0].mxu0 %v2635
        %v2695 = vpop.f32.mrb[0].mxu0
        %v2696 = vadd.f32 %v2587, %v2695
        %v2697 = vpop.f32.mrb[0].mxu0
        %v2698 = vpop.f32.mrb[0].mxu0
        %v2699 = vadd.f32 %v2590, %v2698
        %v2700 = vpop.f32.mrb[0].mxu0
        %2701 = vdwg.mxu0
        %v2702 = vld [vmem:[%s334] sm:$0xe]
        %v2703 = vld [vmem:[%s334 + $0x8] sm:$0xe]
        %v2704 = vld [vmem:[%s334 + $0x10] sm:$0xe]
        %v2705 = vld [vmem:[%s334 + $0x18] sm:$0xe]
        %v2706 = vld [vmem:[%s334 + $0x20] sm:$0xe]
        %v2707 = vld [vmem:[%s334 + $0x28] sm:$0xe]
        %v2708 = vld [vmem:[%s334 + $0x30] sm:$0xe]
        %v2709 = vld [vmem:[%s334 + $0x38] sm:$0xe]
        %v2726 = vrot.slane %v2702, 5
        %v2727 = vrot.slane %v2726, 4
        %v2728 = vrot.slane %v2368, 5
        %v2729 = vsel %vm948, %v2727, %v2728
        %v2730 = vrot.slane %v2703, 5
        %v2731 = vrot.slane %v2730, 4
        %v2732 = vrot.slane %v2369, 5
        %v2733 = vsel %vm948, %v2731, %v2732
        %v2734 = vrot.slane %v2704, 5
        %v2735 = vrot.slane %v2734, 4
        %v2736 = vrot.slane %v2370, 5
        %v2737 = vsel %vm948, %v2735, %v2736
        %v2738 = vrot.slane %v2705, 5
        %v2739 = vrot.slane %v2738, 4
        %v2740 = vrot.slane %v2371, 5
        %v2741 = vsel %vm948, %v2739, %v2740
        %v2742 = vrot.slane %v2706, 5
        %v2743 = vrot.slane %v2742, 4
        %v2744 = vrot.slane %v2372, 5
        %v2745 = vsel %vm948, %v2743, %v2744
        %v2746 = vrot.slane %v2707, 5
        %v2747 = vrot.slane %v2746, 4
        %v2748 = vrot.slane %v2373, 5
        %v2749 = vsel %vm948, %v2747, %v2748
        %v2750 = vrot.slane %v2708, 5
        %v2751 = vrot.slane %v2750, 4
        %v2752 = vrot.slane %v2374, 5
        %v2753 = vsel %vm948, %v2751, %v2752
        %v2754 = vrot.slane %v2709, 5
        %v2755 = vrot.slane %v2754, 4
        %v2756 = vrot.slane %v2375, 5
        %v2757 = vsel %vm948, %v2755, %v2756
        %v2758 = vld [vmem:[%s2363 + $0x20] sm:$0xf]
        %v2759 = vld [vmem:[%s2363 + $0x24] sm:$0xf]
        %v2760 = vld [vmem:[%s2363 + $0x28] sm:$0xf]
        %v2761 = vld [vmem:[%s2363 + $0x2c] sm:$0xf]
        %v2762 = vunpack.c.l.b16 %v2729
        %v2763 = vunpack.c.l.b16 %v2733
        %v2764 = vunpack.c.l.b16 %v2737
        %v2765 = vunpack.c.l.b16 %v2741
        %v2766 = vunpack.c.l.b16 %v2745
        %v2767 = vunpack.c.l.b16 %v2749
        %v2768 = vunpack.c.l.b16 %v2753
        %v2769 = vunpack.c.l.b16 %v2757
        %v2770 = vpack.c.b16 %v2763, %v2762
        %v2771 = vpack.c.b16 %v2765, %v2764
        %v2772 = vpack.c.b16 %v2767, %v2766
        %v2773 = vpack.c.b16 %v2769, %v2768
        %v2778 = vunpack.c.l.b16 %v2758
        %v2779 = vunpack.c.l.b16 %v2759
        %v2780 = vunpack.c.l.b16 %v2760
        %v2781 = vunpack.c.l.b16 %v2761
        %v2782 = vpack.c.b16 %v2779, %v2778
        %v2783 = vpack.c.b16 %v2781, %v2780
        %v2787 = vsel %vm735, %v2770, 0
        %v2790 = vsel %vm735, %v2771, 0
        %v2793 = vsel %vm735, %v2772, 0
        %v2796 = vsel %vm735, %v2773, 0
        %2798 = vmatprep.subr.bf16.mxu0 0
        %2799 = vmatpush1.bf16.msra.mxu0 %v2782
        %2800 = vmatprep.subr.bf16.mxu0 0
        %2801 = vmatpush1.bf16.msra.mxu0 %v2783
        %2802 = vmatprep.subr.bf16.mxu0 0
        %2803 = vmatpush1.bf16.msra.mxu0 0
        %2804 = vmatprep.subr.bf16.mxu0 0
        %2805 = vmatpush1.bf16.msra.mxu0 0
        %2806 = vmatprep.subr.bf16.mxu0 0
        %2807 = vmatpush1.bf16.msra.mxu0 0
        %2808 = vmatprep.subr.bf16.mxu0 0
        %2809 = vmatpush1.bf16.msra.mxu0 0
        %2810 = vmatprep.subr.bf16.mxu0 0
        %2811 = vmatpush1.bf16.msra.mxu0 0
        %2812 = vmatprep.subr.bf16.mxu0 0
        %2813 = vmatpush1.bf16.msra.mxu0 0
        %2814 = vmatprep.subr.bf16.mxu0 0
        %2815 = vmatpush1.bf16.msra.mxu0 0
        %2816 = vmatprep.subr.bf16.mxu0 0
        %2817 = vmatpush1.bf16.msra.mxu0 0
        %2818 = vmatprep.subr.bf16.mxu0 0
        %2819 = vmatpush1.bf16.msra.mxu0 0
        %2820 = vmatprep.subr.bf16.mxu0 0
        %2821 = vmatpush1.bf16.msra.mxu0 0
        %2822 = vmatprep.subr.bf16.mxu0 0
        %2823 = vmatpush1.bf16.msra.mxu0 0
        %2824 = vmatprep.subr.bf16.mxu0 0
        %2825 = vmatpush1.bf16.msra.mxu0 0
        %2826 = vmatprep.subr.bf16.mxu0 0
        %2827 = vmatpush1.bf16.msra.mxu0 0
        %2828 = vmatprep.subr.bf16.mxu0 0
        %2829 = vmatpush1.bf16.msra.mxu0 0
        %2830 = vmatprep.mubr.bf16.mxu0 0
        %2831 = vmatmul.mubr.bf16.gmra.mrb[0].mxu0 %v2787
        %v2832 = vpop.f32.mrb[0].mxu0
        %v2833 = vadd.f32 0.0, %v2832
        %v2834 = vpop.f32.mrb[0].mxu0
        %v2835 = vpop.f32.mrb[0].mxu0
        %v2836 = vadd.f32 0.0, %v2835
        %v2837 = vpop.f32.mrb[0].mxu0
        %2838 = vmatprep.mubr.bf16.mxu0 0
        %2839 = vmatmul.mubr.bf16.gmra.mrb[0].mxu0 %v2790
        %v2840 = vpop.f32.mrb[0].mxu0
        %v2841 = vadd.f32 0.0, %v2840
        %v2842 = vpop.f32.mrb[0].mxu0
        %v2843 = vpop.f32.mrb[0].mxu0
        %v2844 = vadd.f32 0.0, %v2843
        %v2845 = vpop.f32.mrb[0].mxu0
        %2846 = vmatprep.mubr.bf16.mxu0 0
        %2847 = vmatmul.mubr.bf16.gmra.mrb[0].mxu0 %v2793
        %v2848 = vpop.f32.mrb[0].mxu0
        %v2849 = vadd.f32 0.0, %v2848
        %v2850 = vpop.f32.mrb[0].mxu0
        %v2851 = vpop.f32.mrb[0].mxu0
        %v2852 = vadd.f32 0.0, %v2851
        %v2853 = vpop.f32.mrb[0].mxu0
        %2854 = vmatprep.mubr.bf16.mxu0 0
        %2855 = vmatmul.mubr.bf16.gmra.mrb[0].mxu0 %v2796
        %v2856 = vpop.f32.mrb[0].mxu0
        %v2857 = vadd.f32 0.0, %v2856
        %v2858 = vpop.f32.mrb[0].mxu0
        %v2859 = vpop.f32.mrb[0].mxu0
        %v2860 = vadd.f32 0.0, %v2859
        %v2861 = vpop.f32.mrb[0].mxu0
        %2862 = vdwg.mxu0
        %v2863 = vadd.f32 %v2672, %v2833
        %v2864 = vadd.f32 %v2675, %v2836
        %v2865 = vadd.f32 %v2680, %v2841
        %v2866 = vadd.f32 %v2683, %v2844
        %v2867 = vadd.f32 %v2688, %v2849
        %v2868 = vadd.f32 %v2691, %v2852
        %v2869 = vadd.f32 %v2696, %v2857
        %v2870 = vadd.f32 %v2699, %v2860
        %v2871 = vld [vmem:[%s2305] sm:$0xf]
        %v2872 = vld [vmem:[%s2305 + $0x8] sm:$0xf]
        %v2873 = vld [vmem:[%s2305 + $0x10] sm:$0xf]
        %v2874 = vld [vmem:[%s2305 + $0x18] sm:$0xf]
        %v2875 = vld [vmem:[%s2305 + $0x20] sm:$0xf]
        %v2876 = vld [vmem:[%s2305 + $0x28] sm:$0xf]
        %v2877 = vld [vmem:[%s2305 + $0x30] sm:$0xf]
        %v2878 = vld [vmem:[%s2305 + $0x38] sm:$0xf]
        %v2879 = vld [vmem:[%s2363 + $0x30] sm:$0xf]
        %v2880 = vld [vmem:[%s2363 + $0x34] sm:$0xf]
        %v2881 = vld [vmem:[%s2363 + $0x38] sm:$0xf]
        %v2882 = vld [vmem:[%s2363 + $0x3c] sm:$0xf]
        %v2891 = vunpack.c.l.b16 %v2871
        %v2892 = vunpack.c.l.b16 %v2872
        %v2893 = vunpack.c.l.b16 %v2873
        %v2894 = vunpack.c.l.b16 %v2874
        %v2895 = vunpack.c.l.b16 %v2875
        %v2896 = vunpack.c.l.b16 %v2876
        %v2897 = vunpack.c.l.b16 %v2877
        %v2898 = vunpack.c.l.b16 %v2878
        %v2899 = vpack.c.b16 %v2892, %v2891
        %v2900 = vpack.c.b16 %v2894, %v2893
        %v2901 = vpack.c.b16 %v2896, %v2895
        %v2902 = vpack.c.b16 %v2898, %v2897
        %v2907 = vunpack.c.l.b16 %v2879
        %v2908 = vunpack.c.l.b16 %v2880
        %v2909 = vunpack.c.l.b16 %v2881
        %v2910 = vunpack.c.l.b16 %v2882
        %v2911 = vpack.c.b16 %v2908, %v2907
        %v2912 = vpack.c.b16 %v2910, %v2909
        %v2916 = vsel %vm735, %v2899, 0
        %v2919 = vsel %vm735, %v2900, 0
        %v2922 = vsel %vm735, %v2901, 0
        %v2925 = vsel %vm735, %v2902, 0
        %2927 = vmatprep.subr.bf16.mxu0 0
        %2928 = vmatpush1.bf16.msra.mxu0 %v2911
        %2929 = vmatprep.subr.bf16.mxu0 0
        %2930 = vmatpush1.bf16.msra.mxu0 %v2912
        %2931 = vmatprep.subr.bf16.mxu0 0
        %2932 = vmatpush1.bf16.msra.mxu0 0
        %2933 = vmatprep.subr.bf16.mxu0 0
        %2934 = vmatpush1.bf16.msra.mxu0 0
        %2935 = vmatprep.subr.bf16.mxu0 0
        %2936 = vmatpush1.bf16.msra.mxu0 0
        %2937 = vmatprep.subr.bf16.mxu0 0
        %2938 = vmatpush1.bf16.msra.mxu0 0
        %2939 = vmatprep.subr.bf16.mxu0 0
        %2940 = vmatpush1.bf16.msra.mxu0 0
        %2941 = vmatprep.subr.bf16.mxu0 0
        %2942 = vmatpush1.bf16.msra.mxu0 0
        %2943 = vmatprep.subr.bf16.mxu0 0
        %2944 = vmatpush1.bf16.msra.mxu0 0
        %2945 = vmatprep.subr.bf16.mxu0 0
        %2946 = vmatpush1.bf16.msra.mxu0 0
        %2947 = vmatprep.subr.bf16.mxu0 0
        %2948 = vmatpush1.bf16.msra.mxu0 0
        %2949 = vmatprep.subr.bf16.mxu0 0
        %2950 = vmatpush1.bf16.msra.mxu0 0
        %2951 = vmatprep.subr.bf16.mxu0 0
        %2952 = vmatpush1.bf16.msra.mxu0 0
        %2953 = vmatprep.subr.bf16.mxu0 0
        %2954 = vmatpush1.bf16.msra.mxu0 0
        %2955 = vmatprep.subr.bf16.mxu0 0
        %2956 = vmatpush1.bf16.msra.mxu0 0
        %2957 = vmatprep.subr.bf16.mxu0 0
        %2958 = vmatpush1.bf16.msra.mxu0 0
        %2959 = vmatprep.mubr.bf16.mxu0 0
        %2960 = vmatmul.mubr.bf16.gmra.mrb[0].mxu0 %v2916
        %v2961 = vpop.f32.mrb[0].mxu0
        %v2962 = vadd.f32 0.0, %v2961
        %v2963 = vpop.f32.mrb[0].mxu0
        %v2964 = vpop.f32.mrb[0].mxu0
        %v2965 = vadd.f32 0.0, %v2964
        %v2966 = vpop.f32.mrb[0].mxu0
        %2967 = vmatprep.mubr.bf16.mxu0 0
        %2968 = vmatmul.mubr.bf16.gmra.mrb[0].mxu0 %v2919
        %v2969 = vpop.f32.mrb[0].mxu0
        %v2970 = vadd.f32 0.0, %v2969
        %v2971 = vpop.f32.mrb[0].mxu0
        %v2972 = vpop.f32.mrb[0].mxu0
        %v2973 = vadd.f32 0.0, %v2972
        %v2974 = vpop.f32.mrb[0].mxu0
        %2975 = vmatprep.mubr.bf16.mxu0 0
        %2976 = vmatmul.mubr.bf16.gmra.mrb[0].mxu0 %v2922
        %v2977 = vpop.f32.mrb[0].mxu0
        %v2978 = vadd.f32 0.0, %v2977
        %v2979 = vpop.f32.mrb[0].mxu0
        %v2980 = vpop.f32.mrb[0].mxu0
        %v2981 = vadd.f32 0.0, %v2980
        %v2982 = vpop.f32.mrb[0].mxu0
        %2983 = vmatprep.mubr.bf16.mxu0 0
        %2984 = vmatmul.mubr.bf16.gmra.mrb[0].mxu0 %v2925
        %v2985 = vpop.f32.mrb[0].mxu0
        %v2986 = vadd.f32 0.0, %v2985
        %v2987 = vpop.f32.mrb[0].mxu0
        %v2988 = vpop.f32.mrb[0].mxu0
        %v2989 = vadd.f32 0.0, %v2988
        %v2990 = vpop.f32.mrb[0].mxu0
        %2991 = vdwg.mxu0
        %v2992 = vadd.f32 %v2863, %v2962
        %v2993 = vadd.f32 %v2864, %v2965
        %v2994 = vadd.f32 %v2865, %v2970
        %v2995 = vadd.f32 %v2866, %v2973
        %v2996 = vadd.f32 %v2867, %v2978
        %v2997 = vadd.f32 %v2868, %v2981
        %v2998 = vadd.f32 %v2869, %v2986
        %v2999 = vadd.f32 %v2870, %v2989
        %v3000 = vld [vmem:[%s2305] sm:$0xf]
        %v3001 = vld [vmem:[%s2305 + $0x4] sm:$0x1]
        %v3002 = vld [vmem:[%s2305 + $0x8] sm:$0xf]
        %v3003 = vld [vmem:[%s2305 + $0xc] sm:$0x1]
        %v3004 = vld [vmem:[%s2305 + $0x10] sm:$0xf]
        %v3005 = vld [vmem:[%s2305 + $0x14] sm:$0x1]
        %v3006 = vld [vmem:[%s2305 + $0x18] sm:$0xf]
        %v3007 = vld [vmem:[%s2305 + $0x1c] sm:$0x1]
        %v3008 = vld [vmem:[%s2305 + $0x20] sm:$0xf]
        %v3009 = vld [vmem:[%s2305 + $0x24] sm:$0x1]
        %v3010 = vld [vmem:[%s2305 + $0x28] sm:$0xf]
        %v3011 = vld [vmem:[%s2305 + $0x2c] sm:$0x1]
        %v3012 = vld [vmem:[%s2305 + $0x30] sm:$0xf]
        %v3013 = vld [vmem:[%s2305 + $0x34] sm:$0x1]
        %v3014 = vld [vmem:[%s2305 + $0x38] sm:$0xf]
        %v3015 = vld [vmem:[%s2305 + $0x3c] sm:$0x1]
        %v3017 = vshrl.u32 %v3000, 16
        %v3019 = vrot.slane %v3017, 4
        %v3020 = vshll.u32 %v3000, 16
        %v3022 = vrot.slane %v3020, 5
        %v3023 = vor.u32 %v3019, %v3022
        %v3024 = vrot.slane %v3023, 4
        %v3026 = vshll.u32 %v3001, 16
        %v3028 = vrot.slane %v3026, 5
        %v3029 = vsel %vm594, %v3024, %v3028
        %v3031 = vshrl.u32 %v3002, 16
        %v3033 = vrot.slane %v3031, 4
        %v3034 = vshll.u32 %v3002, 16
        %v3036 = vrot.slane %v3034, 5
        %v3037 = vor.u32 %v3033, %v3036
        %v3038 = vrot.slane %v3037, 4
        %v3040 = vshll.u32 %v3003, 16
        %v3042 = vrot.slane %v3040, 5
        %v3043 = vsel %vm594, %v3038, %v3042
        %v3045 = vshrl.u32 %v3004, 16
        %v3047 = vrot.slane %v3045, 4
        %v3048 = vshll.u32 %v3004, 16
        %v3050 = vrot.slane %v3048, 5
        %v3051 = vor.u32 %v3047, %v3050
        %v3052 = vrot.slane %v3051, 4
        %v3054 = vshll.u32 %v3005, 16
        %v3056 = vrot.slane %v3054, 5
        %v3057 = vsel %vm594, %v3052, %v3056
        %v3059 = vshrl.u32 %v3006, 16
        %v3061 = vrot.slane %v3059, 4
        %v3062 = vshll.u32 %v3006, 16
        %v3064 = vrot.slane %v3062, 5
        %v3065 = vor.u32 %v3061, %v3064
        %v3066 = vrot.slane %v3065, 4
        %v3068 = vshll.u32 %v3007, 16
        %v3070 = vrot.slane %v3068, 5
        %v3071 = vsel %vm594, %v3066, %v3070
        %v3073 = vshrl.u32 %v3008, 16
        %v3075 = vrot.slane %v3073, 4
        %v3076 = vshll.u32 %v3008, 16
        %v3078 = vrot.slane %v3076, 5
        %v3079 = vor.u32 %v3075, %v3078
        %v3080 = vrot.slane %v3079, 4
        %v3082 = vshll.u32 %v3009, 16
        %v3084 = vrot.slane %v3082, 5
        %v3085 = vsel %vm594, %v3080, %v3084
        %v3087 = vshrl.u32 %v3010, 16
        %v3089 = vrot.slane %v3087, 4
        %v3090 = vshll.u32 %v3010, 16
        %v3092 = vrot.slane %v3090, 5
        %v3093 = vor.u32 %v3089, %v3092
        %v3094 = vrot.slane %v3093, 4
        %v3096 = vshll.u32 %v3011, 16
        %v3098 = vrot.slane %v3096, 5
        %v3099 = vsel %vm594, %v3094, %v3098
        %v3101 = vshrl.u32 %v3012, 16
        %v3103 = vrot.slane %v3101, 4
        %v3104 = vshll.u32 %v3012, 16
        %v3106 = vrot.slane %v3104, 5
        %v3107 = vor.u32 %v3103, %v3106
        %v3108 = vrot.slane %v3107, 4
        %v3110 = vshll.u32 %v3013, 16
        %v3112 = vrot.slane %v3110, 5
        %v3113 = vsel %vm594, %v3108, %v3112
        %v3115 = vshrl.u32 %v3014, 16
        %v3117 = vrot.slane %v3115, 4
        %v3118 = vshll.u32 %v3014, 16
        %v3120 = vrot.slane %v3118, 5
        %v3121 = vor.u32 %v3117, %v3120
        %v3122 = vrot.slane %v3121, 4
        %v3124 = vshll.u32 %v3015, 16
        %v3126 = vrot.slane %v3124, 5
        %v3127 = vsel %vm594, %v3122, %v3126
        %v3128 = vld [vmem:[%s2363 + $0x40] sm:$0xf]
        %v3129 = vld [vmem:[%s2363 + $0x44] sm:$0xf]
        %v3130 = vld [vmem:[%s2363 + $0x48] sm:$0xf]
        %v3131 = vld [vmem:[%s2363 + $0x4c] sm:$0xf]
        %v3132 = vunpack.c.l.b16 %v3029
        %v3133 = vunpack.c.l.b16 %v3043
        %v3134 = vunpack.c.l.b16 %v3057
        %v3135 = vunpack.c.l.b16 %v3071
        %v3136 = vunpack.c.l.b16 %v3085
        %v3137 = vunpack.c.l.b16 %v3099
        %v3138 = vunpack.c.l.b16 %v3113
        %v3139 = vunpack.c.l.b16 %v3127
        %v3140 = vpack.c.b16 %v3133, %v3132
        %v3141 = vpack.c.b16 %v3135, %v3134
        %v3142 = vpack.c.b16 %v3137, %v3136
        %v3143 = vpack.c.b16 %v3139, %v3138
        %v3148 = vunpack.c.l.b16 %v3128
        %v3149 = vunpack.c.l.b16 %v3129
        %v3150 = vunpack.c.l.b16 %v3130
        %v3151 = vunpack.c.l.b16 %v3131
        %v3152 = vpack.c.b16 %v3149, %v3148
        %v3153 = vpack.c.b16 %v3151, %v3150
        %v3157 = vsel %vm735, %v3140, 0
        %v3160 = vsel %vm735, %v3141, 0
        %v3163 = vsel %vm735, %v3142, 0
        %v3166 = vsel %vm735, %v3143, 0
        %3168 = vmatprep.subr.bf16.mxu0 0
        %3169 = vmatpush1.bf16.msra.mxu0 %v3152
        %3170 = vmatprep.subr.bf16.mxu0 0
        %3171 = vmatpush1.bf16.msra.mxu0 %v3153
        %3172 = vmatprep.subr.bf16.mxu0 0
        %3173 = vmatpush1.bf16.msra.mxu0 0
        %3174 = vmatprep.subr.bf16.mxu0 0
        %3175 = vmatpush1.bf16.msra.mxu0 0
        %3176 = vmatprep.subr.bf16.mxu0 0
        %3177 = vmatpush1.bf16.msra.mxu0 0
        %3178 = vmatprep.subr.bf16.mxu0 0
        %3179 = vmatpush1.bf16.msra.mxu0 0
        %3180 = vmatprep.subr.bf16.mxu0 0
        %3181 = vmatpush1.bf16.msra.mxu0 0
        %3182 = vmatprep.subr.bf16.mxu0 0
        %3183 = vmatpush1.bf16.msra.mxu0 0
        %3184 = vmatprep.subr.bf16.mxu0 0
        %3185 = vmatpush1.bf16.msra.mxu0 0
        %3186 = vmatprep.subr.bf16.mxu0 0
        %3187 = vmatpush1.bf16.msra.mxu0 0
        %3188 = vmatprep.subr.bf16.mxu0 0
        %3189 = vmatpush1.bf16.msra.mxu0 0
        %3190 = vmatprep.subr.bf16.mxu0 0
        %3191 = vmatpush1.bf16.msra.mxu0 0
        %3192 = vmatprep.subr.bf16.mxu0 0
        %3193 = vmatpush1.bf16.msra.mxu0 0
        %3194 = vmatprep.subr.bf16.mxu0 0
        %3195 = vmatpush1.bf16.msra.mxu0 0
        %3196 = vmatprep.subr.bf16.mxu0 0
        %3197 = vmatpush1.bf16.msra.mxu0 0
        %3198 = vmatprep.subr.bf16.mxu0 0
        %3199 = vmatpush1.bf16.msra.mxu0 0
        %3200 = vmatprep.mubr.bf16.mxu0 0
        %3201 = vmatmul.mubr.bf16.gmra.mrb[0].mxu0 %v3157
        %v3202 = vpop.f32.mrb[0].mxu0
        %v3203 = vadd.f32 0.0, %v3202
        %v3204 = vpop.f32.mrb[0].mxu0
        %v3205 = vpop.f32.mrb[0].mxu0
        %v3206 = vadd.f32 0.0, %v3205
        %v3207 = vpop.f32.mrb[0].mxu0
        %3208 = vmatprep.mubr.bf16.mxu0 0
        %3209 = vmatmul.mubr.bf16.gmra.mrb[0].mxu0 %v3160
        %v3210 = vpop.f32.mrb[0].mxu0
        %v3211 = vadd.f32 0.0, %v3210
        %v3212 = vpop.f32.mrb[0].mxu0
        %v3213 = vpop.f32.mrb[0].mxu0
        %v3214 = vadd.f32 0.0, %v3213
        %v3215 = vpop.f32.mrb[0].mxu0
        %3216 = vmatprep.mubr.bf16.mxu0 0
        %3217 = vmatmul.mubr.bf16.gmra.mrb[0].mxu0 %v3163
        %v3218 = vpop.f32.mrb[0].mxu0
        %v3219 = vadd.f32 0.0, %v3218
        %v3220 = vpop.f32.mrb[0].mxu0
        %v3221 = vpop.f32.mrb[0].mxu0
        %v3222 = vadd.f32 0.0, %v3221
        %v3223 = vpop.f32.mrb[0].mxu0
        %3224 = vmatprep.mubr.bf16.mxu0 0
        %3225 = vmatmul.mubr.bf16.gmra.mrb[0].mxu0 %v3166
        %v3226 = vpop.f32.mrb[0].mxu0
        %v3227 = vadd.f32 0.0, %v3226
        %v3228 = vpop.f32.mrb[0].mxu0
        %v3229 = vpop.f32.mrb[0].mxu0
        %v3230 = vadd.f32 0.0, %v3229
        %v3231 = vpop.f32.mrb[0].mxu0
        %3232 = vdwg.mxu0
        %v3233 = vadd.f32 %v2992, %v3203
        %v3234 = vadd.f32 %v2993, %v3206
        %v3235 = vadd.f32 %v2994, %v3211
        %v3236 = vadd.f32 %v2995, %v3214
        %v3237 = vadd.f32 %v2996, %v3219
        %v3238 = vadd.f32 %v2997, %v3222
        %v3239 = vadd.f32 %v2998, %v3227
        %v3240 = vadd.f32 %v2999, %v3230
        %v3241 = vld [vmem:[%s2305] sm:$0xe]
        %v3242 = vld [vmem:[%s2305 + $0x8] sm:$0xe]
        %v3243 = vld [vmem:[%s2305 + $0x10] sm:$0xe]
        %v3244 = vld [vmem:[%s2305 + $0x18] sm:$0xe]
        %v3245 = vld [vmem:[%s2305 + $0x20] sm:$0xe]
        %v3246 = vld [vmem:[%s2305 + $0x28] sm:$0xe]
        %v3247 = vld [vmem:[%s2305 + $0x30] sm:$0xe]
        %v3248 = vld [vmem:[%s2305 + $0x38] sm:$0xe]
        %v3265 = vrot.slane %v3241, 5
        %v3266 = vrot.slane %v3265, 4
        %v3267 = vrot.slane %v3001, 5
        %v3268 = vsel %vm948, %v3266, %v3267
        %v3269 = vrot.slane %v3242, 5
        %v3270 = vrot.slane %v3269, 4
        %v3271 = vrot.slane %v3003, 5
        %v3272 = vsel %vm948, %v3270, %v3271
        %v3273 = vrot.slane %v3243, 5
        %v3274 = vrot.slane %v3273, 4
        %v3275 = vrot.slane %v3005, 5
        %v3276 = vsel %vm948, %v3274, %v3275
        %v3277 = vrot.slane %v3244, 5
        %v3278 = vrot.slane %v3277, 4
        %v3279 = vrot.slane %v3007, 5
        %v3280 = vsel %vm948, %v3278, %v3279
        %v3281 = vrot.slane %v3245, 5
        %v3282 = vrot.slane %v3281, 4
        %v3283 = vrot.slane %v3009, 5
        %v3284 = vsel %vm948, %v3282, %v3283
        %v3285 = vrot.slane %v3246, 5
        %v3286 = vrot.slane %v3285, 4
        %v3287 = vrot.slane %v3011, 5
        %v3288 = vsel %vm948, %v3286, %v3287
        %v3289 = vrot.slane %v3247, 5
        %v3290 = vrot.slane %v3289, 4
        %v3291 = vrot.slane %v3013, 5
        %v3292 = vsel %vm948, %v3290, %v3291
        %v3293 = vrot.slane %v3248, 5
        %v3294 = vrot.slane %v3293, 4
        %v3295 = vrot.slane %v3015, 5
        %v3296 = vsel %vm948, %v3294, %v3295
        %v3297 = vld [vmem:[%s2363 + $0x50] sm:$0xf]
        %v3298 = vld [vmem:[%s2363 + $0x54] sm:$0xf]
        %v3299 = vld [vmem:[%s2363 + $0x58] sm:$0xf]
        %v3300 = vld [vmem:[%s2363 + $0x5c] sm:$0xf]
        %v3301 = vunpack.c.l.b16 %v3268
        %v3302 = vunpack.c.l.b16 %v3272
        %v3303 = vunpack.c.l.b16 %v3276
        %v3304 = vunpack.c.l.b16 %v3280
        %v3305 = vunpack.c.l.b16 %v3284
        %v3306 = vunpack.c.l.b16 %v3288
        %v3307 = vunpack.c.l.b16 %v3292
        %v3308 = vunpack.c.l.b16 %v3296
        %v3309 = vpack.c.b16 %v3302, %v3301
        %v3310 = vpack.c.b16 %v3304, %v3303
        %v3311 = vpack.c.b16 %v3306, %v3305
        %v3312 = vpack.c.b16 %v3308, %v3307
        %v3317 = vunpack.c.l.b16 %v3297
        %v3318 = vunpack.c.l.b16 %v3298
        %v3319 = vunpack.c.l.b16 %v3299
        %v3320 = vunpack.c.l.b16 %v3300
        %v3321 = vpack.c.b16 %v3318, %v3317
        %v3322 = vpack.c.b16 %v3320, %v3319
        %v3326 = vsel %vm735, %v3309, 0
        %v3329 = vsel %vm735, %v3310, 0
        %v3332 = vsel %vm735, %v3311, 0
        %v3335 = vsel %vm735, %v3312, 0
        %3337 = vmatprep.subr.bf16.mxu0 0
        %3338 = vmatpush1.bf16.msra.mxu0 %v3321
        %3339 = vmatprep.subr.bf16.mxu0 0
        %3340 = vmatpush1.bf16.msra.mxu0 %v3322
        %3341 = vmatprep.subr.bf16.mxu0 0
        %3342 = vmatpush1.bf16.msra.mxu0 0
        %3343 = vmatprep.subr.bf16.mxu0 0
        %3344 = vmatpush1.bf16.msra.mxu0 0
        %3345 = vmatprep.subr.bf16.mxu0 0
        %3346 = vmatpush1.bf16.msra.mxu0 0
        %3347 = vmatprep.subr.bf16.mxu0 0
        %3348 = vmatpush1.bf16.msra.mxu0 0
        %3349 = vmatprep.subr.bf16.mxu0 0
        %3350 = vmatpush1.bf16.msra.mxu0 0
        %3351 = vmatprep.subr.bf16.mxu0 0
        %3352 = vmatpush1.bf16.msra.mxu0 0
        %3353 = vmatprep.subr.bf16.mxu0 0
        %3354 = vmatpush1.bf16.msra.mxu0 0
        %3355 = vmatprep.subr.bf16.mxu0 0
        %3356 = vmatpush1.bf16.msra.mxu0 0
        %3357 = vmatprep.subr.bf16.mxu0 0
        %3358 = vmatpush1.bf16.msra.mxu0 0
        %3359 = vmatprep.subr.bf16.mxu0 0
        %3360 = vmatpush1.bf16.msra.mxu0 0
        %3361 = vmatprep.subr.bf16.mxu0 0
        %3362 = vmatpush1.bf16.msra.mxu0 0
        %3363 = vmatprep.subr.bf16.mxu0 0
        %3364 = vmatpush1.bf16.msra.mxu0 0
        %3365 = vmatprep.subr.bf16.mxu0 0
        %3366 = vmatpush1.bf16.msra.mxu0 0
        %3367 = vmatprep.subr.bf16.mxu0 0
        %3368 = vmatpush1.bf16.msra.mxu0 0
        %3369 = vmatprep.mubr.bf16.mxu0 0
        %3370 = vmatmul.mubr.bf16.gmra.mrb[0].mxu0 %v3326
        %v3371 = vpop.f32.mrb[0].mxu0
        %v3372 = vadd.f32 0.0, %v3371
        %v3373 = vpop.f32.mrb[0].mxu0
        %v3374 = vpop.f32.mrb[0].mxu0
        %v3375 = vadd.f32 0.0, %v3374
        %v3376 = vpop.f32.mrb[0].mxu0
        %3377 = vmatprep.mubr.bf16.mxu0 0
        %3378 = vmatmul.mubr.bf16.gmra.mrb[0].mxu0 %v3329
        %v3379 = vpop.f32.mrb[0].mxu0
        %v3380 = vadd.f32 0.0, %v3379
        %v3381 = vpop.f32.mrb[0].mxu0
        %v3382 = vpop.f32.mrb[0].mxu0
        %v3383 = vadd.f32 0.0, %v3382
        %v3384 = vpop.f32.mrb[0].mxu0
        %3385 = vmatprep.mubr.bf16.mxu0 0
        %3386 = vmatmul.mubr.bf16.gmra.mrb[0].mxu0 %v3332
        %v3387 = vpop.f32.mrb[0].mxu0
        %v3388 = vadd.f32 0.0, %v3387
        %v3389 = vpop.f32.mrb[0].mxu0
        %v3390 = vpop.f32.mrb[0].mxu0
        %v3391 = vadd.f32 0.0, %v3390
        %v3392 = vpop.f32.mrb[0].mxu0
        %3393 = vmatprep.mubr.bf16.mxu0 0
        %3394 = vmatmul.mubr.bf16.gmra.mrb[0].mxu0 %v3335
        %v3395 = vpop.f32.mrb[0].mxu0
        %v3396 = vadd.f32 0.0, %v3395
        %v3397 = vpop.f32.mrb[0].mxu0
        %v3398 = vpop.f32.mrb[0].mxu0
        %v3399 = vadd.f32 0.0, %v3398
        %v3400 = vpop.f32.mrb[0].mxu0
        %3401 = vdwg.mxu0
        %v3402 = vadd.f32 %v3233, %v3372
        %v3403 = vadd.f32 %v3234, %v3375
        %v3404 = vadd.f32 %v3235, %v3380
        %v3405 = vadd.f32 %v3236, %v3383
        %v3406 = vadd.f32 %v3237, %v3388
        %v3407 = vadd.f32 %v3238, %v3391
        %v3408 = vadd.f32 %v3239, %v3396
        %v3409 = vadd.f32 %v3240, %v3399
        %s3410 = scalar_lea.vmem [#allocation2], 96
        %v3411 = vld [vmem:[%s3410] sm:$0xf]
        %v3412 = vld [vmem:[%s3410 + $0x8] sm:$0xf]
        %v3413 = vld [vmem:[%s3410 + $0x10] sm:$0xf]
        %v3414 = vld [vmem:[%s3410 + $0x18] sm:$0xf]
        %v3415 = vld [vmem:[%s3410 + $0x20] sm:$0xf]
        %v3416 = vld [vmem:[%s3410 + $0x28] sm:$0xf]
        %v3417 = vld [vmem:[%s3410 + $0x30] sm:$0xf]
        %v3418 = vld [vmem:[%s3410 + $0x38] sm:$0xf]
        %v3419 = vld [vmem:[%s2363 + $0x60] sm:$0xf]
        %v3420 = vld [vmem:[%s2363 + $0x64] sm:$0xf]
        %v3421 = vld [vmem:[%s2363 + $0x68] sm:$0xf]
        %v3422 = vld [vmem:[%s2363 + $0x6c] sm:$0xf]
        %v3431 = vunpack.c.l.b16 %v3411
        %v3432 = vunpack.c.l.b16 %v3412
        %v3433 = vunpack.c.l.b16 %v3413
        %v3434 = vunpack.c.l.b16 %v3414
        %v3435 = vunpack.c.l.b16 %v3415
        %v3436 = vunpack.c.l.b16 %v3416
        %v3437 = vunpack.c.l.b16 %v3417
        %v3438 = vunpack.c.l.b16 %v3418
        %v3439 = vpack.c.b16 %v3432, %v3431
        %v3440 = vpack.c.b16 %v3434, %v3433
        %v3441 = vpack.c.b16 %v3436, %v3435
        %v3442 = vpack.c.b16 %v3438, %v3437
        %v3447 = vunpack.c.l.b16 %v3419
        %v3448 = vunpack.c.l.b16 %v3420
        %v3449 = vunpack.c.l.b16 %v3421
        %v3450 = vunpack.c.l.b16 %v3422
        %v3451 = vpack.c.b16 %v3448, %v3447
        %v3452 = vpack.c.b16 %v3450, %v3449
        %v3456 = vsel %vm735, %v3439, 0
        %v3459 = vsel %vm735, %v3440, 0
        %v3462 = vsel %vm735, %v3441, 0
        %v3465 = vsel %vm735, %v3442, 0
        %3467 = vmatprep.subr.bf16.mxu0 0
        %3468 = vmatpush1.bf16.msra.mxu0 %v3451
        %3469 = vmatprep.subr.bf16.mxu0 0
        %3470 = vmatpush1.bf16.msra.mxu0 %v3452
        %3471 = vmatprep.subr.bf16.mxu0 0
        %3472 = vmatpush1.bf16.msra.mxu0 0
        %3473 = vmatprep.subr.bf16.mxu0 0
        %3474 = vmatpush1.bf16.msra.mxu0 0
        %3475 = vmatprep.subr.bf16.mxu0 0
        %3476 = vmatpush1.bf16.msra.mxu0 0
        %3477 = vmatprep.subr.bf16.mxu0 0
        %3478 = vmatpush1.bf16.msra.mxu0 0
        %3479 = vmatprep.subr.bf16.mxu0 0
        %3480 = vmatpush1.bf16.msra.mxu0 0
        %3481 = vmatprep.subr.bf16.mxu0 0
        %3482 = vmatpush1.bf16.msra.mxu0 0
        %3483 = vmatprep.subr.bf16.mxu0 0
        %3484 = vmatpush1.bf16.msra.mxu0 0
        %3485 = vmatprep.subr.bf16.mxu0 0
        %3486 = vmatpush1.bf16.msra.mxu0 0
        %3487 = vmatprep.subr.bf16.mxu0 0
        %3488 = vmatpush1.bf16.msra.mxu0 0
        %3489 = vmatprep.subr.bf16.mxu0 0
        %3490 = vmatpush1.bf16.msra.mxu0 0
        %3491 = vmatprep.subr.bf16.mxu0 0
        %3492 = vmatpush1.bf16.msra.mxu0 0
        %3493 = vmatprep.subr.bf16.mxu0 0
        %3494 = vmatpush1.bf16.msra.mxu0 0
        %3495 = vmatprep.subr.bf16.mxu0 0
        %3496 = vmatpush1.bf16.msra.mxu0 0
        %3497 = vmatprep.subr.bf16.mxu0 0
        %3498 = vmatpush1.bf16.msra.mxu0 0
        %3499 = vmatprep.mubr.bf16.mxu0 0
        %3500 = vmatmul.mubr.bf16.gmra.mrb[0].mxu0 %v3456
        %v3501 = vpop.f32.mrb[0].mxu0
        %v3502 = vadd.f32 0.0, %v3501
        %v3503 = vpop.f32.mrb[0].mxu0
        %v3504 = vpop.f32.mrb[0].mxu0
        %v3505 = vadd.f32 0.0, %v3504
        %v3506 = vpop.f32.mrb[0].mxu0
        %3507 = vmatprep.mubr.bf16.mxu0 0
        %3508 = vmatmul.mubr.bf16.gmra.mrb[0].mxu0 %v3459
        %v3509 = vpop.f32.mrb[0].mxu0
        %v3510 = vadd.f32 0.0, %v3509
        %v3511 = vpop.f32.mrb[0].mxu0
        %v3512 = vpop.f32.mrb[0].mxu0
        %v3513 = vadd.f32 0.0, %v3512
        %v3514 = vpop.f32.mrb[0].mxu0
        %3515 = vmatprep.mubr.bf16.mxu0 0
        %3516 = vmatmul.mubr.bf16.gmra.mrb[0].mxu0 %v3462
        %v3517 = vpop.f32.mrb[0].mxu0
        %v3518 = vadd.f32 0.0, %v3517
        %v3519 = vpop.f32.mrb[0].mxu0
        %v3520 = vpop.f32.mrb[0].mxu0
        %v3521 = vadd.f32 0.0, %v3520
        %v3522 = vpop.f32.mrb[0].mxu0
        %3523 = vmatprep.mubr.bf16.mxu0 0
        %3524 = vmatmul.mubr.bf16.gmra.mrb[0].mxu0 %v3465
        %v3525 = vpop.f32.mrb[0].mxu0
        %v3526 = vadd.f32 0.0, %v3525
        %v3527 = vpop.f32.mrb[0].mxu0
        %v3528 = vpop.f32.mrb[0].mxu0
        %v3529 = vadd.f32 0.0, %v3528
        %v3530 = vpop.f32.mrb[0].mxu0
        %3531 = vdwg.mxu0
        %v3532 = vadd.f32 %v3402, %v3502
        %v3533 = vadd.f32 %v3403, %v3505
        %v3534 = vadd.f32 %v3404, %v3510
        %v3535 = vadd.f32 %v3405, %v3513
        %v3536 = vadd.f32 %v3406, %v3518
        %v3537 = vadd.f32 %v3407, %v3521
        %v3538 = vadd.f32 %v3408, %v3526
        %v3539 = vadd.f32 %v3409, %v3529
        %v3540 = vld [vmem:[%s3410] sm:$0xf]
        %v3541 = vld [vmem:[%s3410 + $0x4] sm:$0x1]
        %v3542 = vld [vmem:[%s3410 + $0x8] sm:$0xf]
        %v3543 = vld [vmem:[%s3410 + $0xc] sm:$0x1]
        %v3544 = vld [vmem:[%s3410 + $0x10] sm:$0xf]
        %v3545 = vld [vmem:[%s3410 + $0x14] sm:$0x1]
        %v3546 = vld [vmem:[%s3410 + $0x18] sm:$0xf]
        %v3547 = vld [vmem:[%s3410 + $0x1c] sm:$0x1]
        %v3548 = vld [vmem:[%s3410 + $0x20] sm:$0xf]
        %v3549 = vld [vmem:[%s3410 + $0x24] sm:$0x1]
        %v3550 = vld [vmem:[%s3410 + $0x28] sm:$0xf]
        %v3551 = vld [vmem:[%s3410 + $0x2c] sm:$0x1]
        %v3552 = vld [vmem:[%s3410 + $0x30] sm:$0xf]
        %v3553 = vld [vmem:[%s3410 + $0x34] sm:$0x1]
        %v3554 = vld [vmem:[%s3410 + $0x38] sm:$0xf]
        %v3555 = vld [vmem:[%s3410 + $0x3c] sm:$0x1]
        %v3557 = vshrl.u32 %v3540, 16
        %v3559 = vrot.slane %v3557, 4
        %v3560 = vshll.u32 %v3540, 16
        %v3562 = vrot.slane %v3560, 5
        %v3563 = vor.u32 %v3559, %v3562
        %v3564 = vrot.slane %v3563, 4
        %v3566 = vshll.u32 %v3541, 16
        %v3568 = vrot.slane %v3566, 5
        %v3569 = vsel %vm594, %v3564, %v3568
        %v3571 = vshrl.u32 %v3542, 16
        %v3573 = vrot.slane %v3571, 4
        %v3574 = vshll.u32 %v3542, 16
        %v3576 = vrot.slane %v3574, 5
        %v3577 = vor.u32 %v3573, %v3576
        %v3578 = vrot.slane %v3577, 4
        %v3580 = vshll.u32 %v3543, 16
        %v3582 = vrot.slane %v3580, 5
        %v3583 = vsel %vm594, %v3578, %v3582
        %v3585 = vshrl.u32 %v3544, 16
        %v3587 = vrot.slane %v3585, 4
        %v3588 = vshll.u32 %v3544, 16
        %v3590 = vrot.slane %v3588, 5
        %v3591 = vor.u32 %v3587, %v3590
        %v3592 = vrot.slane %v3591, 4
        %v3594 = vshll.u32 %v3545, 16
        %v3596 = vrot.slane %v3594, 5
        %v3597 = vsel %vm594, %v3592, %v3596
        %v3599 = vshrl.u32 %v3546, 16
        %v3601 = vrot.slane %v3599, 4
        %v3602 = vshll.u32 %v3546, 16
        %v3604 = vrot.slane %v3602, 5
        %v3605 = vor.u32 %v3601, %v3604
        %v3606 = vrot.slane %v3605, 4
        %v3608 = vshll.u32 %v3547, 16
        %v3610 = vrot.slane %v3608, 5
        %v3611 = vsel %vm594, %v3606, %v3610
        %v3613 = vshrl.u32 %v3548, 16
        %v3615 = vrot.slane %v3613, 4
        %v3616 = vshll.u32 %v3548, 16
        %v3618 = vrot.slane %v3616, 5
        %v3619 = vor.u32 %v3615, %v3618
        %v3620 = vrot.slane %v3619, 4
        %v3622 = vshll.u32 %v3549, 16
        %v3624 = vrot.slane %v3622, 5
        %v3625 = vsel %vm594, %v3620, %v3624
        %v3627 = vshrl.u32 %v3550, 16
        %v3629 = vrot.slane %v3627, 4
        %v3630 = vshll.u32 %v3550, 16
        %v3632 = vrot.slane %v3630, 5
        %v3633 = vor.u32 %v3629, %v3632
        %v3634 = vrot.slane %v3633, 4
        %v3636 = vshll.u32 %v3551, 16
        %v3638 = vrot.slane %v3636, 5
        %v3639 = vsel %vm594, %v3634, %v3638
        %v3641 = vshrl.u32 %v3552, 16
        %v3643 = vrot.slane %v3641, 4
        %v3644 = vshll.u32 %v3552, 16
        %v3646 = vrot.slane %v3644, 5
        %v3647 = vor.u32 %v3643, %v3646
        %v3648 = vrot.slane %v3647, 4
        %v3650 = vshll.u32 %v3553, 16
        %v3652 = vrot.slane %v3650, 5
        %v3653 = vsel %vm594, %v3648, %v3652
        %v3655 = vshrl.u32 %v3554, 16
        %v3657 = vrot.slane %v3655, 4
        %v3658 = vshll.u32 %v3554, 16
        %v3660 = vrot.slane %v3658, 5
        %v3661 = vor.u32 %v3657, %v3660
        %v3662 = vrot.slane %v3661, 4
        %v3664 = vshll.u32 %v3555, 16
        %v3666 = vrot.slane %v3664, 5
        %v3667 = vsel %vm594, %v3662, %v3666
        %v3668 = vld [vmem:[%s2363 + $0x70] sm:$0xf]
        %v3669 = vld [vmem:[%s2363 + $0x74] sm:$0xf]
        %v3670 = vld [vmem:[%s2363 + $0x78] sm:$0xf]
        %v3671 = vld [vmem:[%s2363 + $0x7c] sm:$0xf]
        %v3672 = vunpack.c.l.b16 %v3569
        %v3673 = vunpack.c.l.b16 %v3583
        %v3674 = vunpack.c.l.b16 %v3597
        %v3675 = vunpack.c.l.b16 %v3611
        %v3676 = vunpack.c.l.b16 %v3625
        %v3677 = vunpack.c.l.b16 %v3639
        %v3678 = vunpack.c.l.b16 %v3653
        %v3679 = vunpack.c.l.b16 %v3667
        %v3680 = vpack.c.b16 %v3673, %v3672
        %v3681 = vpack.c.b16 %v3675, %v3674
        %v3682 = vpack.c.b16 %v3677, %v3676
        %v3683 = vpack.c.b16 %v3679, %v3678
        %v3688 = vunpack.c.l.b16 %v3668
        %v3689 = vunpack.c.l.b16 %v3669
        %v3690 = vunpack.c.l.b16 %v3670
        %v3691 = vunpack.c.l.b16 %v3671
        %v3692 = vpack.c.b16 %v3689, %v3688
        %v3693 = vpack.c.b16 %v3691, %v3690
        %v3697 = vsel %vm735, %v3680, 0
        %v3700 = vsel %vm735, %v3681, 0
        %v3703 = vsel %vm735, %v3682, 0
        %v3706 = vsel %vm735, %v3683, 0
        %3708 = vmatprep.subr.bf16.mxu0 0
        %3709 = vmatpush1.bf16.msra.mxu0 %v3692
        %3710 = vmatprep.subr.bf16.mxu0 0
        %3711 = vmatpush1.bf16.msra.mxu0 %v3693
        %3712 = vmatprep.subr.bf16.mxu0 0
        %3713 = vmatpush1.bf16.msra.mxu0 0
        %3714 = vmatprep.subr.bf16.mxu0 0
        %3715 = vmatpush1.bf16.msra.mxu0 0
        %3716 = vmatprep.subr.bf16.mxu0 0
        %3717 = vmatpush1.bf16.msra.mxu0 0
        %3718 = vmatprep.subr.bf16.mxu0 0
        %3719 = vmatpush1.bf16.msra.mxu0 0
        %3720 = vmatprep.subr.bf16.mxu0 0
        %3721 = vmatpush1.bf16.msra.mxu0 0
        %3722 = vmatprep.subr.bf16.mxu0 0
        %3723 = vmatpush1.bf16.msra.mxu0 0
        %3724 = vmatprep.subr.bf16.mxu0 0
        %3725 = vmatpush1.bf16.msra.mxu0 0
        %3726 = vmatprep.subr.bf16.mxu0 0
        %3727 = vmatpush1.bf16.msra.mxu0 0
        %3728 = vmatprep.subr.bf16.mxu0 0
        %3729 = vmatpush1.bf16.msra.mxu0 0
        %3730 = vmatprep.subr.bf16.mxu0 0
        %3731 = vmatpush1.bf16.msra.mxu0 0
        %3732 = vmatprep.subr.bf16.mxu0 0
        %3733 = vmatpush1.bf16.msra.mxu0 0
        %3734 = vmatprep.subr.bf16.mxu0 0
        %3735 = vmatpush1.bf16.msra.mxu0 0
        %3736 = vmatprep.subr.bf16.mxu0 0
        %3737 = vmatpush1.bf16.msra.mxu0 0
        %3738 = vmatprep.subr.bf16.mxu0 0
        %3739 = vmatpush1.bf16.msra.mxu0 0
        %3740 = vmatprep.mubr.bf16.mxu0 0
        %3741 = vmatmul.mubr.bf16.gmra.mrb[0].mxu0 %v3697
        %v3742 = vpop.f32.mrb[0].mxu0
        %v3743 = vadd.f32 0.0, %v3742
        %v3744 = vpop.f32.mrb[0].mxu0
        %v3745 = vpop.f32.mrb[0].mxu0
        %v3746 = vadd.f32 0.0, %v3745
        %v3747 = vpop.f32.mrb[0].mxu0
        %3748 = vmatprep.mubr.bf16.mxu0 0
        %3749 = vmatmul.mubr.bf16.gmra.mrb[0].mxu0 %v3700
        %v3750 = vpop.f32.mrb[0].mxu0
        %v3751 = vadd.f32 0.0, %v3750
        %v3752 = vpop.f32.mrb[0].mxu0
        %v3753 = vpop.f32.mrb[0].mxu0
        %v3754 = vadd.f32 0.0, %v3753
        %v3755 = vpop.f32.mrb[0].mxu0
        %3756 = vmatprep.mubr.bf16.mxu0 0
        %3757 = vmatmul.mubr.bf16.gmra.mrb[0].mxu0 %v3703
        %v3758 = vpop.f32.mrb[0].mxu0
        %v3759 = vadd.f32 0.0, %v3758
        %v3760 = vpop.f32.mrb[0].mxu0
        %v3761 = vpop.f32.mrb[0].mxu0
        %v3762 = vadd.f32 0.0, %v3761
        %v3763 = vpop.f32.mrb[0].mxu0
        %3764 = vmatprep.mubr.bf16.mxu0 0
        %3765 = vmatmul.mubr.bf16.gmra.mrb[0].mxu0 %v3706
        %v3766 = vpop.f32.mrb[0].mxu0
        %v3767 = vadd.f32 0.0, %v3766
        %v3768 = vpop.f32.mrb[0].mxu0
        %v3769 = vpop.f32.mrb[0].mxu0
        %v3770 = vadd.f32 0.0, %v3769
        %v3771 = vpop.f32.mrb[0].mxu0
        %3772 = vdwg.mxu0
        %v3773 = vadd.f32 %v3532, %v3743
        %v3774 = vadd.f32 %v3533, %v3746
        %v3775 = vadd.f32 %v3534, %v3751
        %v3776 = vadd.f32 %v3535, %v3754
        %v3777 = vadd.f32 %v3536, %v3759
        %v3778 = vadd.f32 %v3537, %v3762
        %v3779 = vadd.f32 %v3538, %v3767
        %v3780 = vadd.f32 %v3539, %v3770
        %v3781 = vld [vmem:[%s3410] sm:$0xe]
        %v3782 = vld [vmem:[%s3410 + $0x8] sm:$0xe]
        %v3783 = vld [vmem:[%s3410 + $0x10] sm:$0xe]
        %v3784 = vld [vmem:[%s3410 + $0x18] sm:$0xe]
        %v3785 = vld [vmem:[%s3410 + $0x20] sm:$0xe]
        %v3786 = vld [vmem:[%s3410 + $0x28] sm:$0xe]
        %v3787 = vld [vmem:[%s3410 + $0x30] sm:$0xe]
        %v3788 = vld [vmem:[%s3410 + $0x38] sm:$0xe]
        %v3805 = vrot.slane %v3781, 5
        %v3806 = vrot.slane %v3805, 4
        %v3807 = vrot.slane %v3541, 5
        %v3808 = vsel %vm948, %v3806, %v3807
        %v3809 = vrot.slane %v3782, 5
        %v3810 = vrot.slane %v3809, 4
        %v3811 = vrot.slane %v3543, 5
        %v3812 = vsel %vm948, %v3810, %v3811
        %v3813 = vrot.slane %v3783, 5
        %v3814 = vrot.slane %v3813, 4
        %v3815 = vrot.slane %v3545, 5
        %v3816 = vsel %vm948, %v3814, %v3815
        %v3817 = vrot.slane %v3784, 5
        %v3818 = vrot.slane %v3817, 4
        %v3819 = vrot.slane %v3547, 5
        %v3820 = vsel %vm948, %v3818, %v3819
        %v3821 = vrot.slane %v3785, 5
        %v3822 = vrot.slane %v3821, 4
        %v3823 = vrot.slane %v3549, 5
        %v3824 = vsel %vm948, %v3822, %v3823
        %v3825 = vrot.slane %v3786, 5
        %v3826 = vrot.slane %v3825, 4
        %v3827 = vrot.slane %v3551, 5
        %v3828 = vsel %vm948, %v3826, %v3827
        %v3829 = vrot.slane %v3787, 5
        %v3830 = vrot.slane %v3829, 4
        %v3831 = vrot.slane %v3553, 5
        %v3832 = vsel %vm948, %v3830, %v3831
        %v3833 = vrot.slane %v3788, 5
        %v3834 = vrot.slane %v3833, 4
        %v3835 = vrot.slane %v3555, 5
        %v3836 = vsel %vm948, %v3834, %v3835
        %v3837 = vld [vmem:[%s2363 + $0x80] sm:$0xf]
        %v3838 = vld [vmem:[%s2363 + $0x84] sm:$0xf]
        %v3839 = vld [vmem:[%s2363 + $0x88] sm:$0xf]
        %v3840 = vld [vmem:[%s2363 + $0x8c] sm:$0xf]
        %v3841 = vunpack.c.l.b16 %v3808
        %v3842 = vunpack.c.l.b16 %v3812
        %v3843 = vunpack.c.l.b16 %v3816
        %v3844 = vunpack.c.l.b16 %v3820
        %v3845 = vunpack.c.l.b16 %v3824
        %v3846 = vunpack.c.l.b16 %v3828
        %v3847 = vunpack.c.l.b16 %v3832
        %v3848 = vunpack.c.l.b16 %v3836
        %v3849 = vpack.c.b16 %v3842, %v3841
        %v3850 = vpack.c.b16 %v3844, %v3843
        %v3851 = vpack.c.b16 %v3846, %v3845
        %v3852 = vpack.c.b16 %v3848, %v3847
        %v3857 = vunpack.c.l.b16 %v3837
        %v3858 = vunpack.c.l.b16 %v3838
        %v3859 = vunpack.c.l.b16 %v3839
        %v3860 = vunpack.c.l.b16 %v3840
        %v3861 = vpack.c.b16 %v3858, %v3857
        %v3862 = vpack.c.b16 %v3860, %v3859
        %v3866 = vsel %vm735, %v3849, 0
        %v3869 = vsel %vm735, %v3850, 0
        %v3872 = vsel %vm735, %v3851, 0
        %v3875 = vsel %vm735, %v3852, 0
        %3877 = vmatprep.subr.bf16.mxu0 0
        %3878 = vmatpush1.bf16.msra.mxu0 %v3861
        %3879 = vmatprep.subr.bf16.mxu0 0
        %3880 = vmatpush1.bf16.msra.mxu0 %v3862
        %3881 = vmatprep.subr.bf16.mxu0 0
        %3882 = vmatpush1.bf16.msra.mxu0 0
        %3883 = vmatprep.subr.bf16.mxu0 0
        %3884 = vmatpush1.bf16.msra.mxu0 0
        %3885 = vmatprep.subr.bf16.mxu0 0
        %3886 = vmatpush1.bf16.msra.mxu0 0
        %3887 = vmatprep.subr.bf16.mxu0 0
        %3888 = vmatpush1.bf16.msra.mxu0 0
        %3889 = vmatprep.subr.bf16.mxu0 0
        %3890 = vmatpush1.bf16.msra.mxu0 0
        %3891 = vmatprep.subr.bf16.mxu0 0
        %3892 = vmatpush1.bf16.msra.mxu0 0
        %3893 = vmatprep.subr.bf16.mxu0 0
        %3894 = vmatpush1.bf16.msra.mxu0 0
        %3895 = vmatprep.subr.bf16.mxu0 0
        %3896 = vmatpush1.bf16.msra.mxu0 0
        %3897 = vmatprep.subr.bf16.mxu0 0
        %3898 = vmatpush1.bf16.msra.mxu0 0
        %3899 = vmatprep.subr.bf16.mxu0 0
        %3900 = vmatpush1.bf16.msra.mxu0 0
        %3901 = vmatprep.subr.bf16.mxu0 0
        %3902 = vmatpush1.bf16.msra.mxu0 0
        %3903 = vmatprep.subr.bf16.mxu0 0
        %3904 = vmatpush1.bf16.msra.mxu0 0
        %3905 = vmatprep.subr.bf16.mxu0 0
        %3906 = vmatpush1.bf16.msra.mxu0 0
        %3907 = vmatprep.subr.bf16.mxu0 0
        %3908 = vmatpush1.bf16.msra.mxu0 0
        %3909 = vmatprep.mubr.bf16.mxu0 0
        %3910 = vmatmul.mubr.bf16.gmra.mrb[0].mxu0 %v3866
        %v3911 = vpop.f32.mrb[0].mxu0
        %v3912 = vadd.f32 0.0, %v3911
        %v3913 = vpop.f32.mrb[0].mxu0
        %v3914 = vpop.f32.mrb[0].mxu0
        %v3915 = vadd.f32 0.0, %v3914
        %v3916 = vpop.f32.mrb[0].mxu0
        %3917 = vmatprep.mubr.bf16.mxu0 0
        %3918 = vmatmul.mubr.bf16.gmra.mrb[0].mxu0 %v3869
        %v3919 = vpop.f32.mrb[0].mxu0
        %v3920 = vadd.f32 0.0, %v3919
        %v3921 = vpop.f32.mrb[0].mxu0
        %v3922 = vpop.f32.mrb[0].mxu0
        %v3923 = vadd.f32 0.0, %v3922
        %v3924 = vpop.f32.mrb[0].mxu0
        %3925 = vmatprep.mubr.bf16.mxu0 0
        %3926 = vmatmul.mubr.bf16.gmra.mrb[0].mxu0 %v3872
        %v3927 = vpop.f32.mrb[0].mxu0
        %v3928 = vadd.f32 0.0, %v3927
        %v3929 = vpop.f32.mrb[0].mxu0
        %v3930 = vpop.f32.mrb[0].mxu0
        %v3931 = vadd.f32 0.0, %v3930
        %v3932 = vpop.f32.mrb[0].mxu0
        %3933 = vmatprep.mubr.bf16.mxu0 0
        %3934 = vmatmul.mubr.bf16.gmra.mrb[0].mxu0 %v3875
        %v3935 = vpop.f32.mrb[0].mxu0
        %v3936 = vadd.f32 0.0, %v3935
        %v3937 = vpop.f32.mrb[0].mxu0
        %v3938 = vpop.f32.mrb[0].mxu0
        %v3939 = vadd.f32 0.0, %v3938
        %v3940 = vpop.f32.mrb[0].mxu0
        %3941 = vdwg.mxu0
        %v3942 = vadd.f32 %v3773, %v3912
        %v3943 = vadd.f32 %v3774, %v3915
        %v3944 = vadd.f32 %v3775, %v3920
        %v3945 = vadd.f32 %v3776, %v3923
        %v3946 = vadd.f32 %v3777, %v3928
        %v3947 = vadd.f32 %v3778, %v3931
        %v3948 = vadd.f32 %v3779, %v3936
        %v3949 = vadd.f32 %v3780, %v3939
        %v3950 = vlaneseq
        %v3951 = vshrl.u32 %v3950, 7
        %v3952 = vsub.s32 0, %v3951
        %v3953 = vrot.slane %v2354, %v3952
        %v3954 = vadd.f32 %v3942, %v3953
        %v3955 = vadd.f32 %v3943, %v3953
        %v3956 = vadd.f32 %v3944, %v3953
        %v3957 = vadd.f32 %v3945, %v3953
        %v3958 = vadd.f32 %v3946, %v3953
        %v3959 = vadd.f32 %v3947, %v3953
        %v3960 = vadd.f32 %v3948, %v3953
        %v3961 = vadd.f32 %v3949, %v3953
        %v3962 = vmax.f32 %v3954, 0.0
        %v3963 = vmax.f32 %v3955, 0.0
        %v3964 = vmax.f32 %v3956, 0.0
        %v3965 = vmax.f32 %v3957, 0.0
        %v3966 = vmax.f32 %v3958, 0.0
        %v3967 = vmax.f32 %v3959, 0.0
        %v3968 = vmax.f32 %v3960, 0.0
        %v3969 = vmax.f32 %v3961, 0.0
        %3970 = vst.msk [vmem:[%s248] sm:$0xff] %vm735, %v3962
        %3971 = vst.msk [vmem:[%s248 + $0x8] sm:$0xff] %vm735, %v3963
        %3972 = vst.msk [vmem:[%s248 + $0x10] sm:$0xff] %vm735, %v3964
        %3973 = vst.msk [vmem:[%s248 + $0x18] sm:$0xff] %vm735, %v3965
        %3974 = vst.msk [vmem:[%s248 + $0x20] sm:$0xff] %vm735, %v3966
        %3975 = vst.msk [vmem:[%s248 + $0x28] sm:$0xff] %vm735, %v3967
        %3976 = vst.msk [vmem:[%s248 + $0x30] sm:$0xff] %vm735, %v3968
        %3977 = vst.msk [vmem:[%s248 + $0x38] sm:$0xff] %vm735, %v3969
        %v3978 = vpack.c.bf16 %v3963, %v3962
        %v3979 = vpack.c.bf16 %v3965, %v3964
        %v3980 = vpack.c.bf16 %v3967, %v3966
        %v3981 = vpack.c.bf16 %v3969, %v3968
        %v3982 = vld [vmem:[%s3] sm:$0xf]
        %v3983 = vld [vmem:[%s3 + $0x4] sm:$0xf]
        %v3984 = vld [vmem:[%s3 + $0x8] sm:$0xf]
        %v3985 = vld [vmem:[%s3 + $0xc] sm:$0xf]
        %v3986 = vld [vmem:[%s4] sm:$0x1]
        %v3988 = vlaneseq
        %v3989 = vshrl.u32 %v3988, 7
        %v3990 = vsub.s32 0, %v3989
        %v3991 = vrot.slane %v3986, %v3990
        %v3997 = vunpack.c.l.b16 %v3982
        %v3998 = vunpack.c.l.b16 %v3983
        %v3999 = vunpack.c.l.b16 %v3984
        %v4000 = vunpack.c.l.b16 %v3985
        %v4001 = vpack.c.b16 %v3998, %v3997
        %v4002 = vpack.c.b16 %v4000, %v3999
        %v4006 = vsel %vm735, %v3978, 0
        %v4009 = vsel %vm735, %v3979, 0
        %v4012 = vsel %vm735, %v3980, 0
        %v4015 = vsel %vm735, %v3981, 0
        %4017 = vmatprep.subr.bf16.mxu0 0
        %4018 = vmatpush1.bf16.msra.mxu0 %v4001
        %4019 = vmatprep.subr.bf16.mxu0 0
        %4020 = vmatpush1.bf16.msra.mxu0 %v4002
        %4021 = vmatprep.subr.bf16.mxu0 0
        %4022 = vmatpush1.bf16.msra.mxu0 0
        %4023 = vmatprep.subr.bf16.mxu0 0
        %4024 = vmatpush1.bf16.msra.mxu0 0
        %4025 = vmatprep.subr.bf16.mxu0 0
        %4026 = vmatpush1.bf16.msra.mxu0 0
        %4027 = vmatprep.subr.bf16.mxu0 0
        %4028 = vmatpush1.bf16.msra.mxu0 0
        %4029 = vmatprep.subr.bf16.mxu0 0
        %4030 = vmatpush1.bf16.msra.mxu0 0
        %4031 = vmatprep.subr.bf16.mxu0 0
        %4032 = vmatpush1.bf16.msra.mxu0 0
        %4033 = vmatprep.subr.bf16.mxu0 0
        %4034 = vmatpush1.bf16.msra.mxu0 0
        %4035 = vmatprep.subr.bf16.mxu0 0
        %4036 = vmatpush1.bf16.msra.mxu0 0
        %4037 = vmatprep.subr.bf16.mxu0 0
        %4038 = vmatpush1.bf16.msra.mxu0 0
        %4039 = vmatprep.subr.bf16.mxu0 0
        %4040 = vmatpush1.bf16.msra.mxu0 0
        %4041 = vmatprep.subr.bf16.mxu0 0
        %4042 = vmatpush1.bf16.msra.mxu0 0
        %4043 = vmatprep.subr.bf16.mxu0 0
        %4044 = vmatpush1.bf16.msra.mxu0 0
        %4045 = vmatprep.subr.bf16.mxu0 0
        %4046 = vmatpush1.bf16.msra.mxu0 0
        %4047 = vmatprep.subr.bf16.mxu0 0
        %4048 = vmatpush1.bf16.msra.mxu0 0
        %4049 = vmatprep.mubr.bf16.mxu0 0
        %4050 = vmatmul.mubr.bf16.gmra.mrb[0].mxu0 %v4006
        %v4051 = vpop.f32.mrb[0].mxu0
        %v4052 = vadd.f32 %v3991, %v4051
        %v4053 = vpop.f32.mrb[0].mxu0
        %v4054 = vpop.f32.mrb[0].mxu0
        %v4055 = vadd.f32 %v3991, %v4054
        %v4056 = vpop.f32.mrb[0].mxu0
        %4057 = vmatprep.mubr.bf16.mxu0 0
        %4058 = vmatmul.mubr.bf16.gmra.mrb[0].mxu0 %v4009
        %v4059 = vpop.f32.mrb[0].mxu0
        %v4060 = vadd.f32 %v3991, %v4059
        %v4061 = vpop.f32.mrb[0].mxu0
        %v4062 = vpop.f32.mrb[0].mxu0
        %v4063 = vadd.f32 %v3991, %v4062
        %v4064 = vpop.f32.mrb[0].mxu0
        %4065 = vmatprep.mubr.bf16.mxu0 0
        %4066 = vmatmul.mubr.bf16.gmra.mrb[0].mxu0 %v4012
        %v4067 = vpop.f32.mrb[0].mxu0
        %v4068 = vadd.f32 %v3991, %v4067
        %v4069 = vpop.f32.mrb[0].mxu0
        %v4070 = vpop.f32.mrb[0].mxu0
        %v4071 = vadd.f32 %v3991, %v4070
        %v4072 = vpop.f32.mrb[0].mxu0
        %4073 = vmatprep.mubr.bf16.mxu0 0
        %4074 = vmatmul.mubr.bf16.gmra.mrb[0].mxu0 %v4015
        %v4075 = vpop.f32.mrb[0].mxu0
        %v4076 = vadd.f32 %v3991, %v4075
        %v4077 = vpop.f32.mrb[0].mxu0
        %v4078 = vpop.f32.mrb[0].mxu0
        %v4079 = vadd.f32 %v3991, %v4078
        %v4080 = vpop.f32.mrb[0].mxu0
        %4081 = vdwg.mxu0
        %vm4082 = vcmask 130048
        %4083 = vst.msk [vmem:[%s255] sm:$0xff] %vm4082, %v4052
        %4084 = vst.msk [vmem:[%s255 + $0x8] sm:$0xff] %vm4082, %v4055
        %4085 = vst.msk [vmem:[%s255 + $0x10] sm:$0xff] %vm4082, %v4060
        %4086 = vst.msk [vmem:[%s255 + $0x18] sm:$0xff] %vm4082, %v4063
        %4087 = vst.msk [vmem:[%s255 + $0x20] sm:$0xff] %vm4082, %v4068
        %4088 = vst.msk [vmem:[%s255 + $0x28] sm:$0xff] %vm4082, %v4071
        %4089 = vst.msk [vmem:[%s255 + $0x30] sm:$0xff] %vm4082, %v4076
        %4090 = vst.msk [vmem:[%s255 + $0x38] sm:$0xff] %vm4082, %v4079
        %s4091 = sand.u32 %s142, 1
        %s4092 = scalar_lea.sflag [#allocation4], %s4091
        %s4093 = sand.u32 %s142, 1
        %s4094 = smul.addr %s4093, 64
        %s4095 = scalar_lea.vmem [#allocation3], %s4094
        %s4096 = sand.u32 %s168, 1
        %s4097 = scalar_lea.sflag [#allocation6], %s4096
        %s4098 = sand.u32 %s168, 1
        %s4099 = smul.addr %s4098, 64
        %s4100 = scalar_lea.vmem [#allocation5], %s4099
        // Predicated region
        $region41: #{tpu_custom_call.1} parent=39 // pred_check
          %p4101 = pneg %p152
        $region42: #{tpu_custom_call.1} parent=39 // pred_check_branch
          %4103 = sbr.rel (%p4101) target = $region44
        $region43: #{tpu_custom_call.1} parent=39 // pred_region
          %s4105 = ssub.s32 1024, 1024
          %4106 = vsyncadd %s4092, %s4105
          %s4107 = smul.addr %s24, 8
          %s4108 = smul.addr %s4107, 128
          %s4109 = scalar_lea.hbm %s5, %s4108
          %s4110 = sshll.u32 %s4095, 4
          %s4111 = int_to_ptr.vmem [resolvable:$true] %s4110
          %4116 = dma.vmem_to_hbm [thread:$0]  %s4111, 1024, %s4109, %s4092, 128, 128, 8
        $region44: #{tpu_custom_call.1} parent=39 // pred_fallthru
          _
        // Predicated region
        $region45: #{tpu_custom_call.1} parent=39 // pred_check
          %p4117 = pneg %p178
        $region46: #{tpu_custom_call.1} parent=39 // pred_check_branch
          %4119 = sbr.rel (%p4117) target = $region48
        $region47: #{tpu_custom_call.1} parent=39 // pred_region
          %s4121 = ssub.s32 1024, 1024
          %4122 = vsyncadd %s4097, %s4121
          %s4123 = smul.addr %s24, 8
          %s4124 = smul.addr %s4123, 128
          %s4125 = scalar_lea.hbm %s6, %s4124
          %s4126 = sshll.u32 %s4100, 4
          %s4127 = int_to_ptr.vmem [resolvable:$true] %s4126
          %4132 = dma.vmem_to_hbm [thread:$0]  %s4127, 1024, %s4125, %s4097, 128, 128, 8
        $region48: #{tpu_custom_call.1} parent=39 // pred_fallthru
          _
      $region40: #{tpu_custom_call.1} parent=5 // pred_fallthru
        _
      %p4133 = scmp.le.s32.totalorder 2, %s19
      // Predicated region
      $region49: #{tpu_custom_call.1} parent=5 // pred_check
        %p4134 = pneg %p4133
      $region50: #{tpu_custom_call.1} parent=5 // pred_check_branch
        %4136 = sbr.rel (%p4134) target = $region52
      $region51: #{tpu_custom_call.1} parent=5 // pred_region
        %s4137 = ssub.s32 %s19, 2
        // Predicated region
        $region53: #{tpu_custom_call.1} parent=51 // pred_check
          %p4138 = pneg %p158
        $region54: #{tpu_custom_call.1} parent=51 // pred_check_branch
          %4140 = sbr.rel (%p4138) target = $region56
        $region55: #{tpu_custom_call.1} parent=51 // pred_region
          %s4141 = sand.u32 %s143, 1
          %s4142 = scalar_lea.sflag [#allocation4], %s4141
          %s4143 = sand.u32 %s143, 1
          %s4144 = smul.addr %s4143, 64
          %s4145 = scalar_lea.vmem [#allocation3], %s4144
          %4146 = dma.done %s4142, 1024
        $region56: #{tpu_custom_call.1} parent=51 // pred_fallthru
          _
        // Predicated region
        $region57: #{tpu_custom_call.1} parent=51 // pred_check
          %p4147 = pneg %p184
        $region58: #{tpu_custom_call.1} parent=51 // pred_check_branch
          %4149 = sbr.rel (%p4147) target = $region60
        $region59: #{tpu_custom_call.1} parent=51 // pred_region
          %s4150 = sand.u32 %s169, 1
          %s4151 = scalar_lea.sflag [#allocation6], %s4150
          %s4152 = sand.u32 %s169, 1
          %s4153 = smul.addr %s4152, 64
          %s4154 = scalar_lea.vmem [#allocation5], %s4153
          %4155 = dma.done %s4151, 1024
        $region60: #{tpu_custom_call.1} parent=51 // pred_fallthru
          _
      $region52: #{tpu_custom_call.1} parent=5 // pred_fallthru
        _
    $region6: #{tpu_custom_call.1} parent=1 // loop_footer
      %s23 = sadd.s32 1, %s19
    $region7: #{tpu_custom_call.1} parent=1 // loop_footer_branch
      %18 = sbr.rel target = $region3
    $region8: #{tpu_custom_call.1} parent=1 // loop_exit
      _
    %4156 = vsyncpa [#allocation4], 1
    %s4157 = scalar_lea.sflag [#allocation4], 1
    %4158 = vsyncpa %s4157, 1
    %4159 = vsyncpa [#allocation6], 1
    %s4160 = scalar_lea.sflag [#allocation6], 1
    %4161 = vsyncpa %s4160, 1

</llo_original>
